<compile_context>
chip_gen: v5e
topology: v5e:2x2
jax: 0.10.0
libtpu: 0.0.40
codegen_flags: <defaults>
</compile_context>

<pallas_src>
import functools
import math

import jax
import jax.numpy as jnp
import numpy as np
from jax import lax
from jax.experimental import pallas as pl
from jax.experimental.pallas import tpu as pltpu

# ----------------------------- small model config ---------------------------
DIM = 128
N_HEADS = 2
HEAD_DIM = DIM // N_HEADS          # 64
HEAD_PAD = 128                     # each head's lane block padded to a full vreg group
N_LAYERS = 2
VOCAB = 256
MULTIPLE_OF = 64
NORM_EPS = 1e-5
MAX_SEQ_LEN = 16
BATCH = 2
SEQ = 8


def _ffn_hidden(dim, multiple_of):
    hidden = int(2 * (4 * dim) / 3)
    return multiple_of * ((hidden + multiple_of - 1) // multiple_of)


FFN_HIDDEN = _ffn_hidden(DIM, MULTIPLE_OF)  # 384


# ------------------------------- Pallas kernel -------------------------------
def _rmsnorm(x, w, eps):
    # x: (T, D) f32, w: (1, D) f32 -- matches RMSNorm.forward with .float()
    var = jnp.mean(x * x, axis=-1, keepdims=True)
    return x * lax.rsqrt(var + eps) * w


def _fused_kernel(x_ref, cos_ref, sin_ref, mask_ref,
                  anorm_ref, wqkv_ref, wo_ref,
                  fnorm_ref, w13_ref, w2_ref,
                  norm_ref, wout_ref,
                  out_ref, *, n_layers, n_heads, head_pad, ffn_hidden, eps):
    h = x_ref[...]            # (B*S, D) f32 residual stream (batch flattened)
    cos = cos_ref[...]        # (B*S, H*head_pad) f32
    sin = sin_ref[...]
    mask = mask_ref[...]      # (B*S, B*S) block-diagonal additive mask
    hp = n_heads * head_pad

    for l in range(n_layers):          # static unroll (weights stacked on axis 0)
        # ---- attention ----
        xn = _rmsnorm(h, anorm_ref[l], eps).astype(jnp.bfloat16)
        # One lane-dense matmul for [q | q_rot | k | k_rot | v], all heads fused,
        # each head padded to 128 lanes (width 5*H*128 = 1280).
        qkv = jnp.dot(xn, wqkv_ref[l], preferred_element_type=jnp.float32)
        q = qkv[:, 0 * hp:1 * hp]
        qr = qkv[:, 1 * hp:2 * hp]
        k = qkv[:, 2 * hp:3 * hp]
        kr = qkv[:, 3 * hp:4 * hp]
        v = qkv[:, 4 * hp:5 * hp]
        q = q * cos + qr * sin          # RoPE; 1/sqrt(Dh) already folded into Wq
        k = k * cos + kr * sin

        attn = None
        for hd in range(n_heads):
            sl = slice(hd * head_pad, (hd + 1) * head_pad)   # vreg-aligned slice
            qh, kh, vh = q[:, sl], k[:, sl], v[:, sl]
            s = lax.dot_general(qh, kh, (((1,), (1,)), ((), ())),
                                preferred_element_type=jnp.float32)
            s = s + mask                 # block-diagonal: kills cross-batch scores
            m = jnp.max(s, axis=-1, keepdims=True)
            e = jnp.exp(s - m)
            p = e * pl.reciprocal(jnp.sum(e, axis=-1, keepdims=True), approx=True)
            o_h = jnp.dot(p, vh, preferred_element_type=jnp.float32)
            c = jnp.dot(o_h.astype(jnp.bfloat16), wo_ref[l * n_heads + hd],
                        preferred_element_type=jnp.float32)
            attn = c if attn is None else attn + c           # no lane concat
        h = h + attn

        # ---- feed-forward (SwiGLU), w1/w3 fused into one matmul ----
        hn = _rmsnorm(h, fnorm_ref[l], eps).astype(jnp.bfloat16)
        ab = jnp.dot(hn, w13_ref[l], preferred_element_type=jnp.float32)
        a = ab[:, :ffn_hidden]
        b = ab[:, ffn_hidden:]
        silu = 0.5 * a * (1.0 + jnp.tanh(0.5 * a))           # single EUP op
        ff = (silu * b).astype(jnp.bfloat16)
        h = h + jnp.dot(ff, w2_ref[l], preferred_element_type=jnp.float32)

    # ---- final RMSNorm + logits head ----
    hn = _rmsnorm(h, norm_ref[...], eps).astype(jnp.bfloat16)
    out_ref[...] = jnp.dot(hn, wout_ref[...], preferred_element_type=jnp.float32)


# ------------------------------- wrapper --------------------------------------
def fused_transformer(x2d, cos2d, sin2d, mask2d, pk):
    T, D = x2d.shape
    V = pk["wout"].shape[-1]
    kernel = functools.partial(
        _fused_kernel, n_layers=N_LAYERS, n_heads=N_HEADS,
        head_pad=HEAD_PAD, ffn_hidden=FFN_HIDDEN, eps=NORM_EPS)
    operands = (x2d, cos2d, sin2d, mask2d,
                pk["anorm"], pk["wqkv"], pk["wo"], pk["fnorm"],
                pk["w13"], pk["w2"], pk["norm"], pk["wout"])

    def full_spec(shape):
        n = len(shape)
        return pl.BlockSpec(shape, lambda i, _n=n: (0,) * _n)

    return pl.pallas_call(
        kernel,
        out_shape=jax.ShapeDtypeStruct((T, V), jnp.float32),
        grid=(1,),                                   # single step: no pipeline churn
        in_specs=[full_spec(op.shape) for op in operands],
        out_specs=pl.BlockSpec((T, V), lambda i: (0, 0)),
        compiler_params=pltpu.CompilerParams(
            dimension_semantics=("arbitrary",)),
    )(*operands)


# -------------------------- glue (plain JAX) ---------------------------------
def precompute_cos_sin(seq_len, dim):
    inv_freq = 1.0 / (10000.0 ** (jnp.arange(0, dim, 2, dtype=jnp.float32) / dim))
    t = jnp.arange(seq_len, dtype=jnp.float32)
    freqs = jnp.einsum("i,j->ij", t, inv_freq)
    emb = jnp.concatenate([freqs, freqs], axis=-1)       # (S, dim)
    return jnp.cos(emb), jnp.sin(emb)


def _pad_tile_rope(t, B):
    # (S, Dh) -> (B*S, H*HEAD_PAD): zero-pad head dim, tile across heads and batch.
    t_pad = jnp.pad(t, ((0, 0), (0, HEAD_PAD - HEAD_DIM)))
    t_heads = jnp.tile(t_pad, (1, N_HEADS))
    return jnp.tile(t_heads, (B, 1))


def build_mask(attention_mask, S):
    # Reproduces _expand_mask(attention_mask) + _make_causal_mask, squeezed to (B,S,S).
    neg = jnp.finfo(jnp.float32).min
    inv = 1.0 - attention_mask.astype(jnp.float32)        # (B, S) over src positions
    expanded = jnp.where(inv.astype(bool), neg, 0.0)[:, None, :]   # (B, 1, S)
    i = jnp.arange(S)[:, None]
    j = jnp.arange(S)[None, :]
    causal = jnp.where(j <= i, 0.0, neg)                  # (S, S)
    return expanded + causal[None, :, :]                  # (B, S, S)


def build_block_diag_mask(attention_mask, S):
    # (B*S, B*S) additive mask: per-batch mask on the diagonal blocks, finfo.min
    # everywhere else (so flattened-batch attention never mixes batches).
    per_b = build_mask(attention_mask, S)                 # (B, S, S)
    B = per_b.shape[0]
    neg = jnp.finfo(jnp.float32).min
    eye = jnp.eye(B, dtype=bool)
    blk = jnp.where(eye[:, None, :, None], per_b[:, :, None, :], neg)  # (B,S,B,S)
    return blk.reshape(B * S, B * S)


def _rotate_half_weight(w):
    d = w.shape[-1]
    return jnp.concatenate([-w[..., d // 2:], w[..., :d // 2]], axis=-1)


def pack_params(params):
    """Stack per-layer weights, fuse + pad heads to 128 lanes, fold softmax scale."""
    D, Dh, H, P = DIM, HEAD_DIM, N_HEADS, HEAD_PAD
    scale = 1.0 / math.sqrt(Dh)

    def fuse_heads_padded(w):   # (H, D, Dh) -> (D, H*P), each head zero-padded to P
        wp = jnp.pad(w, ((0, 0), (0, 0), (0, P - Dh)))
        return jnp.transpose(wp, (1, 0, 2)).reshape(D, H * P)

    anorm, fnorm, wqkv, wo, w13, w2 = [], [], [], [], [], []
    for lp in params["layers"]:
        anorm.append(lp["attn_norm"])
        fnorm.append(lp["ffn_norm"])
        wq_s = lp["wq"] * scale                            # fold 1/sqrt(Dh) into Wq
        wqkv.append(jnp.concatenate([
            fuse_heads_padded(wq_s),
            fuse_heads_padded(_rotate_half_weight(wq_s)),
            fuse_heads_padded(lp["wk"]),
            fuse_heads_padded(_rotate_half_weight(lp["wk"])),
            fuse_heads_padded(lp["wv"])], axis=-1))        # (D, 5*H*P) = (128, 1280)
        wo.append(jnp.pad(lp["wo"], ((0, 0), (0, P - Dh), (0, 0))))  # (H, P, D)
        w13.append(jnp.concatenate([lp["w1"], lp["w3"]], axis=-1))
        w2.append(lp["w2"])
    wo_stacked = jnp.stack(wo).reshape(N_LAYERS * H, P, D)
    return dict(
        anorm=jnp.stack(anorm),                       # (L, 1, D)   f32
        fnorm=jnp.stack(fnorm),                       # (L, 1, D)   f32
        wqkv=jnp.stack(wqkv).astype(jnp.bfloat16),    # (L, D, 5*H*P)
        wo=wo_stacked.astype(jnp.bfloat16),           # (L*H, P, D)
        w13=jnp.stack(w13).astype(jnp.bfloat16),      # (L, D, 2*FFN)
        w2=jnp.stack(w2).astype(jnp.bfloat16),        # (L, FFN, D)
        norm=params["norm"],                          # (1, D)      f32
        wout=params["output"].astype(jnp.bfloat16))   # (D, V)


def init_params(key):
    params = {"layers": []}
    for _ in range(N_LAYERS):
        key, *ks = jax.random.split(key, 8)
        wq = 0.02 * jax.random.normal(ks[0], (N_HEADS, DIM, HEAD_DIM), jnp.float32)
        wk = 0.02 * jax.random.normal(ks[1], (N_HEADS, DIM, HEAD_DIM), jnp.float32)
        wv = 0.02 * jax.random.normal(ks[2], (N_HEADS, DIM, HEAD_DIM), jnp.float32)
        wo = 0.02 * jax.random.normal(ks[3], (N_HEADS, HEAD_DIM, DIM), jnp.float32)
        w1 = 0.02 * jax.random.normal(ks[4], (DIM, FFN_HIDDEN), jnp.float32)
        w3 = 0.02 * jax.random.normal(ks[5], (DIM, FFN_HIDDEN), jnp.float32)
        w2 = 0.02 * jax.random.normal(ks[6], (FFN_HIDDEN, DIM), jnp.float32)
        params["layers"].append(dict(
            attn_norm=jnp.ones((1, DIM), jnp.float32),
            ffn_norm=jnp.ones((1, DIM), jnp.float32),
            wq=wq, wk=wk, wv=wv, wo=wo, w1=w1, w2=w2, w3=w3))
    key, k1 = jax.random.split(key)
    params["norm"] = jnp.ones((1, DIM), jnp.float32)
    params["output"] = 0.02 * jax.random.normal(k1, (DIM, VOCAB), jnp.float32)
    return params


@jax.jit
def transformer_forward(input_embeds, attention_mask, params):
    B, S, D = input_embeds.shape
    mask2d = build_block_diag_mask(attention_mask, S)          # (B*S, B*S)
    cos_full, sin_full = precompute_cos_sin(MAX_SEQ_LEN, HEAD_DIM)
    cos2d = _pad_tile_rope(cos_full[:S], B)                    # (B*S, H*HEAD_PAD)
    sin2d = _pad_tile_rope(sin_full[:S], B)
    pk = pack_params(params)
    x2d = input_embeds.reshape(B * S, D)                       # batch flattened
    logits2d = fused_transformer(x2d, cos2d, sin2d, mask2d, pk)
    return logits2d.reshape(B, S, -1)


# -------------------------- pure-JAX reference -------------------------------
def _rmsnorm_ref(x, w):
    var = jnp.mean(x * x, axis=-1, keepdims=True)
    return x * lax.rsqrt(var + NORM_EPS) * w


def _rotate_half(x):
    d = x.shape[-1]
    return jnp.concatenate([-x[..., d // 2:], x[..., :d // 2]], axis=-1)


def reference_forward(input_embeds, attention_mask, params):
    B, S, D = input_embeds.shape
    mask = build_mask(attention_mask, S)[:, None]        # (B,1,S,S)
    cos_full, sin_full = precompute_cos_sin(MAX_SEQ_LEN, HEAD_DIM)
    cos, sin = cos_full[:S], sin_full[:S]
    h = input_embeds
    for lp in params["layers"]:
        xn = _rmsnorm_ref(h, lp["attn_norm"][0])
        q = jnp.einsum("bsd,hde->bhse", xn, lp["wq"])
        k = jnp.einsum("bsd,hde->bhse", xn, lp["wk"])
        v = jnp.einsum("bsd,hde->bhse", xn, lp["wv"])
        q = q * cos + _rotate_half(q) * sin
        k = k * cos + _rotate_half(k) * sin
        scores = jnp.einsum("bhqe,bhke->bhqk", q, k) / math.sqrt(HEAD_DIM) + mask
        p = jax.nn.softmax(scores, axis=-1)
        o = jnp.einsum("bhqk,bhke->bhqe", p, v)
        h = h + jnp.einsum("bhse,hed->bsd", o, lp["wo"])
        hn = _rmsnorm_ref(h, lp["ffn_norm"][0])
        a = hn @ lp["w1"]
        b = hn @ lp["w3"]
        h = h + ((a * (1.0 / (1.0 + jnp.exp(-a)))) * b) @ lp["w2"]
    hn = _rmsnorm_ref(h, params["norm"][0])
    return hn @ params["output"]


# ----------------------------------- main -------------------------------------
if __name__ == "__main__":
    key = jax.random.PRNGKey(0)
    pkey, ekey = jax.random.split(key)
    params = init_params(pkey)

    input_embeds = jax.random.normal(ekey, (BATCH, SEQ, DIM), jnp.float32)
    attention_mask = jnp.ones((BATCH, SEQ), jnp.float32)

    logits = transformer_forward(input_embeds, attention_mask, params)
    logits = jax.block_until_ready(logits)

    ref = reference_forward(input_embeds, attention_mask, params)
    np.testing.assert_allclose(np.asarray(logits), np.asarray(ref),
                               rtol=2e-2, atol=2e-2)
    assert logits.shape == (BATCH, SEQ, VOCAB)
    print("KERNEL_OK")
</pallas_src>

<mosaic_0001>
module attributes {stable_mosaic.version = 11 : i64} {
  func.func @_fused_kernel(%arg0: i32, %arg1: memref<16x128xf32, #tpu.memory_space<vmem>>, %arg2: memref<16x256xf32, #tpu.memory_space<vmem>>, %arg3: memref<16x256xf32, #tpu.memory_space<vmem>>, %arg4: memref<16x16xf32, #tpu.memory_space<vmem>>, %arg5: memref<2x1x128xf32, #tpu.memory_space<vmem>>, %arg6: memref<2x128x1280xbf16, #tpu.memory_space<vmem>>, %arg7: memref<4x128x128xbf16, #tpu.memory_space<vmem>>, %arg8: memref<2x1x128xf32, #tpu.memory_space<vmem>>, %arg9: memref<2x128x768xbf16, #tpu.memory_space<vmem>>, %arg10: memref<2x384x128xbf16, #tpu.memory_space<vmem>>, %arg11: memref<1x128xf32, #tpu.memory_space<vmem>>, %arg12: memref<128x256xbf16, #tpu.memory_space<vmem>>, %arg13: memref<16x256xf32, #tpu.memory_space<vmem>>) attributes {dimension_semantics = [#tpu.dimension_semantics<arbitrary>], iteration_bounds = array<i64: 1>, scalar_prefetch = 0 : i64, scratch_operands = 0 : i64, tpu.core_type = #tpu.core_type<tc>, window_params = [{pipeline_mode = #tpu.pipeline_mode<synchronous>, transform_indices = @transform_0, window_bounds = array<i64: 16, 128>}, {pipeline_mode = #tpu.pipeline_mode<synchronous>, transform_indices = @transform_1, window_bounds = array<i64: 16, 256>}, {pipeline_mode = #tpu.pipeline_mode<synchronous>, transform_indices = @transform_2, window_bounds = array<i64: 16, 256>}, {pipeline_mode = #tpu.pipeline_mode<synchronous>, transform_indices = @transform_3, window_bounds = array<i64: 16, 16>}, {pipeline_mode = #tpu.pipeline_mode<synchronous>, transform_indices = @transform_4, window_bounds = array<i64: 2, 1, 128>}, {pipeline_mode = #tpu.pipeline_mode<synchronous>, transform_indices = @transform_5, window_bounds = array<i64: 2, 128, 1280>}, {pipeline_mode = #tpu.pipeline_mode<synchronous>, transform_indices = @transform_6, window_bounds = array<i64: 4, 128, 128>}, {pipeline_mode = #tpu.pipeline_mode<synchronous>, transform_indices = @transform_7, window_bounds = array<i64: 2, 1, 128>}, {pipeline_mode = #tpu.pipeline_mode<synchronous>, transform_indices = @transform_8, window_bounds = array<i64: 2, 128, 768>}, {pipeline_mode = #tpu.pipeline_mode<synchronous>, transform_indices = @transform_9, window_bounds = array<i64: 2, 384, 128>}, {pipeline_mode = #tpu.pipeline_mode<synchronous>, transform_indices = @transform_10, window_bounds = array<i64: 1, 128>}, {pipeline_mode = #tpu.pipeline_mode<synchronous>, transform_indices = @transform_11, window_bounds = array<i64: 128, 256>}, {pipeline_mode = #tpu.pipeline_mode<synchronous>, transform_indices = @transform_12, window_bounds = array<i64: 16, 256>}]} {
    %c0 = arith.constant 0 : index
    %c0_0 = arith.constant 0 : index
    %0 = vector.load %arg1[%c0, %c0_0] : memref<16x128xf32, #tpu.memory_space<vmem>>, vector<16x128xf32>
    %c0_1 = arith.constant 0 : index
    %c0_2 = arith.constant 0 : index
    %1 = vector.load %arg2[%c0_1, %c0_2] : memref<16x256xf32, #tpu.memory_space<vmem>>, vector<16x256xf32>
    %c0_3 = arith.constant 0 : index
    %c0_4 = arith.constant 0 : index
    %2 = vector.load %arg3[%c0_3, %c0_4] : memref<16x256xf32, #tpu.memory_space<vmem>>, vector<16x256xf32>
    %c0_5 = arith.constant 0 : index
    %c0_6 = arith.constant 0 : index
    %3 = vector.load %arg4[%c0_5, %c0_6] : memref<16x16xf32, #tpu.memory_space<vmem>>, vector<16x16xf32>
    %c0_7 = arith.constant 0 : index
    %c0_8 = arith.constant 0 : index
    %c0_9 = arith.constant 0 : index
    %4 = vector.load %arg5[%c0_7, %c0_8, %c0_9] : memref<2x1x128xf32, #tpu.memory_space<vmem>>, vector<1x1x128xf32>
    %5 = vector.shape_cast %4 : vector<1x1x128xf32> to vector<1x128xf32>
    %6 = arith.mulf %0, %0 : vector<16x128xf32>
    %cst = arith.constant dense<0.000000e+00> : vector<16xf32>
    %7 = vector.multi_reduction <add>, %6, %cst [1] : vector<16x128xf32> to vector<16xf32>
    %8 = vector.shape_cast %7 : vector<16xf32> to vector<16x1xf32>
    %cst_10 = arith.constant 1.280000e+02 : f32
    %9 = vector.broadcast %cst_10 : f32 to vector<16x1xf32>
    %10 = arith.divf %8, %9 : vector<16x1xf32>
    %cst_11 = arith.constant 9.99999974E-6 : f32
    %11 = vector.broadcast %cst_11 : f32 to vector<16x1xf32>
    %12 = arith.addf %10, %11 : vector<16x1xf32>
    %13 = math.rsqrt %12 : vector<16x1xf32>
    %14 = vector.broadcast %13 : vector<16x1xf32> to vector<16x128xf32>
    %15 = arith.mulf %0, %14 : vector<16x128xf32>
    %16 = vector.broadcast %5 : vector<1x128xf32> to vector<16x128xf32>
    %17 = arith.mulf %15, %16 : vector<16x128xf32>
    %18 = arith.truncf %17 : vector<16x128xf32> to vector<16x128xbf16>
    %c0_12 = arith.constant 0 : index
    %c0_13 = arith.constant 0 : index
    %c0_14 = arith.constant 0 : index
    %19 = vector.load %arg6[%c0_12, %c0_13, %c0_14] : memref<2x128x1280xbf16, #tpu.memory_space<vmem>>, vector<1x128x1280xbf16>
    %20 = vector.shape_cast %19 : vector<1x128x1280xbf16> to vector<128x1280xbf16>
    %cst_15 = arith.constant dense<0.000000e+00> : vector<16x1280xf32>
    %21 = tpu.matmul %18, %20, %cst_15 {dimension_numbers = #tpu.dot_dimension_numbers<[1], [0], [0], [1], [0, 0, 1, 1], [], []>} : vector<16x128xbf16>, vector<128x1280xbf16>, vector<16x1280xf32> -> vector<16x1280xf32>
    %22 = vector.extract_strided_slice %21 {offsets = [0, 0], sizes = [16, 256], strides = [1, 1]} : vector<16x1280xf32> to vector<16x256xf32>
    %23 = vector.extract_strided_slice %21 {offsets = [0, 256], sizes = [16, 256], strides = [1, 1]} : vector<16x1280xf32> to vector<16x256xf32>
    %24 = vector.extract_strided_slice %21 {offsets = [0, 512], sizes = [16, 256], strides = [1, 1]} : vector<16x1280xf32> to vector<16x256xf32>
    %25 = vector.extract_strided_slice %21 {offsets = [0, 768], sizes = [16, 256], strides = [1, 1]} : vector<16x1280xf32> to vector<16x256xf32>
    %26 = vector.extract_strided_slice %21 {offsets = [0, 1024], sizes = [16, 256], strides = [1, 1]} : vector<16x1280xf32> to vector<16x256xf32>
    %27 = arith.mulf %22, %1 : vector<16x256xf32>
    %28 = arith.mulf %23, %2 : vector<16x256xf32>
    %29 = arith.addf %27, %28 : vector<16x256xf32>
    %30 = arith.mulf %24, %1 : vector<16x256xf32>
    %31 = arith.mulf %25, %2 : vector<16x256xf32>
    %32 = arith.addf %30, %31 : vector<16x256xf32>
    %33 = vector.extract_strided_slice %29 {offsets = [0, 0], sizes = [16, 128], strides = [1, 1]} : vector<16x256xf32> to vector<16x128xf32>
    %34 = vector.extract_strided_slice %32 {offsets = [0, 0], sizes = [16, 128], strides = [1, 1]} : vector<16x256xf32> to vector<16x128xf32>
    %35 = vector.extract_strided_slice %26 {offsets = [0, 0], sizes = [16, 128], strides = [1, 1]} : vector<16x256xf32> to vector<16x128xf32>
    %cst_16 = arith.constant dense<0.000000e+00> : vector<16x16xf32>
    %36 = tpu.matmul %33, %34, %cst_16 {dimension_numbers = #tpu.dot_dimension_numbers<[1], [1], [0], [0], [0, 0, 1, 0], [], []>} : vector<16x128xf32>, vector<16x128xf32>, vector<16x16xf32> -> vector<16x16xf32>
    %37 = arith.addf %36, %3 : vector<16x16xf32>
    %cst_17 = arith.constant dense<0xFF800000> : vector<16xf32>
    %38 = vector.multi_reduction <maximumf>, %37, %cst_17 [1] : vector<16x16xf32> to vector<16xf32>
    %39 = vector.shape_cast %38 : vector<16xf32> to vector<16x1xf32>
    %40 = vector.broadcast %39 : vector<16x1xf32> to vector<16x16xf32>
    %41 = arith.subf %37, %40 : vector<16x16xf32>
    %42 = math.exp %41 : vector<16x16xf32>
    %cst_18 = arith.constant dense<0.000000e+00> : vector<16xf32>
    %43 = vector.multi_reduction <add>, %42, %cst_18 [1] : vector<16x16xf32> to vector<16xf32>
    %44 = vector.shape_cast %43 : vector<16xf32> to vector<16x1xf32>
    %45 = tpu.reciprocal %44 {approx = true} : vector<16x1xf32> -> vector<16x1xf32>
    %46 = vector.broadcast %45 : vector<16x1xf32> to vector<16x16xf32>
    %47 = arith.mulf %42, %46 : vector<16x16xf32>
    %cst_19 = arith.constant dense<0.000000e+00> : vector<16x128xf32>
    %48 = tpu.matmul %47, %35, %cst_19 {dimension_numbers = #tpu.dot_dimension_numbers<[1], [0], [0], [1], [0, 0, 1, 1], [], []>} : vector<16x16xf32>, vector<16x128xf32>, vector<16x128xf32> -> vector<16x128xf32>
    %49 = arith.truncf %48 : vector<16x128xf32> to vector<16x128xbf16>
    %c0_20 = arith.constant 0 : index
    %c0_21 = arith.constant 0 : index
    %c0_22 = arith.constant 0 : index
    %50 = vector.load %arg7[%c0_20, %c0_21, %c0_22] : memref<4x128x128xbf16, #tpu.memory_space<vmem>>, vector<1x128x128xbf16>
    %51 = vector.shape_cast %50 : vector<1x128x128xbf16> to vector<128x128xbf16>
    %cst_23 = arith.constant dense<0.000000e+00> : vector<16x128xf32>
    %52 = tpu.matmul %49, %51, %cst_23 {dimension_numbers = #tpu.dot_dimension_numbers<[1], [0], [0], [1], [0, 0, 1, 1], [], []>} : vector<16x128xbf16>, vector<128x128xbf16>, vector<16x128xf32> -> vector<16x128xf32>
    %53 = vector.extract_strided_slice %29 {offsets = [0, 128], sizes = [16, 128], strides = [1, 1]} : vector<16x256xf32> to vector<16x128xf32>
    %54 = vector.extract_strided_slice %32 {offsets = [0, 128], sizes = [16, 128], strides = [1, 1]} : vector<16x256xf32> to vector<16x128xf32>
    %55 = vector.extract_strided_slice %26 {offsets = [0, 128], sizes = [16, 128], strides = [1, 1]} : vector<16x256xf32> to vector<16x128xf32>
    %cst_24 = arith.constant dense<0.000000e+00> : vector<16x16xf32>
    %56 = tpu.matmul %53, %54, %cst_24 {dimension_numbers = #tpu.dot_dimension_numbers<[1], [1], [0], [0], [0, 0, 1, 0], [], []>} : vector<16x128xf32>, vector<16x128xf32>, vector<16x16xf32> -> vector<16x16xf32>
    %57 = arith.addf %56, %3 : vector<16x16xf32>
    %cst_25 = arith.constant dense<0xFF800000> : vector<16xf32>
    %58 = vector.multi_reduction <maximumf>, %57, %cst_25 [1] : vector<16x16xf32> to vector<16xf32>
    %59 = vector.shape_cast %58 : vector<16xf32> to vector<16x1xf32>
    %60 = vector.broadcast %59 : vector<16x1xf32> to vector<16x16xf32>
    %61 = arith.subf %57, %60 : vector<16x16xf32>
    %62 = math.exp %61 : vector<16x16xf32>
    %cst_26 = arith.constant dense<0.000000e+00> : vector<16xf32>
    %63 = vector.multi_reduction <add>, %62, %cst_26 [1] : vector<16x16xf32> to vector<16xf32>
    %64 = vector.shape_cast %63 : vector<16xf32> to vector<16x1xf32>
    %65 = tpu.reciprocal %64 {approx = true} : vector<16x1xf32> -> vector<16x1xf32>
    %66 = vector.broadcast %65 : vector<16x1xf32> to vector<16x16xf32>
    %67 = arith.mulf %62, %66 : vector<16x16xf32>
    %cst_27 = arith.constant dense<0.000000e+00> : vector<16x128xf32>
    %68 = tpu.matmul %67, %55, %cst_27 {dimension_numbers = #tpu.dot_dimension_numbers<[1], [0], [0], [1], [0, 0, 1, 1], [], []>} : vector<16x16xf32>, vector<16x128xf32>, vector<16x128xf32> -> vector<16x128xf32>
    %69 = arith.truncf %68 : vector<16x128xf32> to vector<16x128xbf16>
    %c1 = arith.constant 1 : index
    %c0_28 = arith.constant 0 : index
    %c0_29 = arith.constant 0 : index
    %70 = vector.load %arg7[%c1, %c0_28, %c0_29] : memref<4x128x128xbf16, #tpu.memory_space<vmem>>, vector<1x128x128xbf16>
    %71 = vector.shape_cast %70 : vector<1x128x128xbf16> to vector<128x128xbf16>
    %cst_30 = arith.constant dense<0.000000e+00> : vector<16x128xf32>
    %72 = tpu.matmul %69, %71, %cst_30 {dimension_numbers = #tpu.dot_dimension_numbers<[1], [0], [0], [1], [0, 0, 1, 1], [], []>} : vector<16x128xbf16>, vector<128x128xbf16>, vector<16x128xf32> -> vector<16x128xf32>
    %73 = arith.addf %52, %72 : vector<16x128xf32>
    %74 = arith.addf %0, %73 : vector<16x128xf32>
    %c0_31 = arith.constant 0 : index
    %c0_32 = arith.constant 0 : index
    %c0_33 = arith.constant 0 : index
    %75 = vector.load %arg8[%c0_31, %c0_32, %c0_33] : memref<2x1x128xf32, #tpu.memory_space<vmem>>, vector<1x1x128xf32>
    %76 = vector.shape_cast %75 : vector<1x1x128xf32> to vector<1x128xf32>
    %77 = arith.mulf %74, %74 : vector<16x128xf32>
    %cst_34 = arith.constant dense<0.000000e+00> : vector<16xf32>
    %78 = vector.multi_reduction <add>, %77, %cst_34 [1] : vector<16x128xf32> to vector<16xf32>
    %79 = vector.shape_cast %78 : vector<16xf32> to vector<16x1xf32>
    %cst_35 = arith.constant 1.280000e+02 : f32
    %80 = vector.broadcast %cst_35 : f32 to vector<16x1xf32>
    %81 = arith.divf %79, %80 : vector<16x1xf32>
    %cst_36 = arith.constant 9.99999974E-6 : f32
    %82 = vector.broadcast %cst_36 : f32 to vector<16x1xf32>
    %83 = arith.addf %81, %82 : vector<16x1xf32>
    %84 = math.rsqrt %83 : vector<16x1xf32>
    %85 = vector.broadcast %84 : vector<16x1xf32> to vector<16x128xf32>
    %86 = arith.mulf %74, %85 : vector<16x128xf32>
    %87 = vector.broadcast %76 : vector<1x128xf32> to vector<16x128xf32>
    %88 = arith.mulf %86, %87 : vector<16x128xf32>
    %89 = arith.truncf %88 : vector<16x128xf32> to vector<16x128xbf16>
    %c0_37 = arith.constant 0 : index
    %c0_38 = arith.constant 0 : index
    %c0_39 = arith.constant 0 : index
    %90 = vector.load %arg9[%c0_37, %c0_38, %c0_39] : memref<2x128x768xbf16, #tpu.memory_space<vmem>>, vector<1x128x768xbf16>
    %91 = vector.shape_cast %90 : vector<1x128x768xbf16> to vector<128x768xbf16>
    %cst_40 = arith.constant dense<0.000000e+00> : vector<16x768xf32>
    %92 = tpu.matmul %89, %91, %cst_40 {dimension_numbers = #tpu.dot_dimension_numbers<[1], [0], [0], [1], [0, 0, 1, 1], [], []>} : vector<16x128xbf16>, vector<128x768xbf16>, vector<16x768xf32> -> vector<16x768xf32>
    %93 = vector.extract_strided_slice %92 {offsets = [0, 0], sizes = [16, 384], strides = [1, 1]} : vector<16x768xf32> to vector<16x384xf32>
    %94 = vector.extract_strided_slice %92 {offsets = [0, 384], sizes = [16, 384], strides = [1, 1]} : vector<16x768xf32> to vector<16x384xf32>
    %cst_41 = arith.constant 5.000000e-01 : f32
    %95 = vector.broadcast %cst_41 : f32 to vector<16x384xf32>
    %96 = arith.mulf %95, %93 : vector<16x384xf32>
    %cst_42 = arith.constant 5.000000e-01 : f32
    %97 = vector.broadcast %cst_42 : f32 to vector<16x384xf32>
    %98 = arith.mulf %97, %93 : vector<16x384xf32>
    %99 = math.tanh %98 : vector<16x384xf32>
    %cst_43 = arith.constant 1.000000e+00 : f32
    %100 = vector.broadcast %cst_43 : f32 to vector<16x384xf32>
    %101 = arith.addf %100, %99 : vector<16x384xf32>
    %102 = arith.mulf %96, %101 : vector<16x384xf32>
    %103 = arith.mulf %102, %94 : vector<16x384xf32>
    %104 = arith.truncf %103 : vector<16x384xf32> to vector<16x384xbf16>
    %c0_44 = arith.constant 0 : index
    %c0_45 = arith.constant 0 : index
    %c0_46 = arith.constant 0 : index
    %105 = vector.load %arg10[%c0_44, %c0_45, %c0_46] : memref<2x384x128xbf16, #tpu.memory_space<vmem>>, vector<1x384x128xbf16>
    %106 = vector.shape_cast %105 : vector<1x384x128xbf16> to vector<384x128xbf16>
    %cst_47 = arith.constant dense<0.000000e+00> : vector<16x128xf32>
    %107 = tpu.matmul %104, %106, %cst_47 {dimension_numbers = #tpu.dot_dimension_numbers<[1], [0], [0], [1], [0, 0, 1, 1], [], []>} : vector<16x384xbf16>, vector<384x128xbf16>, vector<16x128xf32> -> vector<16x128xf32>
    %108 = arith.addf %74, %107 : vector<16x128xf32>
    %c1_48 = arith.constant 1 : index
    %c0_49 = arith.constant 0 : index
    %c0_50 = arith.constant 0 : index
    %109 = vector.load %arg5[%c1_48, %c0_49, %c0_50] : memref<2x1x128xf32, #tpu.memory_space<vmem>>, vector<1x1x128xf32>
    %110 = vector.shape_cast %109 : vector<1x1x128xf32> to vector<1x128xf32>
    %111 = arith.mulf %108, %108 : vector<16x128xf32>
    %cst_51 = arith.constant dense<0.000000e+00> : vector<16xf32>
    %112 = vector.multi_reduction <add>, %111, %cst_51 [1] : vector<16x128xf32> to vector<16xf32>
    %113 = vector.shape_cast %112 : vector<16xf32> to vector<16x1xf32>
    %cst_52 = arith.constant 1.280000e+02 : f32
    %114 = vector.broadcast %cst_52 : f32 to vector<16x1xf32>
    %115 = arith.divf %113, %114 : vector<16x1xf32>
    %cst_53 = arith.constant 9.99999974E-6 : f32
    %116 = vector.broadcast %cst_53 : f32 to vector<16x1xf32>
    %117 = arith.addf %115, %116 : vector<16x1xf32>
    %118 = math.rsqrt %117 : vector<16x1xf32>
    %119 = vector.broadcast %118 : vector<16x1xf32> to vector<16x128xf32>
    %120 = arith.mulf %108, %119 : vector<16x128xf32>
    %121 = vector.broadcast %110 : vector<1x128xf32> to vector<16x128xf32>
    %122 = arith.mulf %120, %121 : vector<16x128xf32>
    %123 = arith.truncf %122 : vector<16x128xf32> to vector<16x128xbf16>
    %c1_54 = arith.constant 1 : index
    %c0_55 = arith.constant 0 : index
    %c0_56 = arith.constant 0 : index
    %124 = vector.load %arg6[%c1_54, %c0_55, %c0_56] : memref<2x128x1280xbf16, #tpu.memory_space<vmem>>, vector<1x128x1280xbf16>
    %125 = vector.shape_cast %124 : vector<1x128x1280xbf16> to vector<128x1280xbf16>
    %cst_57 = arith.constant dense<0.000000e+00> : vector<16x1280xf32>
    %126 = tpu.matmul %123, %125, %cst_57 {dimension_numbers = #tpu.dot_dimension_numbers<[1], [0], [0], [1], [0, 0, 1, 1], [], []>} : vector<16x128xbf16>, vector<128x1280xbf16>, vector<16x1280xf32> -> vector<16x1280xf32>
    %127 = vector.extract_strided_slice %126 {offsets = [0, 0], sizes = [16, 256], strides = [1, 1]} : vector<16x1280xf32> to vector<16x256xf32>
    %128 = vector.extract_strided_slice %126 {offsets = [0, 256], sizes = [16, 256], strides = [1, 1]} : vector<16x1280xf32> to vector<16x256xf32>
    %129 = vector.extract_strided_slice %126 {offsets = [0, 512], sizes = [16, 256], strides = [1, 1]} : vector<16x1280xf32> to vector<16x256xf32>
    %130 = vector.extract_strided_slice %126 {offsets = [0, 768], sizes = [16, 256], strides = [1, 1]} : vector<16x1280xf32> to vector<16x256xf32>
    %131 = vector.extract_strided_slice %126 {offsets = [0, 1024], sizes = [16, 256], strides = [1, 1]} : vector<16x1280xf32> to vector<16x256xf32>
    %132 = arith.mulf %127, %1 : vector<16x256xf32>
    %133 = arith.mulf %128, %2 : vector<16x256xf32>
    %134 = arith.addf %132, %133 : vector<16x256xf32>
    %135 = arith.mulf %129, %1 : vector<16x256xf32>
    %136 = arith.mulf %130, %2 : vector<16x256xf32>
    %137 = arith.addf %135, %136 : vector<16x256xf32>
    %138 = vector.extract_strided_slice %134 {offsets = [0, 0], sizes = [16, 128], strides = [1, 1]} : vector<16x256xf32> to vector<16x128xf32>
    %139 = vector.extract_strided_slice %137 {offsets = [0, 0], sizes = [16, 128], strides = [1, 1]} : vector<16x256xf32> to vector<16x128xf32>
    %140 = vector.extract_strided_slice %131 {offsets = [0, 0], sizes = [16, 128], strides = [1, 1]} : vector<16x256xf32> to vector<16x128xf32>
    %cst_58 = arith.constant dense<0.000000e+00> : vector<16x16xf32>
    %141 = tpu.matmul %138, %139, %cst_58 {dimension_numbers = #tpu.dot_dimension_numbers<[1], [1], [0], [0], [0, 0, 1, 0], [], []>} : vector<16x128xf32>, vector<16x128xf32>, vector<16x16xf32> -> vector<16x16xf32>
    %142 = arith.addf %141, %3 : vector<16x16xf32>
    %cst_59 = arith.constant dense<0xFF800000> : vector<16xf32>
    %143 = vector.multi_reduction <maximumf>, %142, %cst_59 [1] : vector<16x16xf32> to vector<16xf32>
    %144 = vector.shape_cast %143 : vector<16xf32> to vector<16x1xf32>
    %145 = vector.broadcast %144 : vector<16x1xf32> to vector<16x16xf32>
    %146 = arith.subf %142, %145 : vector<16x16xf32>
    %147 = math.exp %146 : vector<16x16xf32>
    %cst_60 = arith.constant dense<0.000000e+00> : vector<16xf32>
    %148 = vector.multi_reduction <add>, %147, %cst_60 [1] : vector<16x16xf32> to vector<16xf32>
    %149 = vector.shape_cast %148 : vector<16xf32> to vector<16x1xf32>
    %150 = tpu.reciprocal %149 {approx = true} : vector<16x1xf32> -> vector<16x1xf32>
    %151 = vector.broadcast %150 : vector<16x1xf32> to vector<16x16xf32>
    %152 = arith.mulf %147, %151 : vector<16x16xf32>
    %cst_61 = arith.constant dense<0.000000e+00> : vector<16x128xf32>
    %153 = tpu.matmul %152, %140, %cst_61 {dimension_numbers = #tpu.dot_dimension_numbers<[1], [0], [0], [1], [0, 0, 1, 1], [], []>} : vector<16x16xf32>, vector<16x128xf32>, vector<16x128xf32> -> vector<16x128xf32>
    %154 = arith.truncf %153 : vector<16x128xf32> to vector<16x128xbf16>
    %c2 = arith.constant 2 : index
    %c0_62 = arith.constant 0 : index
    %c0_63 = arith.constant 0 : index
    %155 = vector.load %arg7[%c2, %c0_62, %c0_63] : memref<4x128x128xbf16, #tpu.memory_space<vmem>>, vector<1x128x128xbf16>
    %156 = vector.shape_cast %155 : vector<1x128x128xbf16> to vector<128x128xbf16>
    %cst_64 = arith.constant dense<0.000000e+00> : vector<16x128xf32>
    %157 = tpu.matmul %154, %156, %cst_64 {dimension_numbers = #tpu.dot_dimension_numbers<[1], [0], [0], [1], [0, 0, 1, 1], [], []>} : vector<16x128xbf16>, vector<128x128xbf16>, vector<16x128xf32> -> vector<16x128xf32>
    %158 = vector.extract_strided_slice %134 {offsets = [0, 128], sizes = [16, 128], strides = [1, 1]} : vector<16x256xf32> to vector<16x128xf32>
    %159 = vector.extract_strided_slice %137 {offsets = [0, 128], sizes = [16, 128], strides = [1, 1]} : vector<16x256xf32> to vector<16x128xf32>
    %160 = vector.extract_strided_slice %131 {offsets = [0, 128], sizes = [16, 128], strides = [1, 1]} : vector<16x256xf32> to vector<16x128xf32>
    %cst_65 = arith.constant dense<0.000000e+00> : vector<16x16xf32>
    %161 = tpu.matmul %158, %159, %cst_65 {dimension_numbers = #tpu.dot_dimension_numbers<[1], [1], [0], [0], [0, 0, 1, 0], [], []>} : vector<16x128xf32>, vector<16x128xf32>, vector<16x16xf32> -> vector<16x16xf32>
    %162 = arith.addf %161, %3 : vector<16x16xf32>
    %cst_66 = arith.constant dense<0xFF800000> : vector<16xf32>
    %163 = vector.multi_reduction <maximumf>, %162, %cst_66 [1] : vector<16x16xf32> to vector<16xf32>
    %164 = vector.shape_cast %163 : vector<16xf32> to vector<16x1xf32>
    %165 = vector.broadcast %164 : vector<16x1xf32> to vector<16x16xf32>
    %166 = arith.subf %162, %165 : vector<16x16xf32>
    %167 = math.exp %166 : vector<16x16xf32>
    %cst_67 = arith.constant dense<0.000000e+00> : vector<16xf32>
    %168 = vector.multi_reduction <add>, %167, %cst_67 [1] : vector<16x16xf32> to vector<16xf32>
    %169 = vector.shape_cast %168 : vector<16xf32> to vector<16x1xf32>
    %170 = tpu.reciprocal %169 {approx = true} : vector<16x1xf32> -> vector<16x1xf32>
    %171 = vector.broadcast %170 : vector<16x1xf32> to vector<16x16xf32>
    %172 = arith.mulf %167, %171 : vector<16x16xf32>
    %cst_68 = arith.constant dense<0.000000e+00> : vector<16x128xf32>
    %173 = tpu.matmul %172, %160, %cst_68 {dimension_numbers = #tpu.dot_dimension_numbers<[1], [0], [0], [1], [0, 0, 1, 1], [], []>} : vector<16x16xf32>, vector<16x128xf32>, vector<16x128xf32> -> vector<16x128xf32>
    %174 = arith.truncf %173 : vector<16x128xf32> to vector<16x128xbf16>
    %c3 = arith.constant 3 : index
    %c0_69 = arith.constant 0 : index
    %c0_70 = arith.constant 0 : index
    %175 = vector.load %arg7[%c3, %c0_69, %c0_70] : memref<4x128x128xbf16, #tpu.memory_space<vmem>>, vector<1x128x128xbf16>
    %176 = vector.shape_cast %175 : vector<1x128x128xbf16> to vector<128x128xbf16>
    %cst_71 = arith.constant dense<0.000000e+00> : vector<16x128xf32>
    %177 = tpu.matmul %174, %176, %cst_71 {dimension_numbers = #tpu.dot_dimension_numbers<[1], [0], [0], [1], [0, 0, 1, 1], [], []>} : vector<16x128xbf16>, vector<128x128xbf16>, vector<16x128xf32> -> vector<16x128xf32>
    %178 = arith.addf %157, %177 : vector<16x128xf32>
    %179 = arith.addf %108, %178 : vector<16x128xf32>
    %c1_72 = arith.constant 1 : index
    %c0_73 = arith.constant 0 : index
    %c0_74 = arith.constant 0 : index
    %180 = vector.load %arg8[%c1_72, %c0_73, %c0_74] : memref<2x1x128xf32, #tpu.memory_space<vmem>>, vector<1x1x128xf32>
    %181 = vector.shape_cast %180 : vector<1x1x128xf32> to vector<1x128xf32>
    %182 = arith.mulf %179, %179 : vector<16x128xf32>
    %cst_75 = arith.constant dense<0.000000e+00> : vector<16xf32>
    %183 = vector.multi_reduction <add>, %182, %cst_75 [1] : vector<16x128xf32> to vector<16xf32>
    %184 = vector.shape_cast %183 : vector<16xf32> to vector<16x1xf32>
    %cst_76 = arith.constant 1.280000e+02 : f32
    %185 = vector.broadcast %cst_76 : f32 to vector<16x1xf32>
    %186 = arith.divf %184, %185 : vector<16x1xf32>
    %cst_77 = arith.constant 9.99999974E-6 : f32
    %187 = vector.broadcast %cst_77 : f32 to vector<16x1xf32>
    %188 = arith.addf %186, %187 : vector<16x1xf32>
    %189 = math.rsqrt %188 : vector<16x1xf32>
    %190 = vector.broadcast %189 : vector<16x1xf32> to vector<16x128xf32>
    %191 = arith.mulf %179, %190 : vector<16x128xf32>
    %192 = vector.broadcast %181 : vector<1x128xf32> to vector<16x128xf32>
    %193 = arith.mulf %191, %192 : vector<16x128xf32>
    %194 = arith.truncf %193 : vector<16x128xf32> to vector<16x128xbf16>
    %c1_78 = arith.constant 1 : index
    %c0_79 = arith.constant 0 : index
    %c0_80 = arith.constant 0 : index
    %195 = vector.load %arg9[%c1_78, %c0_79, %c0_80] : memref<2x128x768xbf16, #tpu.memory_space<vmem>>, vector<1x128x768xbf16>
    %196 = vector.shape_cast %195 : vector<1x128x768xbf16> to vector<128x768xbf16>
    %cst_81 = arith.constant dense<0.000000e+00> : vector<16x768xf32>
    %197 = tpu.matmul %194, %196, %cst_81 {dimension_numbers = #tpu.dot_dimension_numbers<[1], [0], [0], [1], [0, 0, 1, 1], [], []>} : vector<16x128xbf16>, vector<128x768xbf16>, vector<16x768xf32> -> vector<16x768xf32>
    %198 = vector.extract_strided_slice %197 {offsets = [0, 0], sizes = [16, 384], strides = [1, 1]} : vector<16x768xf32> to vector<16x384xf32>
    %199 = vector.extract_strided_slice %197 {offsets = [0, 384], sizes = [16, 384], strides = [1, 1]} : vector<16x768xf32> to vector<16x384xf32>
    %cst_82 = arith.constant 5.000000e-01 : f32
    %200 = vector.broadcast %cst_82 : f32 to vector<16x384xf32>
    %201 = arith.mulf %200, %198 : vector<16x384xf32>
    %cst_83 = arith.constant 5.000000e-01 : f32
    %202 = vector.broadcast %cst_83 : f32 to vector<16x384xf32>
    %203 = arith.mulf %202, %198 : vector<16x384xf32>
    %204 = math.tanh %203 : vector<16x384xf32>
    %cst_84 = arith.constant 1.000000e+00 : f32
    %205 = vector.broadcast %cst_84 : f32 to vector<16x384xf32>
    %206 = arith.addf %205, %204 : vector<16x384xf32>
    %207 = arith.mulf %201, %206 : vector<16x384xf32>
    %208 = arith.mulf %207, %199 : vector<16x384xf32>
    %209 = arith.truncf %208 : vector<16x384xf32> to vector<16x384xbf16>
    %c1_85 = arith.constant 1 : index
    %c0_86 = arith.constant 0 : index
    %c0_87 = arith.constant 0 : index
    %210 = vector.load %arg10[%c1_85, %c0_86, %c0_87] : memref<2x384x128xbf16, #tpu.memory_space<vmem>>, vector<1x384x128xbf16>
    %211 = vector.shape_cast %210 : vector<1x384x128xbf16> to vector<384x128xbf16>
    %cst_88 = arith.constant dense<0.000000e+00> : vector<16x128xf32>
    %212 = tpu.matmul %209, %211, %cst_88 {dimension_numbers = #tpu.dot_dimension_numbers<[1], [0], [0], [1], [0, 0, 1, 1], [], []>} : vector<16x384xbf16>, vector<384x128xbf16>, vector<16x128xf32> -> vector<16x128xf32>
    %213 = arith.addf %179, %212 : vector<16x128xf32>
    %c0_89 = arith.constant 0 : index
    %c0_90 = arith.constant 0 : index
    %214 = vector.load %arg11[%c0_89, %c0_90] : memref<1x128xf32, #tpu.memory_space<vmem>>, vector<1x128xf32>
    %215 = arith.mulf %213, %213 : vector<16x128xf32>
    %cst_91 = arith.constant dense<0.000000e+00> : vector<16xf32>
    %216 = vector.multi_reduction <add>, %215, %cst_91 [1] : vector<16x128xf32> to vector<16xf32>
    %217 = vector.shape_cast %216 : vector<16xf32> to vector<16x1xf32>
    %cst_92 = arith.constant 1.280000e+02 : f32
    %218 = vector.broadcast %cst_92 : f32 to vector<16x1xf32>
    %219 = arith.divf %217, %218 : vector<16x1xf32>
    %cst_93 = arith.constant 9.99999974E-6 : f32
    %220 = vector.broadcast %cst_93 : f32 to vector<16x1xf32>
    %221 = arith.addf %219, %220 : vector<16x1xf32>
    %222 = math.rsqrt %221 : vector<16x1xf32>
    %223 = vector.broadcast %222 : vector<16x1xf32> to vector<16x128xf32>
    %224 = arith.mulf %213, %223 : vector<16x128xf32>
    %225 = vector.broadcast %214 : vector<1x128xf32> to vector<16x128xf32>
    %226 = arith.mulf %224, %225 : vector<16x128xf32>
    %227 = arith.truncf %226 : vector<16x128xf32> to vector<16x128xbf16>
    %c0_94 = arith.constant 0 : index
    %c0_95 = arith.constant 0 : index
    %228 = vector.load %arg12[%c0_94, %c0_95] : memref<128x256xbf16, #tpu.memory_space<vmem>>, vector<128x256xbf16>
    %cst_96 = arith.constant dense<0.000000e+00> : vector<16x256xf32>
    %229 = tpu.matmul %227, %228, %cst_96 {dimension_numbers = #tpu.dot_dimension_numbers<[1], [0], [0], [1], [0, 0, 1, 1], [], []>} : vector<16x128xbf16>, vector<128x256xbf16>, vector<16x256xf32> -> vector<16x256xf32>
    %c0_97 = arith.constant 0 : index
    %c0_98 = arith.constant 0 : index
    %230 = vector.load %arg13[%c0_97, %c0_98] : memref<16x256xf32, #tpu.memory_space<vmem>>, vector<16x256xf32>
    tpu.vector_store %arg13[%c0_97, %c0_98], %229 {strides = array<i32>} : memref<16x256xf32, #tpu.memory_space<vmem>>, vector<16x256xf32>,
    return
  }
  func.func @transform_0(%arg0: i32) -> (i32, i32) {
    %c0_i32 = arith.constant 0 : i32
    %c0_i32_0 = arith.constant 0 : i32
    %c0_i32_1 = arith.constant 0 : i32
    return %c0_i32, %c0_i32_0 : i32, i32
  }
  func.func @transform_1(%arg0: i32) -> (i32, i32) {
    %c0_i32 = arith.constant 0 : i32
    %c0_i32_0 = arith.constant 0 : i32
    %c0_i32_1 = arith.constant 0 : i32
    return %c0_i32, %c0_i32_0 : i32, i32
  }
  func.func @transform_2(%arg0: i32) -> (i32, i32) {
    %c0_i32 = arith.constant 0 : i32
    %c0_i32_0 = arith.constant 0 : i32
    %c0_i32_1 = arith.constant 0 : i32
    return %c0_i32, %c0_i32_0 : i32, i32
  }
  func.func @transform_3(%arg0: i32) -> (i32, i32) {
    %c0_i32 = arith.constant 0 : i32
    %c0_i32_0 = arith.constant 0 : i32
    %c0_i32_1 = arith.constant 0 : i32
    return %c0_i32, %c0_i32_0 : i32, i32
  }
  func.func @transform_4(%arg0: i32) -> (i32, i32, i32) {
    %c0_i32 = arith.constant 0 : i32
    %c0_i32_0 = arith.constant 0 : i32
    %c0_i32_1 = arith.constant 0 : i32
    %c0_i32_2 = arith.constant 0 : i32
    return %c0_i32, %c0_i32_0, %c0_i32_1 : i32, i32, i32
  }
  func.func @transform_5(%arg0: i32) -> (i32, i32, i32) {
    %c0_i32 = arith.constant 0 : i32
    %c0_i32_0 = arith.constant 0 : i32
    %c0_i32_1 = arith.constant 0 : i32
    %c0_i32_2 = arith.constant 0 : i32
    return %c0_i32, %c0_i32_0, %c0_i32_1 : i32, i32, i32
  }
  func.func @transform_6(%arg0: i32) -> (i32, i32, i32) {
    %c0_i32 = arith.constant 0 : i32
    %c0_i32_0 = arith.constant 0 : i32
    %c0_i32_1 = arith.constant 0 : i32
    %c0_i32_2 = arith.constant 0 : i32
    return %c0_i32, %c0_i32_0, %c0_i32_1 : i32, i32, i32
  }
  func.func @transform_7(%arg0: i32) -> (i32, i32, i32) {
    %c0_i32 = arith.constant 0 : i32
    %c0_i32_0 = arith.constant 0 : i32
    %c0_i32_1 = arith.constant 0 : i32
    %c0_i32_2 = arith.constant 0 : i32
    return %c0_i32, %c0_i32_0, %c0_i32_1 : i32, i32, i32
  }
  func.func @transform_8(%arg0: i32) -> (i32, i32, i32) {
    %c0_i32 = arith.constant 0 : i32
    %c0_i32_0 = arith.constant 0 : i32
    %c0_i32_1 = arith.constant 0 : i32
    %c0_i32_2 = arith.constant 0 : i32
    return %c0_i32, %c0_i32_0, %c0_i32_1 : i32, i32, i32
  }
  func.func @transform_9(%arg0: i32) -> (i32, i32, i32) {
    %c0_i32 = arith.constant 0 : i32
    %c0_i32_0 = arith.constant 0 : i32
    %c0_i32_1 = arith.constant 0 : i32
    %c0_i32_2 = arith.constant 0 : i32
    return %c0_i32, %c0_i32_0, %c0_i32_1 : i32, i32, i32
  }
  func.func @transform_10(%arg0: i32) -> (i32, i32) {
    %c0_i32 = arith.constant 0 : i32
    %c0_i32_0 = arith.constant 0 : i32
    %c0_i32_1 = arith.constant 0 : i32
    return %c0_i32, %c0_i32_0 : i32, i32
  }
  func.func @transform_11(%arg0: i32) -> (i32, i32) {
    %c0_i32 = arith.constant 0 : i32
    %c0_i32_0 = arith.constant 0 : i32
    %c0_i32_1 = arith.constant 0 : i32
    return %c0_i32, %c0_i32_0 : i32, i32
  }
  func.func @transform_12(%arg0: i32) -> (i32, i32) {
    %c0_i32 = arith.constant 0 : i32
    %c0_i32_0 = arith.constant 0 : i32
    %c0_i32_1 = arith.constant 0 : i32
    return %c0_i32, %c0_i32_0 : i32, i32
  }
}

</mosaic_0001>

<llo_original>
// kernel: transformer_forward.1
$region0: #{transformer_forward.1}
  #allocation0 [shape = 'u32[]', space=smem, size = 0x4, offset = 0x4, fixed_abs, tag = 'smem constant byte address 0x4 - core index']
  #allocation1 [shape = 'u32[72,128]{1,0:T(1,128)}', space=vmem, size = 0x9000, scoped, tag = 'internal scratch']
  %s0 = inlined_call_operand.vmem [shape: f32[16,128], index: 0, kind: input, shape index: {}]
  %s1 = inlined_call_operand.vmem [shape: f32[16,256], index: 1, kind: input, shape index: {}]
  %s2 = inlined_call_operand.vmem [shape: f32[16,256], index: 2, kind: input, shape index: {}]
  %s3 = inlined_call_operand.vmem [shape: f32[16,16], index: 3, kind: input, shape index: {}]
  %s4 = inlined_call_operand.vmem [shape: f32[2,1,128], index: 4, kind: input, shape index: {}]
  %s5 = inlined_call_operand.vmem [shape: bf16[2,128,1280], index: 5, kind: input, shape index: {}]
  %s6 = inlined_call_operand.vmem [shape: bf16[4,128,128], index: 6, kind: input, shape index: {}]
  %s7 = inlined_call_operand.vmem [shape: f32[2,1,128], index: 7, kind: input, shape index: {}]
  %s8 = inlined_call_operand.vmem [shape: bf16[2,128,768], index: 8, kind: input, shape index: {}]
  %s9 = inlined_call_operand.vmem [shape: bf16[2,384,128], index: 9, kind: input, shape index: {}]
  %s10 = inlined_call_operand.vmem [shape: f32[1,128], index: 10, kind: input, shape index: {}]
  %s11 = inlined_call_operand.vmem [shape: bf16[128,256], index: 11, kind: input, shape index: {}]
  %s12 = inlined_call_operand.hbm [shape: f32[16,256], index: 12, kind: output, shape index: {}]
  %s13 = sld [smem:[#allocation0]]
  $region58: #{transformer_forward.1} parent=0
    _
  %s15 = ssub.s32 1, %s13
  %s16 = scalar_select 0, %s15, %s13
  $region1: #{transformer_forward.1} parent=0
    #allocation2 [shape = 'u8[16384]{0}', space=vmem, size = 0x4000, scoped, tag = 'output window, operand 0, single buffered']
    #allocation3 [shape = 's32[1]{0}', space=sflag, size = 0x4, scoped, tag = 'scoped memory for transformer_forward.1']
    %17 = vsyncpa [#allocation3], 0
    // Predicated region
    $region2: #{transformer_forward.1} parent=1 // pred_check
      _
    $region3: #{transformer_forward.1} parent=1 // pred_check_branch
      %19 = sbr.rel (0) target = $region5
    $region4: #{transformer_forward.1} parent=1 // pred_region
      _
    $region5: #{transformer_forward.1} parent=1 // pred_fallthru
      _
    // Predicated region
    $region6: #{transformer_forward.1} parent=1 // pred_check
      _
    $region7: #{transformer_forward.1} parent=1 // pred_check_branch
      %21 = sbr.rel (0) target = $region9
    $region8: #{transformer_forward.1} parent=1 // pred_region
      _
    $region9: #{transformer_forward.1} parent=1 // pred_fallthru
      _
    // Predicated region
    $region10: #{transformer_forward.1} parent=1 // pred_check
      _
    $region11: #{transformer_forward.1} parent=1 // pred_check_branch
      %23 = sbr.rel (0) target = $region13
    $region12: #{transformer_forward.1} parent=1 // pred_region
      _
    $region13: #{transformer_forward.1} parent=1 // pred_fallthru
      _
    // Predicated region
    $region14: #{transformer_forward.1} parent=1 // pred_check
      _
    $region15: #{transformer_forward.1} parent=1 // pred_check_branch
      %25 = sbr.rel (0) target = $region17
    $region16: #{transformer_forward.1} parent=1 // pred_region
      _
    $region17: #{transformer_forward.1} parent=1 // pred_fallthru
      _
    // Predicated region
    $region18: #{transformer_forward.1} parent=1 // pred_check
      _
    $region19: #{transformer_forward.1} parent=1 // pred_check_branch
      %27 = sbr.rel (0) target = $region21
    $region20: #{transformer_forward.1} parent=1 // pred_region
      _
    $region21: #{transformer_forward.1} parent=1 // pred_fallthru
      _
    // Predicated region
    $region22: #{transformer_forward.1} parent=1 // pred_check
      _
    $region23: #{transformer_forward.1} parent=1 // pred_check_branch
      %29 = sbr.rel (0) target = $region25
    $region24: #{transformer_forward.1} parent=1 // pred_region
      _
    $region25: #{transformer_forward.1} parent=1 // pred_fallthru
      _
    // Predicated region
    $region26: #{transformer_forward.1} parent=1 // pred_check
      _
    $region27: #{transformer_forward.1} parent=1 // pred_check_branch
      %31 = sbr.rel (0) target = $region29
    $region28: #{transformer_forward.1} parent=1 // pred_region
      _
    $region29: #{transformer_forward.1} parent=1 // pred_fallthru
      _
    // Predicated region
    $region30: #{transformer_forward.1} parent=1 // pred_check
      _
    $region31: #{transformer_forward.1} parent=1 // pred_check_branch
      %33 = sbr.rel (0) target = $region33
    $region32: #{transformer_forward.1} parent=1 // pred_region
      _
    $region33: #{transformer_forward.1} parent=1 // pred_fallthru
      _
    // Predicated region
    $region34: #{transformer_forward.1} parent=1 // pred_check
      _
    $region35: #{transformer_forward.1} parent=1 // pred_check_branch
      %35 = sbr.rel (0) target = $region37
    $region36: #{transformer_forward.1} parent=1 // pred_region
      _
    $region37: #{transformer_forward.1} parent=1 // pred_fallthru
      _
    // Predicated region
    $region38: #{transformer_forward.1} parent=1 // pred_check
      _
    $region39: #{transformer_forward.1} parent=1 // pred_check_branch
      %37 = sbr.rel (0) target = $region41
    $region40: #{transformer_forward.1} parent=1 // pred_region
      _
    $region41: #{transformer_forward.1} parent=1 // pred_fallthru
      _
    // Predicated region
    $region42: #{transformer_forward.1} parent=1 // pred_check
      _
    $region43: #{transformer_forward.1} parent=1 // pred_check_branch
      %39 = sbr.rel (0) target = $region45
    $region44: #{transformer_forward.1} parent=1 // pred_region
      _
    $region45: #{transformer_forward.1} parent=1 // pred_fallthru
      _
    // Predicated region
    $region46: #{transformer_forward.1} parent=1 // pred_check
      _
    $region47: #{transformer_forward.1} parent=1 // pred_check_branch
      %41 = sbr.rel (0) target = $region49
    $region48: #{transformer_forward.1} parent=1 // pred_region
      _
    $region49: #{transformer_forward.1} parent=1 // pred_fallthru
      _
    %v42 = vld [vmem:[%s0] sm:$0xff]
    %v43 = vld [vmem:[%s0 + $0x8] sm:$0xff]
    %v44 = vld [vmem:[%s1] sm:$0xff]
    %v45 = vld [vmem:[%s1 + $0x8] sm:$0xff]
    %v46 = vld [vmem:[%s1 + $0x10] sm:$0xff]
    %v47 = vld [vmem:[%s1 + $0x18] sm:$0xff]
    %v48 = vld [vmem:[%s2] sm:$0xff]
    %v49 = vld [vmem:[%s2 + $0x8] sm:$0xff]
    %v50 = vld [vmem:[%s2 + $0x10] sm:$0xff]
    %v51 = vld [vmem:[%s2 + $0x18] sm:$0xff]
    %v52 = vld [vmem:[%s3] sm:$0xff]
    %v53 = vld [vmem:[%s3 + $0x8] sm:$0xff]
    %v54 = vld [vmem:[%s4] sm:$0x1]
    %v55 = vmul.f32 %v42, %v42
    %v56 = vmul.f32 %v43, %v43
    %57 = vadd.xlane.f32.xlu0 %v55
    %v58 = vpop.xlane.xlu0 %57
    %59 = vadd.xlane.f32.xlu0 %v56
    %v60 = vpop.xlane.xlu0 %59
    %v61 = vrcp.pop 128.0
    %v62 = vmul.f32 128.0, %v61
    %v63 = vsub.f32 1.0, %v62
    %v64 = vmul.f32 %v61, %v63
    %v65 = vadd.f32 %v61, %v64
    %vm66 = vweird.f32 %v61
    %v67 = vsel %vm66, %v61, %v65
    %v68 = vmul.f32 %v58, %v67
    %v69 = vmul.f32 %v60, %v67
    %v70 = vadd.f32 %v68, 1e-05
    %v71 = vadd.f32 %v69, 1e-05
    %v72 = vrsqrt.pop %v70
    %v73 = vmul.f32 %v72, %v70
    %v74 = vmul.f32 %v73, %v72
    %v75 = vmul.f32 0.5, %v74
    %v76 = vsub.f32 1.5, %v75
    %v77 = vmul.f32 %v72, %v76
    %vm78 = vweird.f32 %v70
    %vm79 = vweird.f32 %v72
    %vm80 = vmor %vm78, %vm79
    %v81 = vsel %vm80, %v72, %v77
    %v82 = vrsqrt.pop %v71
    %v83 = vmul.f32 %v82, %v71
    %v84 = vmul.f32 %v83, %v82
    %v85 = vmul.f32 0.5, %v84
    %v86 = vsub.f32 1.5, %v85
    %v87 = vmul.f32 %v82, %v86
    %vm88 = vweird.f32 %v71
    %vm89 = vweird.f32 %v82
    %vm90 = vmor %vm88, %vm89
    %v91 = vsel %vm90, %v82, %v87
    %v92 = vmul.f32 %v42, %v81
    %v93 = vmul.f32 %v43, %v91
    %v95 = vperm.slane %v54, 0
    %v97 = vmul.f32 %v92, %v95
    %v98 = vmul.f32 %v93, %v95
    %v99 = vpack.c.bf16 %v98, %v97
    %v100 = vld [vmem:[%s5] sm:$0xff]
    %v101 = vld [vmem:[%s5 + $0x8] sm:$0xff]
    %v102 = vld [vmem:[%s5 + $0x10] sm:$0xff]
    %v103 = vld [vmem:[%s5 + $0x18] sm:$0xff]
    %v104 = vld [vmem:[%s5 + $0x20] sm:$0xff]
    %v105 = vld [vmem:[%s5 + $0x28] sm:$0xff]
    %v106 = vld [vmem:[%s5 + $0x30] sm:$0xff]
    %v107 = vld [vmem:[%s5 + $0x38] sm:$0xff]
    %v108 = vld [vmem:[%s5 + $0x40] sm:$0xff]
    %v109 = vld [vmem:[%s5 + $0x48] sm:$0xff]
    %v110 = vld [vmem:[%s5 + $0x50] sm:$0xff]
    %v111 = vld [vmem:[%s5 + $0x58] sm:$0xff]
    %v112 = vld [vmem:[%s5 + $0x60] sm:$0xff]
    %v113 = vld [vmem:[%s5 + $0x68] sm:$0xff]
    %v114 = vld [vmem:[%s5 + $0x70] sm:$0xff]
    %v115 = vld [vmem:[%s5 + $0x78] sm:$0xff]
    %v116 = vld [vmem:[%s5 + $0x80] sm:$0xff]
    %v117 = vld [vmem:[%s5 + $0x88] sm:$0xff]
    %v118 = vld [vmem:[%s5 + $0x90] sm:$0xff]
    %v119 = vld [vmem:[%s5 + $0x98] sm:$0xff]
    %v120 = vld [vmem:[%s5 + $0xa0] sm:$0xff]
    %v121 = vld [vmem:[%s5 + $0xa8] sm:$0xff]
    %v122 = vld [vmem:[%s5 + $0xb0] sm:$0xff]
    %v123 = vld [vmem:[%s5 + $0xb8] sm:$0xff]
    %v124 = vld [vmem:[%s5 + $0xc0] sm:$0xff]
    %v125 = vld [vmem:[%s5 + $0xc8] sm:$0xff]
    %v126 = vld [vmem:[%s5 + $0xd0] sm:$0xff]
    %v127 = vld [vmem:[%s5 + $0xd8] sm:$0xff]
    %v128 = vld [vmem:[%s5 + $0xe0] sm:$0xff]
    %v129 = vld [vmem:[%s5 + $0xe8] sm:$0xff]
    %v130 = vld [vmem:[%s5 + $0xf0] sm:$0xff]
    %v131 = vld [vmem:[%s5 + $0xf8] sm:$0xff]
    %v132 = vld [vmem:[%s5 + $0x100] sm:$0xff]
    %v133 = vld [vmem:[%s5 + $0x108] sm:$0xff]
    %v134 = vld [vmem:[%s5 + $0x110] sm:$0xff]
    %v135 = vld [vmem:[%s5 + $0x118] sm:$0xff]
    %v136 = vld [vmem:[%s5 + $0x120] sm:$0xff]
    %v137 = vld [vmem:[%s5 + $0x128] sm:$0xff]
    %v138 = vld [vmem:[%s5 + $0x130] sm:$0xff]
    %v139 = vld [vmem:[%s5 + $0x138] sm:$0xff]
    %v140 = vld [vmem:[%s5 + $0x140] sm:$0xff]
    %v141 = vld [vmem:[%s5 + $0x148] sm:$0xff]
    %v142 = vld [vmem:[%s5 + $0x150] sm:$0xff]
    %v143 = vld [vmem:[%s5 + $0x158] sm:$0xff]
    %v144 = vld [vmem:[%s5 + $0x160] sm:$0xff]
    %v145 = vld [vmem:[%s5 + $0x168] sm:$0xff]
    %v146 = vld [vmem:[%s5 + $0x170] sm:$0xff]
    %v147 = vld [vmem:[%s5 + $0x178] sm:$0xff]
    %v148 = vld [vmem:[%s5 + $0x180] sm:$0xff]
    %v149 = vld [vmem:[%s5 + $0x188] sm:$0xff]
    %v150 = vld [vmem:[%s5 + $0x190] sm:$0xff]
    %v151 = vld [vmem:[%s5 + $0x198] sm:$0xff]
    %v152 = vld [vmem:[%s5 + $0x1a0] sm:$0xff]
    %v153 = vld [vmem:[%s5 + $0x1a8] sm:$0xff]
    %v154 = vld [vmem:[%s5 + $0x1b0] sm:$0xff]
    %v155 = vld [vmem:[%s5 + $0x1b8] sm:$0xff]
    %v156 = vld [vmem:[%s5 + $0x1c0] sm:$0xff]
    %v157 = vld [vmem:[%s5 + $0x1c8] sm:$0xff]
    %v158 = vld [vmem:[%s5 + $0x1d0] sm:$0xff]
    %v159 = vld [vmem:[%s5 + $0x1d8] sm:$0xff]
    %v160 = vld [vmem:[%s5 + $0x1e0] sm:$0xff]
    %v161 = vld [vmem:[%s5 + $0x1e8] sm:$0xff]
    %v162 = vld [vmem:[%s5 + $0x1f0] sm:$0xff]
    %v163 = vld [vmem:[%s5 + $0x1f8] sm:$0xff]
    %v164 = vld [vmem:[%s5 + $0x200] sm:$0xff]
    %v165 = vld [vmem:[%s5 + $0x208] sm:$0xff]
    %v166 = vld [vmem:[%s5 + $0x210] sm:$0xff]
    %v167 = vld [vmem:[%s5 + $0x218] sm:$0xff]
    %v168 = vld [vmem:[%s5 + $0x220] sm:$0xff]
    %v169 = vld [vmem:[%s5 + $0x228] sm:$0xff]
    %v170 = vld [vmem:[%s5 + $0x230] sm:$0xff]
    %v171 = vld [vmem:[%s5 + $0x238] sm:$0xff]
    %v172 = vld [vmem:[%s5 + $0x240] sm:$0xff]
    %v173 = vld [vmem:[%s5 + $0x248] sm:$0xff]
    %v174 = vld [vmem:[%s5 + $0x250] sm:$0xff]
    %v175 = vld [vmem:[%s5 + $0x258] sm:$0xff]
    %v176 = vld [vmem:[%s5 + $0x260] sm:$0xff]
    %v177 = vld [vmem:[%s5 + $0x268] sm:$0xff]
    %v178 = vld [vmem:[%s5 + $0x270] sm:$0xff]
    %v179 = vld [vmem:[%s5 + $0x278] sm:$0xff]
    %v260 = vunpack.c.l.b16 %v100
    %v261 = vunpack.c.h.b16 %v100
    %v262 = vunpack.c.l.b16 %v101
    %v263 = vunpack.c.h.b16 %v101
    %v264 = vunpack.c.l.b16 %v102
    %v265 = vunpack.c.h.b16 %v102
    %v266 = vunpack.c.l.b16 %v103
    %v267 = vunpack.c.h.b16 %v103
    %v268 = vunpack.c.l.b16 %v104
    %v269 = vunpack.c.h.b16 %v104
    %v270 = vunpack.c.l.b16 %v105
    %v271 = vunpack.c.h.b16 %v105
    %v272 = vunpack.c.l.b16 %v106
    %v273 = vunpack.c.h.b16 %v106
    %v274 = vunpack.c.l.b16 %v107
    %v275 = vunpack.c.h.b16 %v107
    %v276 = vunpack.c.l.b16 %v108
    %v277 = vunpack.c.h.b16 %v108
    %v278 = vunpack.c.l.b16 %v109
    %v279 = vunpack.c.h.b16 %v109
    %v280 = vunpack.c.l.b16 %v110
    %v281 = vunpack.c.h.b16 %v110
    %v282 = vunpack.c.l.b16 %v111
    %v283 = vunpack.c.h.b16 %v111
    %v284 = vunpack.c.l.b16 %v112
    %v285 = vunpack.c.h.b16 %v112
    %v286 = vunpack.c.l.b16 %v113
    %v287 = vunpack.c.h.b16 %v113
    %v288 = vunpack.c.l.b16 %v114
    %v289 = vunpack.c.h.b16 %v114
    %v290 = vunpack.c.l.b16 %v115
    %v291 = vunpack.c.h.b16 %v115
    %v292 = vunpack.c.l.b16 %v116
    %v293 = vunpack.c.h.b16 %v116
    %v294 = vunpack.c.l.b16 %v117
    %v295 = vunpack.c.h.b16 %v117
    %v296 = vunpack.c.l.b16 %v118
    %v297 = vunpack.c.h.b16 %v118
    %v298 = vunpack.c.l.b16 %v119
    %v299 = vunpack.c.h.b16 %v119
    %v300 = vunpack.c.l.b16 %v120
    %v301 = vunpack.c.h.b16 %v120
    %v302 = vunpack.c.l.b16 %v121
    %v303 = vunpack.c.h.b16 %v121
    %v304 = vunpack.c.l.b16 %v122
    %v305 = vunpack.c.h.b16 %v122
    %v306 = vunpack.c.l.b16 %v123
    %v307 = vunpack.c.h.b16 %v123
    %v308 = vunpack.c.l.b16 %v124
    %v309 = vunpack.c.h.b16 %v124
    %v310 = vunpack.c.l.b16 %v125
    %v311 = vunpack.c.h.b16 %v125
    %v312 = vunpack.c.l.b16 %v126
    %v313 = vunpack.c.h.b16 %v126
    %v314 = vunpack.c.l.b16 %v127
    %v315 = vunpack.c.h.b16 %v127
    %v316 = vunpack.c.l.b16 %v128
    %v317 = vunpack.c.h.b16 %v128
    %v318 = vunpack.c.l.b16 %v129
    %v319 = vunpack.c.h.b16 %v129
    %v320 = vunpack.c.l.b16 %v130
    %v321 = vunpack.c.h.b16 %v130
    %v322 = vunpack.c.l.b16 %v131
    %v323 = vunpack.c.h.b16 %v131
    %v324 = vunpack.c.l.b16 %v132
    %v325 = vunpack.c.h.b16 %v132
    %v326 = vunpack.c.l.b16 %v133
    %v327 = vunpack.c.h.b16 %v133
    %v328 = vunpack.c.l.b16 %v134
    %v329 = vunpack.c.h.b16 %v134
    %v330 = vunpack.c.l.b16 %v135
    %v331 = vunpack.c.h.b16 %v135
    %v332 = vunpack.c.l.b16 %v136
    %v333 = vunpack.c.h.b16 %v136
    %v334 = vunpack.c.l.b16 %v137
    %v335 = vunpack.c.h.b16 %v137
    %v336 = vunpack.c.l.b16 %v138
    %v337 = vunpack.c.h.b16 %v138
    %v338 = vunpack.c.l.b16 %v139
    %v339 = vunpack.c.h.b16 %v139
    %v340 = vunpack.c.l.b16 %v140
    %v341 = vunpack.c.h.b16 %v140
    %v342 = vunpack.c.l.b16 %v141
    %v343 = vunpack.c.h.b16 %v141
    %v344 = vunpack.c.l.b16 %v142
    %v345 = vunpack.c.h.b16 %v142
    %v346 = vunpack.c.l.b16 %v143
    %v347 = vunpack.c.h.b16 %v143
    %v348 = vunpack.c.l.b16 %v144
    %v349 = vunpack.c.h.b16 %v144
    %v350 = vunpack.c.l.b16 %v145
    %v351 = vunpack.c.h.b16 %v145
    %v352 = vunpack.c.l.b16 %v146
    %v353 = vunpack.c.h.b16 %v146
    %v354 = vunpack.c.l.b16 %v147
    %v355 = vunpack.c.h.b16 %v147
    %v356 = vunpack.c.l.b16 %v148
    %v357 = vunpack.c.h.b16 %v148
    %v358 = vunpack.c.l.b16 %v149
    %v359 = vunpack.c.h.b16 %v149
    %v360 = vunpack.c.l.b16 %v150
    %v361 = vunpack.c.h.b16 %v150
    %v362 = vunpack.c.l.b16 %v151
    %v363 = vunpack.c.h.b16 %v151
    %v364 = vunpack.c.l.b16 %v152
    %v365 = vunpack.c.h.b16 %v152
    %v366 = vunpack.c.l.b16 %v153
    %v367 = vunpack.c.h.b16 %v153
    %v368 = vunpack.c.l.b16 %v154
    %v369 = vunpack.c.h.b16 %v154
    %v370 = vunpack.c.l.b16 %v155
    %v371 = vunpack.c.h.b16 %v155
    %v372 = vunpack.c.l.b16 %v156
    %v373 = vunpack.c.h.b16 %v156
    %v374 = vunpack.c.l.b16 %v157
    %v375 = vunpack.c.h.b16 %v157
    %v376 = vunpack.c.l.b16 %v158
    %v377 = vunpack.c.h.b16 %v158
    %v378 = vunpack.c.l.b16 %v159
    %v379 = vunpack.c.h.b16 %v159
    %v380 = vunpack.c.l.b16 %v160
    %v381 = vunpack.c.h.b16 %v160
    %v382 = vunpack.c.l.b16 %v161
    %v383 = vunpack.c.h.b16 %v161
    %v384 = vunpack.c.l.b16 %v162
    %v385 = vunpack.c.h.b16 %v162
    %v386 = vunpack.c.l.b16 %v163
    %v387 = vunpack.c.h.b16 %v163
    %v388 = vunpack.c.l.b16 %v164
    %v389 = vunpack.c.h.b16 %v164
    %v390 = vunpack.c.l.b16 %v165
    %v391 = vunpack.c.h.b16 %v165
    %v392 = vunpack.c.l.b16 %v166
    %v393 = vunpack.c.h.b16 %v166
    %v394 = vunpack.c.l.b16 %v167
    %v395 = vunpack.c.h.b16 %v167
    %v396 = vunpack.c.l.b16 %v168
    %v397 = vunpack.c.h.b16 %v168
    %v398 = vunpack.c.l.b16 %v169
    %v399 = vunpack.c.h.b16 %v169
    %v400 = vunpack.c.l.b16 %v170
    %v401 = vunpack.c.h.b16 %v170
    %v402 = vunpack.c.l.b16 %v171
    %v403 = vunpack.c.h.b16 %v171
    %v404 = vunpack.c.l.b16 %v172
    %v405 = vunpack.c.h.b16 %v172
    %v406 = vunpack.c.l.b16 %v173
    %v407 = vunpack.c.h.b16 %v173
    %v408 = vunpack.c.l.b16 %v174
    %v409 = vunpack.c.h.b16 %v174
    %v410 = vunpack.c.l.b16 %v175
    %v411 = vunpack.c.h.b16 %v175
    %v412 = vunpack.c.l.b16 %v176
    %v413 = vunpack.c.h.b16 %v176
    %v414 = vunpack.c.l.b16 %v177
    %v415 = vunpack.c.h.b16 %v177
    %v416 = vunpack.c.l.b16 %v178
    %v417 = vunpack.c.h.b16 %v178
    %v418 = vunpack.c.l.b16 %v179
    %v419 = vunpack.c.h.b16 %v179
    %v420 = vpack.c.b16 %v270, %v260
    %v421 = vpack.c.b16 %v271, %v261
    %v422 = vpack.c.b16 %v272, %v262
    %v423 = vpack.c.b16 %v273, %v263
    %v424 = vpack.c.b16 %v274, %v264
    %v425 = vpack.c.b16 %v275, %v265
    %v426 = vpack.c.b16 %v276, %v266
    %v427 = vpack.c.b16 %v277, %v267
    %v428 = vpack.c.b16 %v278, %v268
    %v429 = vpack.c.b16 %v279, %v269
    %v430 = vpack.c.b16 %v290, %v280
    %v431 = vpack.c.b16 %v291, %v281
    %v432 = vpack.c.b16 %v292, %v282
    %v433 = vpack.c.b16 %v293, %v283
    %v434 = vpack.c.b16 %v294, %v284
    %v435 = vpack.c.b16 %v295, %v285
    %v436 = vpack.c.b16 %v296, %v286
    %v437 = vpack.c.b16 %v297, %v287
    %v438 = vpack.c.b16 %v298, %v288
    %v439 = vpack.c.b16 %v299, %v289
    %v440 = vpack.c.b16 %v310, %v300
    %v441 = vpack.c.b16 %v311, %v301
    %v442 = vpack.c.b16 %v312, %v302
    %v443 = vpack.c.b16 %v313, %v303
    %v444 = vpack.c.b16 %v314, %v304
    %v445 = vpack.c.b16 %v315, %v305
    %v446 = vpack.c.b16 %v316, %v306
    %v447 = vpack.c.b16 %v317, %v307
    %v448 = vpack.c.b16 %v318, %v308
    %v449 = vpack.c.b16 %v319, %v309
    %v450 = vpack.c.b16 %v330, %v320
    %v451 = vpack.c.b16 %v331, %v321
    %v452 = vpack.c.b16 %v332, %v322
    %v453 = vpack.c.b16 %v333, %v323
    %v454 = vpack.c.b16 %v334, %v324
    %v455 = vpack.c.b16 %v335, %v325
    %v456 = vpack.c.b16 %v336, %v326
    %v457 = vpack.c.b16 %v337, %v327
    %v458 = vpack.c.b16 %v338, %v328
    %v459 = vpack.c.b16 %v339, %v329
    %v460 = vpack.c.b16 %v350, %v340
    %v461 = vpack.c.b16 %v351, %v341
    %v462 = vpack.c.b16 %v352, %v342
    %v463 = vpack.c.b16 %v353, %v343
    %v464 = vpack.c.b16 %v354, %v344
    %v465 = vpack.c.b16 %v355, %v345
    %v466 = vpack.c.b16 %v356, %v346
    %v467 = vpack.c.b16 %v357, %v347
    %v468 = vpack.c.b16 %v358, %v348
    %v469 = vpack.c.b16 %v359, %v349
    %v470 = vpack.c.b16 %v370, %v360
    %v471 = vpack.c.b16 %v371, %v361
    %v472 = vpack.c.b16 %v372, %v362
    %v473 = vpack.c.b16 %v373, %v363
    %v474 = vpack.c.b16 %v374, %v364
    %v475 = vpack.c.b16 %v375, %v365
    %v476 = vpack.c.b16 %v376, %v366
    %v477 = vpack.c.b16 %v377, %v367
    %v478 = vpack.c.b16 %v378, %v368
    %v479 = vpack.c.b16 %v379, %v369
    %v480 = vpack.c.b16 %v390, %v380
    %v481 = vpack.c.b16 %v391, %v381
    %v482 = vpack.c.b16 %v392, %v382
    %v483 = vpack.c.b16 %v393, %v383
    %v484 = vpack.c.b16 %v394, %v384
    %v485 = vpack.c.b16 %v395, %v385
    %v486 = vpack.c.b16 %v396, %v386
    %v487 = vpack.c.b16 %v397, %v387
    %v488 = vpack.c.b16 %v398, %v388
    %v489 = vpack.c.b16 %v399, %v389
    %v490 = vpack.c.b16 %v410, %v400
    %v491 = vpack.c.b16 %v411, %v401
    %v492 = vpack.c.b16 %v412, %v402
    %v493 = vpack.c.b16 %v413, %v403
    %v494 = vpack.c.b16 %v414, %v404
    %v495 = vpack.c.b16 %v415, %v405
    %v496 = vpack.c.b16 %v416, %v406
    %v497 = vpack.c.b16 %v417, %v407
    %v498 = vpack.c.b16 %v418, %v408
    %v499 = vpack.c.b16 %v419, %v409
    %580 = vmatpush.bf16.msra.mxu0 %v490
    %581 = vmatpush.bf16.msra.mxu0 %v480
    %582 = vmatpush.bf16.msra.mxu0 %v470
    %583 = vmatpush.bf16.msra.mxu0 %v460
    %584 = vmatpush.bf16.msra.mxu0 %v450
    %585 = vmatpush.bf16.msra.mxu0 %v440
    %586 = vmatpush.bf16.msra.mxu0 %v430
    %587 = vmatpush.bf16.msra.mxu0 %v420
    %588 = vmatmul.bf16.gmra.mxu0 %v99
    %v589 = vpop.f32.mrf.mxu0
    %v590 = vadd.f32 0.0, %v589
    %v591 = vpop.f32.mrf.mxu0
    %v592 = vadd.f32 0.0, %v591
    %593 = vdwg.mxu0
    %594 = vmatpush.bf16.msra.mxu0 %v491
    %595 = vmatpush.bf16.msra.mxu0 %v481
    %596 = vmatpush.bf16.msra.mxu0 %v471
    %597 = vmatpush.bf16.msra.mxu0 %v461
    %598 = vmatpush.bf16.msra.mxu0 %v451
    %599 = vmatpush.bf16.msra.mxu0 %v441
    %600 = vmatpush.bf16.msra.mxu0 %v431
    %601 = vmatpush.bf16.msra.mxu0 %v421
    %602 = vmatmul.bf16.gmra.mxu0 %v99
    %v603 = vpop.f32.mrf.mxu0
    %v604 = vadd.f32 0.0, %v603
    %v605 = vpop.f32.mrf.mxu0
    %v606 = vadd.f32 0.0, %v605
    %607 = vdwg.mxu0
    %608 = vmatpush.bf16.msra.mxu0 %v492
    %609 = vmatpush.bf16.msra.mxu0 %v482
    %610 = vmatpush.bf16.msra.mxu0 %v472
    %611 = vmatpush.bf16.msra.mxu0 %v462
    %612 = vmatpush.bf16.msra.mxu0 %v452
    %613 = vmatpush.bf16.msra.mxu0 %v442
    %614 = vmatpush.bf16.msra.mxu0 %v432
    %615 = vmatpush.bf16.msra.mxu0 %v422
    %616 = vmatmul.bf16.gmra.mxu0 %v99
    %v617 = vpop.f32.mrf.mxu0
    %v618 = vadd.f32 0.0, %v617
    %v619 = vpop.f32.mrf.mxu0
    %v620 = vadd.f32 0.0, %v619
    %621 = vdwg.mxu0
    %622 = vmatpush.bf16.msra.mxu0 %v493
    %623 = vmatpush.bf16.msra.mxu0 %v483
    %624 = vmatpush.bf16.msra.mxu0 %v473
    %625 = vmatpush.bf16.msra.mxu0 %v463
    %626 = vmatpush.bf16.msra.mxu0 %v453
    %627 = vmatpush.bf16.msra.mxu0 %v443
    %628 = vmatpush.bf16.msra.mxu0 %v433
    %629 = vmatpush.bf16.msra.mxu0 %v423
    %630 = vmatmul.bf16.gmra.mxu0 %v99
    %v631 = vpop.f32.mrf.mxu0
    %v632 = vadd.f32 0.0, %v631
    %v633 = vpop.f32.mrf.mxu0
    %v634 = vadd.f32 0.0, %v633
    %635 = vdwg.mxu0
    %636 = vmatpush.bf16.msra.mxu0 %v494
    %637 = vmatpush.bf16.msra.mxu0 %v484
    %638 = vmatpush.bf16.msra.mxu0 %v474
    %639 = vmatpush.bf16.msra.mxu0 %v464
    %640 = vmatpush.bf16.msra.mxu0 %v454
    %641 = vmatpush.bf16.msra.mxu0 %v444
    %642 = vmatpush.bf16.msra.mxu0 %v434
    %643 = vmatpush.bf16.msra.mxu0 %v424
    %644 = vmatmul.bf16.gmra.mxu0 %v99
    %v645 = vpop.f32.mrf.mxu0
    %v646 = vadd.f32 0.0, %v645
    %v647 = vpop.f32.mrf.mxu0
    %v648 = vadd.f32 0.0, %v647
    %649 = vdwg.mxu0
    %650 = vmatpush.bf16.msra.mxu0 %v495
    %651 = vmatpush.bf16.msra.mxu0 %v485
    %652 = vmatpush.bf16.msra.mxu0 %v475
    %653 = vmatpush.bf16.msra.mxu0 %v465
    %654 = vmatpush.bf16.msra.mxu0 %v455
    %655 = vmatpush.bf16.msra.mxu0 %v445
    %656 = vmatpush.bf16.msra.mxu0 %v435
    %657 = vmatpush.bf16.msra.mxu0 %v425
    %658 = vmatmul.bf16.gmra.mxu0 %v99
    %v659 = vpop.f32.mrf.mxu0
    %v660 = vadd.f32 0.0, %v659
    %v661 = vpop.f32.mrf.mxu0
    %v662 = vadd.f32 0.0, %v661
    %663 = vdwg.mxu0
    %664 = vmatpush.bf16.msra.mxu0 %v496
    %665 = vmatpush.bf16.msra.mxu0 %v486
    %666 = vmatpush.bf16.msra.mxu0 %v476
    %667 = vmatpush.bf16.msra.mxu0 %v466
    %668 = vmatpush.bf16.msra.mxu0 %v456
    %669 = vmatpush.bf16.msra.mxu0 %v446
    %670 = vmatpush.bf16.msra.mxu0 %v436
    %671 = vmatpush.bf16.msra.mxu0 %v426
    %672 = vmatmul.bf16.gmra.mxu0 %v99
    %v673 = vpop.f32.mrf.mxu0
    %v674 = vadd.f32 0.0, %v673
    %v675 = vpop.f32.mrf.mxu0
    %v676 = vadd.f32 0.0, %v675
    %677 = vdwg.mxu0
    %678 = vmatpush.bf16.msra.mxu0 %v497
    %679 = vmatpush.bf16.msra.mxu0 %v487
    %680 = vmatpush.bf16.msra.mxu0 %v477
    %681 = vmatpush.bf16.msra.mxu0 %v467
    %682 = vmatpush.bf16.msra.mxu0 %v457
    %683 = vmatpush.bf16.msra.mxu0 %v447
    %684 = vmatpush.bf16.msra.mxu0 %v437
    %685 = vmatpush.bf16.msra.mxu0 %v427
    %686 = vmatmul.bf16.gmra.mxu0 %v99
    %v687 = vpop.f32.mrf.mxu0
    %v688 = vadd.f32 0.0, %v687
    %v689 = vpop.f32.mrf.mxu0
    %v690 = vadd.f32 0.0, %v689
    %691 = vdwg.mxu0
    %692 = vmatpush.bf16.msra.mxu0 %v498
    %693 = vmatpush.bf16.msra.mxu0 %v488
    %694 = vmatpush.bf16.msra.mxu0 %v478
    %695 = vmatpush.bf16.msra.mxu0 %v468
    %696 = vmatpush.bf16.msra.mxu0 %v458
    %697 = vmatpush.bf16.msra.mxu0 %v448
    %698 = vmatpush.bf16.msra.mxu0 %v438
    %699 = vmatpush.bf16.msra.mxu0 %v428
    %700 = vmatmul.bf16.gmra.mxu0 %v99
    %v701 = vpop.f32.mrf.mxu0
    %v702 = vadd.f32 0.0, %v701
    %v703 = vpop.f32.mrf.mxu0
    %v704 = vadd.f32 0.0, %v703
    %705 = vdwg.mxu0
    %706 = vmatpush.bf16.msra.mxu0 %v499
    %707 = vmatpush.bf16.msra.mxu0 %v489
    %708 = vmatpush.bf16.msra.mxu0 %v479
    %709 = vmatpush.bf16.msra.mxu0 %v469
    %710 = vmatpush.bf16.msra.mxu0 %v459
    %711 = vmatpush.bf16.msra.mxu0 %v449
    %712 = vmatpush.bf16.msra.mxu0 %v439
    %713 = vmatpush.bf16.msra.mxu0 %v429
    %714 = vmatmul.bf16.gmra.mxu0 %v99
    %v715 = vpop.f32.mrf.mxu0
    %v716 = vadd.f32 0.0, %v715
    %v717 = vpop.f32.mrf.mxu0
    %v718 = vadd.f32 0.0, %v717
    %719 = vdwg.mxu0
    %v720 = vmul.f32 %v590, %v44
    %v721 = vmul.f32 %v604, %v45
    %v722 = vmul.f32 %v592, %v46
    %v723 = vmul.f32 %v606, %v47
    %v724 = vmul.f32 %v618, %v48
    %v725 = vmul.f32 %v632, %v49
    %v726 = vmul.f32 %v620, %v50
    %v727 = vmul.f32 %v634, %v51
    %v728 = vadd.f32 %v720, %v724
    %v729 = vadd.f32 %v721, %v725
    %v730 = vadd.f32 %v722, %v726
    %v731 = vadd.f32 %v723, %v727
    %v732 = vmul.f32 %v646, %v44
    %v733 = vmul.f32 %v660, %v45
    %v734 = vmul.f32 %v648, %v46
    %v735 = vmul.f32 %v662, %v47
    %v736 = vmul.f32 %v674, %v48
    %v737 = vmul.f32 %v688, %v49
    %v738 = vmul.f32 %v676, %v50
    %v739 = vmul.f32 %v690, %v51
    %v740 = vadd.f32 %v732, %v736
    %v741 = vadd.f32 %v733, %v737
    %v742 = vadd.f32 %v734, %v738
    %v743 = vadd.f32 %v735, %v739
    %744 = vmatpush.xpose.msra.mxu0 0.0
    %745 = vmatpush.xpose.msra.mxu0 0.0
    %746 = vmatpush.xpose.msra.mxu0 0.0
    %747 = vmatpush.xpose.msra.mxu0 0.0
    %748 = vmatpush.xpose.msra.mxu0 0.0
    %749 = vmatpush.xpose.msra.mxu0 0.0
    %750 = vmatpush.xpose.msra.mxu0 0.0
    %751 = vmatpush.xpose.msra.mxu0 0.0
    %752 = vmatpush.xpose.msra.mxu0 0.0
    %753 = vmatpush.xpose.msra.mxu0 0.0
    %754 = vmatpush.xpose.msra.mxu0 0.0
    %755 = vmatpush.xpose.msra.mxu0 0.0
    %756 = vmatpush.xpose.msra.mxu0 0.0
    %757 = vmatpush.xpose.msra.mxu0 0.0
    %758 = vmatpush.xpose.msra.mxu0 %v742
    %759 = vmatpush.xpose.msra.mxu0 %v740
    %760 = vmatmul.f32.gmra.mxu0 %v728
    %v761 = vpop.f32.mrf.mxu0
    %v762 = vadd.f32 %v52, %v761
    %763 = vmatmul.f32.gmra.mxu0 %v730
    %v764 = vpop.f32.mrf.mxu0
    %v765 = vadd.f32 %v53, %v764
    %766 = vdwg.mxu0
    %vm767 = vcmask 130048
    %v768 = vsel %vm767, %v762, -inf
    %769 = vmax.xlane.f32.xlu0 %v768
    %v770 = vpop.xlane.xlu0 %769
    %v771 = vsel %vm767, %v765, -inf
    %772 = vmax.xlane.f32.xlu0 %v771
    %v773 = vpop.xlane.xlu0 %772
    %v774 = vsub.f32 %v762, %v770
    %v775 = vsub.f32 %v765, %v773
    %v776 = vmul.f32 %v774, 1.442695
    %v777 = vpow.pop %v776
    %v778 = vmul.f32 %v775, 1.442695
    %v779 = vpow.pop %v778
    %v780 = vsel %vm767, %v777, 0.0
    %781 = vadd.xlane.f32.xlu0 %v780
    %v782 = vpop.xlane.xlu0 %781
    %v783 = vsel %vm767, %v779, 0.0
    %784 = vadd.xlane.f32.xlu0 %v783
    %v785 = vpop.xlane.xlu0 %784
    %v786 = vrcp.pop %v782
    %v787 = vrcp.pop %v785
    %v788 = vmul.f32 %v777, %v786
    %v789 = vmul.f32 %v779, %v787
    %v791 = vsel %vm767, %v788, 0
    %v794 = vsel %vm767, %v789, 0
    %796 = vmatpush.msra.mxu0 0.0
    %797 = vmatpush.msra.mxu0 0.0
    %798 = vmatpush.msra.mxu0 0.0
    %799 = vmatpush.msra.mxu0 0.0
    %800 = vmatpush.msra.mxu0 0.0
    %801 = vmatpush.msra.mxu0 0.0
    %802 = vmatpush.msra.mxu0 0.0
    %803 = vmatpush.msra.mxu0 0.0
    %804 = vmatpush.msra.mxu0 0.0
    %805 = vmatpush.msra.mxu0 0.0
    %806 = vmatpush.msra.mxu0 0.0
    %807 = vmatpush.msra.mxu0 0.0
    %808 = vmatpush.msra.mxu0 0.0
    %809 = vmatpush.msra.mxu0 0.0
    %810 = vmatpush.msra.mxu0 %v704
    %811 = vmatpush.msra.mxu0 %v702
    %812 = vmatmul.f32.gmra.mxu0 %v791
    %v813 = vpop.f32.mrf.mxu0
    %v814 = vadd.f32 0.0, %v813
    %815 = vmatmul.f32.gmra.mxu0 %v794
    %v816 = vpop.f32.mrf.mxu0
    %v817 = vadd.f32 0.0, %v816
    %818 = vdwg.mxu0
    %v819 = vpack.c.bf16 %v817, %v814
    %v820 = vld [vmem:[%s6] sm:$0xf]
    %v821 = vld [vmem:[%s6 + $0x4] sm:$0xf]
    %v822 = vld [vmem:[%s6 + $0x8] sm:$0xf]
    %v823 = vld [vmem:[%s6 + $0xc] sm:$0xf]
    %v824 = vld [vmem:[%s6 + $0x10] sm:$0xf]
    %v825 = vld [vmem:[%s6 + $0x14] sm:$0xf]
    %v826 = vld [vmem:[%s6 + $0x18] sm:$0xf]
    %v827 = vld [vmem:[%s6 + $0x1c] sm:$0xf]
    %v828 = vld [vmem:[%s6 + $0x20] sm:$0xf]
    %v829 = vld [vmem:[%s6 + $0x24] sm:$0xf]
    %v830 = vld [vmem:[%s6 + $0x28] sm:$0xf]
    %v831 = vld [vmem:[%s6 + $0x2c] sm:$0xf]
    %v832 = vld [vmem:[%s6 + $0x30] sm:$0xf]
    %v833 = vld [vmem:[%s6 + $0x34] sm:$0xf]
    %v834 = vld [vmem:[%s6 + $0x38] sm:$0xf]
    %v835 = vld [vmem:[%s6 + $0x3c] sm:$0xf]
    %836 = vmatpush.xpose.msra.mxu0 0.0
    %837 = vmatpush.xpose.msra.mxu0 0.0
    %838 = vmatpush.xpose.msra.mxu0 0.0
    %839 = vmatpush.xpose.msra.mxu0 0.0
    %840 = vmatpush.xpose.msra.mxu0 0.0
    %841 = vmatpush.xpose.msra.mxu0 0.0
    %842 = vmatpush.xpose.msra.mxu0 0.0
    %843 = vmatpush.xpose.msra.mxu0 0.0
    %844 = vmatpush.xpose.msra.mxu0 0.0
    %845 = vmatpush.xpose.msra.mxu0 0.0
    %846 = vmatpush.xpose.msra.mxu0 0.0
    %847 = vmatpush.xpose.msra.mxu0 0.0
    %848 = vmatpush.xpose.msra.mxu0 0.0
    %849 = vmatpush.xpose.msra.mxu0 0.0
    %850 = vmatpush.xpose.msra.mxu0 %v743
    %851 = vmatpush.xpose.msra.mxu0 %v741
    %852 = vmatmul.f32.gmra.mxu0 %v729
    %v853 = vpop.f32.mrf.mxu0
    %v854 = vadd.f32 %v52, %v853
    %855 = vmatmul.f32.gmra.mxu0 %v731
    %v856 = vpop.f32.mrf.mxu0
    %v857 = vadd.f32 %v53, %v856
    %858 = vdwg.mxu0
    %v859 = vsel %vm767, %v854, -inf
    %860 = vmax.xlane.f32.xlu0 %v859
    %v861 = vpop.xlane.xlu0 %860
    %v862 = vsel %vm767, %v857, -inf
    %863 = vmax.xlane.f32.xlu0 %v862
    %v864 = vpop.xlane.xlu0 %863
    %v865 = vsub.f32 %v854, %v861
    %v866 = vsub.f32 %v857, %v864
    %v867 = vmul.f32 %v865, 1.442695
    %v868 = vpow.pop %v867
    %v869 = vmul.f32 %v866, 1.442695
    %v870 = vpow.pop %v869
    %v871 = vsel %vm767, %v868, 0.0
    %872 = vadd.xlane.f32.xlu0 %v871
    %v873 = vpop.xlane.xlu0 %872
    %v874 = vsel %vm767, %v870, 0.0
    %875 = vadd.xlane.f32.xlu0 %v874
    %v876 = vpop.xlane.xlu0 %875
    %v877 = vrcp.pop %v873
    %v878 = vrcp.pop %v876
    %v879 = vmul.f32 %v868, %v877
    %v880 = vmul.f32 %v870, %v878
    %v882 = vsel %vm767, %v879, 0
    %v885 = vsel %vm767, %v880, 0
    %887 = vmatpush.msra.mxu0 0.0
    %888 = vmatpush.msra.mxu0 0.0
    %889 = vmatpush.msra.mxu0 0.0
    %890 = vmatpush.msra.mxu0 0.0
    %891 = vmatpush.msra.mxu0 0.0
    %892 = vmatpush.msra.mxu0 0.0
    %893 = vmatpush.msra.mxu0 0.0
    %894 = vmatpush.msra.mxu0 0.0
    %895 = vmatpush.msra.mxu0 0.0
    %896 = vmatpush.msra.mxu0 0.0
    %897 = vmatpush.msra.mxu0 0.0
    %898 = vmatpush.msra.mxu0 0.0
    %899 = vmatpush.msra.mxu0 0.0
    %900 = vmatpush.msra.mxu0 0.0
    %901 = vmatpush.msra.mxu0 %v718
    %902 = vmatpush.msra.mxu0 %v716
    %903 = vmatmul.f32.gmra.mxu0 %v882
    %v904 = vpop.f32.mrf.mxu0
    %v905 = vadd.f32 0.0, %v904
    %906 = vmatmul.f32.gmra.mxu0 %v885
    %v907 = vpop.f32.mrf.mxu0
    %v908 = vadd.f32 0.0, %v907
    %909 = vdwg.mxu0
    %v910 = vpack.c.bf16 %v908, %v905
    %s911 = scalar_lea.vmem %s6, 64
    %v912 = vld [vmem:[%s911] sm:$0xf]
    %v913 = vld [vmem:[%s911 + $0x4] sm:$0xf]
    %v914 = vld [vmem:[%s911 + $0x8] sm:$0xf]
    %v915 = vld [vmem:[%s911 + $0xc] sm:$0xf]
    %v916 = vld [vmem:[%s911 + $0x10] sm:$0xf]
    %v917 = vld [vmem:[%s911 + $0x14] sm:$0xf]
    %v918 = vld [vmem:[%s911 + $0x18] sm:$0xf]
    %v919 = vld [vmem:[%s911 + $0x1c] sm:$0xf]
    %v920 = vld [vmem:[%s911 + $0x20] sm:$0xf]
    %v921 = vld [vmem:[%s911 + $0x24] sm:$0xf]
    %v922 = vld [vmem:[%s911 + $0x28] sm:$0xf]
    %v923 = vld [vmem:[%s911 + $0x2c] sm:$0xf]
    %v924 = vld [vmem:[%s911 + $0x30] sm:$0xf]
    %v925 = vld [vmem:[%s911 + $0x34] sm:$0xf]
    %v926 = vld [vmem:[%s911 + $0x38] sm:$0xf]
    %v927 = vld [vmem:[%s911 + $0x3c] sm:$0xf]
    %v944 = vunpack.c.l.b16 %v912
    %v945 = vunpack.c.l.b16 %v913
    %v946 = vunpack.c.l.b16 %v914
    %v947 = vunpack.c.l.b16 %v915
    %v948 = vunpack.c.l.b16 %v916
    %v949 = vunpack.c.l.b16 %v917
    %v950 = vunpack.c.l.b16 %v918
    %v951 = vunpack.c.l.b16 %v919
    %v952 = vunpack.c.l.b16 %v920
    %v953 = vunpack.c.l.b16 %v921
    %v954 = vunpack.c.l.b16 %v922
    %v955 = vunpack.c.l.b16 %v923
    %v956 = vunpack.c.l.b16 %v924
    %v957 = vunpack.c.l.b16 %v925
    %v958 = vunpack.c.l.b16 %v926
    %v959 = vunpack.c.l.b16 %v927
    %v960 = vpack.c.b16 %v945, %v944
    %v961 = vpack.c.b16 %v947, %v946
    %v962 = vpack.c.b16 %v949, %v948
    %v963 = vpack.c.b16 %v951, %v950
    %v964 = vpack.c.b16 %v953, %v952
    %v965 = vpack.c.b16 %v955, %v954
    %v966 = vpack.c.b16 %v957, %v956
    %v967 = vpack.c.b16 %v959, %v958
    %976 = vmatpush.bf16.msra.mxu0 %v967
    %977 = vmatpush.bf16.msra.mxu0 %v966
    %978 = vmatpush.bf16.msra.mxu0 %v965
    %979 = vmatpush.bf16.msra.mxu0 %v964
    %980 = vmatpush.bf16.msra.mxu0 %v963
    %981 = vmatpush.bf16.msra.mxu0 %v962
    %982 = vmatpush.bf16.msra.mxu0 %v961
    %983 = vmatpush.bf16.msra.mxu0 %v960
    %984 = vmatmul.bf16.gmra.mxu0 %v910
    %v985 = vpop.f32.mrf.mxu0
    %v986 = vadd.f32 0.0, %v985
    %v987 = vpop.f32.mrf.mxu0
    %v988 = vadd.f32 0.0, %v987
    %989 = vdwg.mxu0
    %v1006 = vunpack.c.l.b16 %v820
    %v1007 = vunpack.c.l.b16 %v821
    %v1008 = vunpack.c.l.b16 %v822
    %v1009 = vunpack.c.l.b16 %v823
    %v1010 = vunpack.c.l.b16 %v824
    %v1011 = vunpack.c.l.b16 %v825
    %v1012 = vunpack.c.l.b16 %v826
    %v1013 = vunpack.c.l.b16 %v827
    %v1014 = vunpack.c.l.b16 %v828
    %v1015 = vunpack.c.l.b16 %v829
    %v1016 = vunpack.c.l.b16 %v830
    %v1017 = vunpack.c.l.b16 %v831
    %v1018 = vunpack.c.l.b16 %v832
    %v1019 = vunpack.c.l.b16 %v833
    %v1020 = vunpack.c.l.b16 %v834
    %v1021 = vunpack.c.l.b16 %v835
    %v1022 = vpack.c.b16 %v1007, %v1006
    %v1023 = vpack.c.b16 %v1009, %v1008
    %v1024 = vpack.c.b16 %v1011, %v1010
    %v1025 = vpack.c.b16 %v1013, %v1012
    %v1026 = vpack.c.b16 %v1015, %v1014
    %v1027 = vpack.c.b16 %v1017, %v1016
    %v1028 = vpack.c.b16 %v1019, %v1018
    %v1029 = vpack.c.b16 %v1021, %v1020
    %1038 = vmatpush.bf16.msra.mxu0 %v1029
    %1039 = vmatpush.bf16.msra.mxu0 %v1028
    %1040 = vmatpush.bf16.msra.mxu0 %v1027
    %1041 = vmatpush.bf16.msra.mxu0 %v1026
    %1042 = vmatpush.bf16.msra.mxu0 %v1025
    %1043 = vmatpush.bf16.msra.mxu0 %v1024
    %1044 = vmatpush.bf16.msra.mxu0 %v1023
    %1045 = vmatpush.bf16.msra.mxu0 %v1022
    %1046 = vmatmul.bf16.gmra.mxu0 %v819
    %v1047 = vpop.f32.mrf.mxu0
    %v1048 = vadd.f32 %v986, %v1047
    %v1049 = vpop.f32.mrf.mxu0
    %v1050 = vadd.f32 %v988, %v1049
    %1051 = vdwg.mxu0
    %v1052 = vadd.f32 %v42, %v1048
    %v1053 = vadd.f32 %v43, %v1050
    %v1054 = vld [vmem:[%s7] sm:$0x1]
    %v1055 = vmul.f32 %v1052, %v1052
    %v1056 = vmul.f32 %v1053, %v1053
    %1057 = vadd.xlane.f32.xlu0 %v1055
    %v1058 = vpop.xlane.xlu0 %1057
    %1059 = vadd.xlane.f32.xlu0 %v1056
    %v1060 = vpop.xlane.xlu0 %1059
    %v1061 = vmul.f32 %v1058, %v67
    %v1062 = vmul.f32 %v1060, %v67
    %v1063 = vadd.f32 %v1061, 1e-05
    %v1064 = vadd.f32 %v1062, 1e-05
    %v1065 = vrsqrt.pop %v1063
    %v1066 = vmul.f32 %v1065, %v1063
    %v1067 = vmul.f32 %v1066, %v1065
    %v1068 = vmul.f32 0.5, %v1067
    %v1069 = vsub.f32 1.5, %v1068
    %v1070 = vmul.f32 %v1065, %v1069
    %vm1071 = vweird.f32 %v1063
    %vm1072 = vweird.f32 %v1065
    %vm1073 = vmor %vm1071, %vm1072
    %v1074 = vsel %vm1073, %v1065, %v1070
    %v1075 = vrsqrt.pop %v1064
    %v1076 = vmul.f32 %v1075, %v1064
    %v1077 = vmul.f32 %v1076, %v1075
    %v1078 = vmul.f32 0.5, %v1077
    %v1079 = vsub.f32 1.5, %v1078
    %v1080 = vmul.f32 %v1075, %v1079
    %vm1081 = vweird.f32 %v1064
    %vm1082 = vweird.f32 %v1075
    %vm1083 = vmor %vm1081, %vm1082
    %v1084 = vsel %vm1083, %v1075, %v1080
    %v1085 = vmul.f32 %v1052, %v1074
    %v1086 = vmul.f32 %v1053, %v1084
    %v1088 = vperm.slane %v1054, 0
    %v1090 = vmul.f32 %v1085, %v1088
    %v1091 = vmul.f32 %v1086, %v1088
    %v1092 = vpack.c.bf16 %v1091, %v1090
    %v1093 = vld [vmem:[%s8] sm:$0xff]
    %v1094 = vld [vmem:[%s8 + $0x8] sm:$0xff]
    %v1095 = vld [vmem:[%s8 + $0x10] sm:$0xff]
    %v1096 = vld [vmem:[%s8 + $0x18] sm:$0xff]
    %v1097 = vld [vmem:[%s8 + $0x20] sm:$0xff]
    %v1098 = vld [vmem:[%s8 + $0x28] sm:$0xff]
    %v1099 = vld [vmem:[%s8 + $0x30] sm:$0xff]
    %v1100 = vld [vmem:[%s8 + $0x38] sm:$0xff]
    %v1101 = vld [vmem:[%s8 + $0x40] sm:$0xff]
    %v1102 = vld [vmem:[%s8 + $0x48] sm:$0xff]
    %v1103 = vld [vmem:[%s8 + $0x50] sm:$0xff]
    %v1104 = vld [vmem:[%s8 + $0x58] sm:$0xff]
    %v1105 = vld [vmem:[%s8 + $0x60] sm:$0xff]
    %v1106 = vld [vmem:[%s8 + $0x68] sm:$0xff]
    %v1107 = vld [vmem:[%s8 + $0x70] sm:$0xff]
    %v1108 = vld [vmem:[%s8 + $0x78] sm:$0xff]
    %v1109 = vld [vmem:[%s8 + $0x80] sm:$0xff]
    %v1110 = vld [vmem:[%s8 + $0x88] sm:$0xff]
    %v1111 = vld [vmem:[%s8 + $0x90] sm:$0xff]
    %v1112 = vld [vmem:[%s8 + $0x98] sm:$0xff]
    %v1113 = vld [vmem:[%s8 + $0xa0] sm:$0xff]
    %v1114 = vld [vmem:[%s8 + $0xa8] sm:$0xff]
    %v1115 = vld [vmem:[%s8 + $0xb0] sm:$0xff]
    %v1116 = vld [vmem:[%s8 + $0xb8] sm:$0xff]
    %v1117 = vld [vmem:[%s8 + $0xc0] sm:$0xff]
    %v1118 = vld [vmem:[%s8 + $0xc8] sm:$0xff]
    %v1119 = vld [vmem:[%s8 + $0xd0] sm:$0xff]
    %v1120 = vld [vmem:[%s8 + $0xd8] sm:$0xff]
    %v1121 = vld [vmem:[%s8 + $0xe0] sm:$0xff]
    %v1122 = vld [vmem:[%s8 + $0xe8] sm:$0xff]
    %v1123 = vld [vmem:[%s8 + $0xf0] sm:$0xff]
    %v1124 = vld [vmem:[%s8 + $0xf8] sm:$0xff]
    %v1125 = vld [vmem:[%s8 + $0x100] sm:$0xff]
    %v1126 = vld [vmem:[%s8 + $0x108] sm:$0xff]
    %v1127 = vld [vmem:[%s8 + $0x110] sm:$0xff]
    %v1128 = vld [vmem:[%s8 + $0x118] sm:$0xff]
    %v1129 = vld [vmem:[%s8 + $0x120] sm:$0xff]
    %v1130 = vld [vmem:[%s8 + $0x128] sm:$0xff]
    %v1131 = vld [vmem:[%s8 + $0x130] sm:$0xff]
    %v1132 = vld [vmem:[%s8 + $0x138] sm:$0xff]
    %v1133 = vld [vmem:[%s8 + $0x140] sm:$0xff]
    %v1134 = vld [vmem:[%s8 + $0x148] sm:$0xff]
    %v1135 = vld [vmem:[%s8 + $0x150] sm:$0xff]
    %v1136 = vld [vmem:[%s8 + $0x158] sm:$0xff]
    %v1137 = vld [vmem:[%s8 + $0x160] sm:$0xff]
    %v1138 = vld [vmem:[%s8 + $0x168] sm:$0xff]
    %v1139 = vld [vmem:[%s8 + $0x170] sm:$0xff]
    %v1140 = vld [vmem:[%s8 + $0x178] sm:$0xff]
    %v1189 = vunpack.c.l.b16 %v1093
    %v1190 = vunpack.c.h.b16 %v1093
    %v1191 = vunpack.c.l.b16 %v1094
    %v1192 = vunpack.c.h.b16 %v1094
    %v1193 = vunpack.c.l.b16 %v1095
    %v1194 = vunpack.c.h.b16 %v1095
    %v1195 = vunpack.c.l.b16 %v1096
    %v1196 = vunpack.c.h.b16 %v1096
    %v1197 = vunpack.c.l.b16 %v1097
    %v1198 = vunpack.c.h.b16 %v1097
    %v1199 = vunpack.c.l.b16 %v1098
    %v1200 = vunpack.c.h.b16 %v1098
    %v1201 = vunpack.c.l.b16 %v1099
    %v1202 = vunpack.c.h.b16 %v1099
    %v1203 = vunpack.c.l.b16 %v1100
    %v1204 = vunpack.c.h.b16 %v1100
    %v1205 = vunpack.c.l.b16 %v1101
    %v1206 = vunpack.c.h.b16 %v1101
    %v1207 = vunpack.c.l.b16 %v1102
    %v1208 = vunpack.c.h.b16 %v1102
    %v1209 = vunpack.c.l.b16 %v1103
    %v1210 = vunpack.c.h.b16 %v1103
    %v1211 = vunpack.c.l.b16 %v1104
    %v1212 = vunpack.c.h.b16 %v1104
    %v1213 = vunpack.c.l.b16 %v1105
    %v1214 = vunpack.c.h.b16 %v1105
    %v1215 = vunpack.c.l.b16 %v1106
    %v1216 = vunpack.c.h.b16 %v1106
    %v1217 = vunpack.c.l.b16 %v1107
    %v1218 = vunpack.c.h.b16 %v1107
    %v1219 = vunpack.c.l.b16 %v1108
    %v1220 = vunpack.c.h.b16 %v1108
    %v1221 = vunpack.c.l.b16 %v1109
    %v1222 = vunpack.c.h.b16 %v1109
    %v1223 = vunpack.c.l.b16 %v1110
    %v1224 = vunpack.c.h.b16 %v1110
    %v1225 = vunpack.c.l.b16 %v1111
    %v1226 = vunpack.c.h.b16 %v1111
    %v1227 = vunpack.c.l.b16 %v1112
    %v1228 = vunpack.c.h.b16 %v1112
    %v1229 = vunpack.c.l.b16 %v1113
    %v1230 = vunpack.c.h.b16 %v1113
    %v1231 = vunpack.c.l.b16 %v1114
    %v1232 = vunpack.c.h.b16 %v1114
    %v1233 = vunpack.c.l.b16 %v1115
    %v1234 = vunpack.c.h.b16 %v1115
    %v1235 = vunpack.c.l.b16 %v1116
    %v1236 = vunpack.c.h.b16 %v1116
    %v1237 = vunpack.c.l.b16 %v1117
    %v1238 = vunpack.c.h.b16 %v1117
    %v1239 = vunpack.c.l.b16 %v1118
    %v1240 = vunpack.c.h.b16 %v1118
    %v1241 = vunpack.c.l.b16 %v1119
    %v1242 = vunpack.c.h.b16 %v1119
    %v1243 = vunpack.c.l.b16 %v1120
    %v1244 = vunpack.c.h.b16 %v1120
    %v1245 = vunpack.c.l.b16 %v1121
    %v1246 = vunpack.c.h.b16 %v1121
    %v1247 = vunpack.c.l.b16 %v1122
    %v1248 = vunpack.c.h.b16 %v1122
    %v1249 = vunpack.c.l.b16 %v1123
    %v1250 = vunpack.c.h.b16 %v1123
    %v1251 = vunpack.c.l.b16 %v1124
    %v1252 = vunpack.c.h.b16 %v1124
    %v1253 = vunpack.c.l.b16 %v1125
    %v1254 = vunpack.c.h.b16 %v1125
    %v1255 = vunpack.c.l.b16 %v1126
    %v1256 = vunpack.c.h.b16 %v1126
    %v1257 = vunpack.c.l.b16 %v1127
    %v1258 = vunpack.c.h.b16 %v1127
    %v1259 = vunpack.c.l.b16 %v1128
    %v1260 = vunpack.c.h.b16 %v1128
    %v1261 = vunpack.c.l.b16 %v1129
    %v1262 = vunpack.c.h.b16 %v1129
    %v1263 = vunpack.c.l.b16 %v1130
    %v1264 = vunpack.c.h.b16 %v1130
    %v1265 = vunpack.c.l.b16 %v1131
    %v1266 = vunpack.c.h.b16 %v1131
    %v1267 = vunpack.c.l.b16 %v1132
    %v1268 = vunpack.c.h.b16 %v1132
    %v1269 = vunpack.c.l.b16 %v1133
    %v1270 = vunpack.c.h.b16 %v1133
    %v1271 = vunpack.c.l.b16 %v1134
    %v1272 = vunpack.c.h.b16 %v1134
    %v1273 = vunpack.c.l.b16 %v1135
    %v1274 = vunpack.c.h.b16 %v1135
    %v1275 = vunpack.c.l.b16 %v1136
    %v1276 = vunpack.c.h.b16 %v1136
    %v1277 = vunpack.c.l.b16 %v1137
    %v1278 = vunpack.c.h.b16 %v1137
    %v1279 = vunpack.c.l.b16 %v1138
    %v1280 = vunpack.c.h.b16 %v1138
    %v1281 = vunpack.c.l.b16 %v1139
    %v1282 = vunpack.c.h.b16 %v1139
    %v1283 = vunpack.c.l.b16 %v1140
    %v1284 = vunpack.c.h.b16 %v1140
    %v1285 = vpack.c.b16 %v1195, %v1189
    %v1286 = vpack.c.b16 %v1196, %v1190
    %v1287 = vpack.c.b16 %v1197, %v1191
    %v1288 = vpack.c.b16 %v1198, %v1192
    %v1289 = vpack.c.b16 %v1199, %v1193
    %v1290 = vpack.c.b16 %v1200, %v1194
    %v1291 = vpack.c.b16 %v1207, %v1201
    %v1292 = vpack.c.b16 %v1208, %v1202
    %v1293 = vpack.c.b16 %v1209, %v1203
    %v1294 = vpack.c.b16 %v1210, %v1204
    %v1295 = vpack.c.b16 %v1211, %v1205
    %v1296 = vpack.c.b16 %v1212, %v1206
    %v1297 = vpack.c.b16 %v1219, %v1213
    %v1298 = vpack.c.b16 %v1220, %v1214
    %v1299 = vpack.c.b16 %v1221, %v1215
    %v1300 = vpack.c.b16 %v1222, %v1216
    %v1301 = vpack.c.b16 %v1223, %v1217
    %v1302 = vpack.c.b16 %v1224, %v1218
    %v1303 = vpack.c.b16 %v1231, %v1225
    %v1304 = vpack.c.b16 %v1232, %v1226
    %v1305 = vpack.c.b16 %v1233, %v1227
    %v1306 = vpack.c.b16 %v1234, %v1228
    %v1307 = vpack.c.b16 %v1235, %v1229
    %v1308 = vpack.c.b16 %v1236, %v1230
    %v1309 = vpack.c.b16 %v1243, %v1237
    %v1310 = vpack.c.b16 %v1244, %v1238
    %v1311 = vpack.c.b16 %v1245, %v1239
    %v1312 = vpack.c.b16 %v1246, %v1240
    %v1313 = vpack.c.b16 %v1247, %v1241
    %v1314 = vpack.c.b16 %v1248, %v1242
    %v1315 = vpack.c.b16 %v1255, %v1249
    %v1316 = vpack.c.b16 %v1256, %v1250
    %v1317 = vpack.c.b16 %v1257, %v1251
    %v1318 = vpack.c.b16 %v1258, %v1252
    %v1319 = vpack.c.b16 %v1259, %v1253
    %v1320 = vpack.c.b16 %v1260, %v1254
    %v1321 = vpack.c.b16 %v1267, %v1261
    %v1322 = vpack.c.b16 %v1268, %v1262
    %v1323 = vpack.c.b16 %v1269, %v1263
    %v1324 = vpack.c.b16 %v1270, %v1264
    %v1325 = vpack.c.b16 %v1271, %v1265
    %v1326 = vpack.c.b16 %v1272, %v1266
    %v1327 = vpack.c.b16 %v1279, %v1273
    %v1328 = vpack.c.b16 %v1280, %v1274
    %v1329 = vpack.c.b16 %v1281, %v1275
    %v1330 = vpack.c.b16 %v1282, %v1276
    %v1331 = vpack.c.b16 %v1283, %v1277
    %v1332 = vpack.c.b16 %v1284, %v1278
    %1381 = vmatpush.bf16.msra.mxu0 %v1327
    %1382 = vmatpush.bf16.msra.mxu0 %v1321
    %1383 = vmatpush.bf16.msra.mxu0 %v1315
    %1384 = vmatpush.bf16.msra.mxu0 %v1309
    %1385 = vmatpush.bf16.msra.mxu0 %v1303
    %1386 = vmatpush.bf16.msra.mxu0 %v1297
    %1387 = vmatpush.bf16.msra.mxu0 %v1291
    %1388 = vmatpush.bf16.msra.mxu0 %v1285
    %1389 = vmatmul.bf16.gmra.mxu0 %v1092
    %v1390 = vpop.f32.mrf.mxu0
    %v1391 = vadd.f32 0.0, %v1390
    %v1392 = vpop.f32.mrf.mxu0
    %v1393 = vadd.f32 0.0, %v1392
    %1394 = vdwg.mxu0
    %1395 = vmatpush.bf16.msra.mxu0 %v1328
    %1396 = vmatpush.bf16.msra.mxu0 %v1322
    %1397 = vmatpush.bf16.msra.mxu0 %v1316
    %1398 = vmatpush.bf16.msra.mxu0 %v1310
    %1399 = vmatpush.bf16.msra.mxu0 %v1304
    %1400 = vmatpush.bf16.msra.mxu0 %v1298
    %1401 = vmatpush.bf16.msra.mxu0 %v1292
    %1402 = vmatpush.bf16.msra.mxu0 %v1286
    %1403 = vmatmul.bf16.gmra.mxu0 %v1092
    %v1404 = vpop.f32.mrf.mxu0
    %v1405 = vadd.f32 0.0, %v1404
    %v1406 = vpop.f32.mrf.mxu0
    %v1407 = vadd.f32 0.0, %v1406
    %1408 = vdwg.mxu0
    %1409 = vmatpush.bf16.msra.mxu0 %v1329
    %1410 = vmatpush.bf16.msra.mxu0 %v1323
    %1411 = vmatpush.bf16.msra.mxu0 %v1317
    %1412 = vmatpush.bf16.msra.mxu0 %v1311
    %1413 = vmatpush.bf16.msra.mxu0 %v1305
    %1414 = vmatpush.bf16.msra.mxu0 %v1299
    %1415 = vmatpush.bf16.msra.mxu0 %v1293
    %1416 = vmatpush.bf16.msra.mxu0 %v1287
    %1417 = vmatmul.bf16.gmra.mxu0 %v1092
    %v1418 = vpop.f32.mrf.mxu0
    %v1419 = vadd.f32 0.0, %v1418
    %v1420 = vpop.f32.mrf.mxu0
    %v1421 = vadd.f32 0.0, %v1420
    %1422 = vdwg.mxu0
    %1423 = vmatpush.bf16.msra.mxu0 %v1330
    %1424 = vmatpush.bf16.msra.mxu0 %v1324
    %1425 = vmatpush.bf16.msra.mxu0 %v1318
    %1426 = vmatpush.bf16.msra.mxu0 %v1312
    %1427 = vmatpush.bf16.msra.mxu0 %v1306
    %1428 = vmatpush.bf16.msra.mxu0 %v1300
    %1429 = vmatpush.bf16.msra.mxu0 %v1294
    %1430 = vmatpush.bf16.msra.mxu0 %v1288
    %1431 = vmatmul.bf16.gmra.mxu0 %v1092
    %v1432 = vpop.f32.mrf.mxu0
    %v1433 = vadd.f32 0.0, %v1432
    %v1434 = vpop.f32.mrf.mxu0
    %v1435 = vadd.f32 0.0, %v1434
    %1436 = vdwg.mxu0
    %1437 = vmatpush.bf16.msra.mxu0 %v1331
    %1438 = vmatpush.bf16.msra.mxu0 %v1325
    %1439 = vmatpush.bf16.msra.mxu0 %v1319
    %1440 = vmatpush.bf16.msra.mxu0 %v1313
    %1441 = vmatpush.bf16.msra.mxu0 %v1307
    %1442 = vmatpush.bf16.msra.mxu0 %v1301
    %1443 = vmatpush.bf16.msra.mxu0 %v1295
    %1444 = vmatpush.bf16.msra.mxu0 %v1289
    %1445 = vmatmul.bf16.gmra.mxu0 %v1092
    %v1446 = vpop.f32.mrf.mxu0
    %v1447 = vadd.f32 0.0, %v1446
    %v1448 = vpop.f32.mrf.mxu0
    %v1449 = vadd.f32 0.0, %v1448
    %1450 = vdwg.mxu0
    %1451 = vmatpush.bf16.msra.mxu0 %v1332
    %1452 = vmatpush.bf16.msra.mxu0 %v1326
    %1453 = vmatpush.bf16.msra.mxu0 %v1320
    %1454 = vmatpush.bf16.msra.mxu0 %v1314
    %1455 = vmatpush.bf16.msra.mxu0 %v1308
    %1456 = vmatpush.bf16.msra.mxu0 %v1302
    %1457 = vmatpush.bf16.msra.mxu0 %v1296
    %1458 = vmatpush.bf16.msra.mxu0 %v1290
    %1459 = vmatmul.bf16.gmra.mxu0 %v1092
    %v1460 = vpop.f32.mrf.mxu0
    %v1461 = vadd.f32 0.0, %v1460
    %v1462 = vpop.f32.mrf.mxu0
    %v1463 = vadd.f32 0.0, %v1462
    %1464 = vdwg.mxu0
    %v1465 = vmul.f32 %v1391, 0.5
    %v1466 = vmul.f32 %v1405, 0.5
    %v1467 = vmul.f32 %v1419, 0.5
    %v1468 = vmul.f32 %v1393, 0.5
    %v1469 = vmul.f32 %v1407, 0.5
    %v1470 = vmul.f32 %v1421, 0.5
    %v1471 = vtanh.pop %v1465
    %v1472 = vtanh.pop %v1466
    %v1473 = vtanh.pop %v1467
    %v1474 = vtanh.pop %v1468
    %v1475 = vtanh.pop %v1469
    %v1476 = vtanh.pop %v1470
    %v1477 = vadd.f32 %v1471, 1.0
    %v1478 = vadd.f32 %v1472, 1.0
    %v1479 = vadd.f32 %v1473, 1.0
    %v1480 = vadd.f32 %v1474, 1.0
    %v1481 = vadd.f32 %v1475, 1.0
    %v1482 = vadd.f32 %v1476, 1.0
    %v1483 = vmul.f32 %v1465, %v1477
    %v1484 = vmul.f32 %v1466, %v1478
    %v1485 = vmul.f32 %v1467, %v1479
    %v1486 = vmul.f32 %v1468, %v1480
    %v1487 = vmul.f32 %v1469, %v1481
    %v1488 = vmul.f32 %v1470, %v1482
    %v1489 = vmul.f32 %v1483, %v1433
    %v1490 = vmul.f32 %v1484, %v1447
    %v1491 = vmul.f32 %v1485, %v1461
    %v1492 = vmul.f32 %v1486, %v1435
    %v1493 = vmul.f32 %v1487, %v1449
    %v1494 = vmul.f32 %v1488, %v1463
    %v1495 = vpack.c.bf16 %v1492, %v1489
    %v1496 = vpack.c.bf16 %v1493, %v1490
    %v1497 = vpack.c.bf16 %v1494, %v1491
    %v1498 = vld [vmem:[%s9] sm:$0xf]
    %v1499 = vld [vmem:[%s9 + $0x4] sm:$0xf]
    %v1500 = vld [vmem:[%s9 + $0x8] sm:$0xf]
    %v1501 = vld [vmem:[%s9 + $0xc] sm:$0xf]
    %v1502 = vld [vmem:[%s9 + $0x10] sm:$0xf]
    %v1503 = vld [vmem:[%s9 + $0x14] sm:$0xf]
    %v1504 = vld [vmem:[%s9 + $0x18] sm:$0xf]
    %v1505 = vld [vmem:[%s9 + $0x1c] sm:$0xf]
    %v1506 = vld [vmem:[%s9 + $0x20] sm:$0xf]
    %v1507 = vld [vmem:[%s9 + $0x24] sm:$0xf]
    %v1508 = vld [vmem:[%s9 + $0x28] sm:$0xf]
    %v1509 = vld [vmem:[%s9 + $0x2c] sm:$0xf]
    %v1510 = vld [vmem:[%s9 + $0x30] sm:$0xf]
    %v1511 = vld [vmem:[%s9 + $0x34] sm:$0xf]
    %v1512 = vld [vmem:[%s9 + $0x38] sm:$0xf]
    %v1513 = vld [vmem:[%s9 + $0x3c] sm:$0xf]
    %v1514 = vld [vmem:[%s9 + $0x40] sm:$0xf]
    %v1515 = vld [vmem:[%s9 + $0x44] sm:$0xf]
    %v1516 = vld [vmem:[%s9 + $0x48] sm:$0xf]
    %v1517 = vld [vmem:[%s9 + $0x4c] sm:$0xf]
    %v1518 = vld [vmem:[%s9 + $0x50] sm:$0xf]
    %v1519 = vld [vmem:[%s9 + $0x54] sm:$0xf]
    %v1520 = vld [vmem:[%s9 + $0x58] sm:$0xf]
    %v1521 = vld [vmem:[%s9 + $0x5c] sm:$0xf]
    %v1522 = vld [vmem:[%s9 + $0x60] sm:$0xf]
    %v1523 = vld [vmem:[%s9 + $0x64] sm:$0xf]
    %v1524 = vld [vmem:[%s9 + $0x68] sm:$0xf]
    %v1525 = vld [vmem:[%s9 + $0x6c] sm:$0xf]
    %v1526 = vld [vmem:[%s9 + $0x70] sm:$0xf]
    %v1527 = vld [vmem:[%s9 + $0x74] sm:$0xf]
    %v1528 = vld [vmem:[%s9 + $0x78] sm:$0xf]
    %v1529 = vld [vmem:[%s9 + $0x7c] sm:$0xf]
    %v1530 = vld [vmem:[%s9 + $0x80] sm:$0xf]
    %v1531 = vld [vmem:[%s9 + $0x84] sm:$0xf]
    %v1532 = vld [vmem:[%s9 + $0x88] sm:$0xf]
    %v1533 = vld [vmem:[%s9 + $0x8c] sm:$0xf]
    %v1534 = vld [vmem:[%s9 + $0x90] sm:$0xf]
    %v1535 = vld [vmem:[%s9 + $0x94] sm:$0xf]
    %v1536 = vld [vmem:[%s9 + $0x98] sm:$0xf]
    %v1537 = vld [vmem:[%s9 + $0x9c] sm:$0xf]
    %v1538 = vld [vmem:[%s9 + $0xa0] sm:$0xf]
    %v1539 = vld [vmem:[%s9 + $0xa4] sm:$0xf]
    %v1540 = vld [vmem:[%s9 + $0xa8] sm:$0xf]
    %v1541 = vld [vmem:[%s9 + $0xac] sm:$0xf]
    %v1542 = vld [vmem:[%s9 + $0xb0] sm:$0xf]
    %v1543 = vld [vmem:[%s9 + $0xb4] sm:$0xf]
    %v1544 = vld [vmem:[%s9 + $0xb8] sm:$0xf]
    %v1545 = vld [vmem:[%s9 + $0xbc] sm:$0xf]
    %v1594 = vunpack.c.l.b16 %v1498
    %v1595 = vunpack.c.l.b16 %v1499
    %v1596 = vunpack.c.l.b16 %v1500
    %v1597 = vunpack.c.l.b16 %v1501
    %v1598 = vunpack.c.l.b16 %v1502
    %v1599 = vunpack.c.l.b16 %v1503
    %v1600 = vunpack.c.l.b16 %v1504
    %v1601 = vunpack.c.l.b16 %v1505
    %v1602 = vunpack.c.l.b16 %v1506
    %v1603 = vunpack.c.l.b16 %v1507
    %v1604 = vunpack.c.l.b16 %v1508
    %v1605 = vunpack.c.l.b16 %v1509
    %v1606 = vunpack.c.l.b16 %v1510
    %v1607 = vunpack.c.l.b16 %v1511
    %v1608 = vunpack.c.l.b16 %v1512
    %v1609 = vunpack.c.l.b16 %v1513
    %v1610 = vunpack.c.l.b16 %v1514
    %v1611 = vunpack.c.l.b16 %v1515
    %v1612 = vunpack.c.l.b16 %v1516
    %v1613 = vunpack.c.l.b16 %v1517
    %v1614 = vunpack.c.l.b16 %v1518
    %v1615 = vunpack.c.l.b16 %v1519
    %v1616 = vunpack.c.l.b16 %v1520
    %v1617 = vunpack.c.l.b16 %v1521
    %v1618 = vunpack.c.l.b16 %v1522
    %v1619 = vunpack.c.l.b16 %v1523
    %v1620 = vunpack.c.l.b16 %v1524
    %v1621 = vunpack.c.l.b16 %v1525
    %v1622 = vunpack.c.l.b16 %v1526
    %v1623 = vunpack.c.l.b16 %v1527
    %v1624 = vunpack.c.l.b16 %v1528
    %v1625 = vunpack.c.l.b16 %v1529
    %v1626 = vunpack.c.l.b16 %v1530
    %v1627 = vunpack.c.l.b16 %v1531
    %v1628 = vunpack.c.l.b16 %v1532
    %v1629 = vunpack.c.l.b16 %v1533
    %v1630 = vunpack.c.l.b16 %v1534
    %v1631 = vunpack.c.l.b16 %v1535
    %v1632 = vunpack.c.l.b16 %v1536
    %v1633 = vunpack.c.l.b16 %v1537
    %v1634 = vunpack.c.l.b16 %v1538
    %v1635 = vunpack.c.l.b16 %v1539
    %v1636 = vunpack.c.l.b16 %v1540
    %v1637 = vunpack.c.l.b16 %v1541
    %v1638 = vunpack.c.l.b16 %v1542
    %v1639 = vunpack.c.l.b16 %v1543
    %v1640 = vunpack.c.l.b16 %v1544
    %v1641 = vunpack.c.l.b16 %v1545
    %v1642 = vpack.c.b16 %v1595, %v1594
    %v1643 = vpack.c.b16 %v1597, %v1596
    %v1644 = vpack.c.b16 %v1599, %v1598
    %v1645 = vpack.c.b16 %v1601, %v1600
    %v1646 = vpack.c.b16 %v1603, %v1602
    %v1647 = vpack.c.b16 %v1605, %v1604
    %v1648 = vpack.c.b16 %v1607, %v1606
    %v1649 = vpack.c.b16 %v1609, %v1608
    %v1650 = vpack.c.b16 %v1611, %v1610
    %v1651 = vpack.c.b16 %v1613, %v1612
    %v1652 = vpack.c.b16 %v1615, %v1614
    %v1653 = vpack.c.b16 %v1617, %v1616
    %v1654 = vpack.c.b16 %v1619, %v1618
    %v1655 = vpack.c.b16 %v1621, %v1620
    %v1656 = vpack.c.b16 %v1623, %v1622
    %v1657 = vpack.c.b16 %v1625, %v1624
    %v1658 = vpack.c.b16 %v1627, %v1626
    %v1659 = vpack.c.b16 %v1629, %v1628
    %v1660 = vpack.c.b16 %v1631, %v1630
    %v1661 = vpack.c.b16 %v1633, %v1632
    %v1662 = vpack.c.b16 %v1635, %v1634
    %v1663 = vpack.c.b16 %v1637, %v1636
    %v1664 = vpack.c.b16 %v1639, %v1638
    %v1665 = vpack.c.b16 %v1641, %v1640
    %1690 = vmatpush.bf16.msra.mxu0 %v1649
    %1691 = vmatpush.bf16.msra.mxu0 %v1648
    %1692 = vmatpush.bf16.msra.mxu0 %v1647
    %1693 = vmatpush.bf16.msra.mxu0 %v1646
    %1694 = vmatpush.bf16.msra.mxu0 %v1645
    %1695 = vmatpush.bf16.msra.mxu0 %v1644
    %1696 = vmatpush.bf16.msra.mxu0 %v1643
    %1697 = vmatpush.bf16.msra.mxu0 %v1642
    %1698 = vmatmul.bf16.gmra.mxu0 %v1495
    %v1699 = vpop.f32.mrf.mxu0
    %v1700 = vadd.f32 0.0, %v1699
    %v1701 = vpop.f32.mrf.mxu0
    %v1702 = vadd.f32 0.0, %v1701
    %1703 = vdwg.mxu0
    %1704 = vmatpush.bf16.msra.mxu0 %v1657
    %1705 = vmatpush.bf16.msra.mxu0 %v1656
    %1706 = vmatpush.bf16.msra.mxu0 %v1655
    %1707 = vmatpush.bf16.msra.mxu0 %v1654
    %1708 = vmatpush.bf16.msra.mxu0 %v1653
    %1709 = vmatpush.bf16.msra.mxu0 %v1652
    %1710 = vmatpush.bf16.msra.mxu0 %v1651
    %1711 = vmatpush.bf16.msra.mxu0 %v1650
    %1712 = vmatmul.bf16.gmra.mxu0 %v1496
    %v1713 = vpop.f32.mrf.mxu0
    %v1714 = vadd.f32 %v1700, %v1713
    %v1715 = vpop.f32.mrf.mxu0
    %v1716 = vadd.f32 %v1702, %v1715
    %1717 = vdwg.mxu0
    %1718 = vmatpush.bf16.msra.mxu0 %v1665
    %1719 = vmatpush.bf16.msra.mxu0 %v1664
    %1720 = vmatpush.bf16.msra.mxu0 %v1663
    %1721 = vmatpush.bf16.msra.mxu0 %v1662
    %1722 = vmatpush.bf16.msra.mxu0 %v1661
    %1723 = vmatpush.bf16.msra.mxu0 %v1660
    %1724 = vmatpush.bf16.msra.mxu0 %v1659
    %1725 = vmatpush.bf16.msra.mxu0 %v1658
    %1726 = vmatmul.bf16.gmra.mxu0 %v1497
    %v1727 = vpop.f32.mrf.mxu0
    %v1728 = vadd.f32 %v1714, %v1727
    %v1729 = vpop.f32.mrf.mxu0
    %v1730 = vadd.f32 %v1716, %v1729
    %1731 = vdwg.mxu0
    %v1732 = vadd.f32 %v1052, %v1728
    %v1733 = vadd.f32 %v1053, %v1730
    %s1734 = scalar_lea.vmem %s4, 1
    %v1735 = vld [vmem:[%s1734] sm:$0x1]
    %v1736 = vmul.f32 %v1732, %v1732
    %v1737 = vmul.f32 %v1733, %v1733
    %1738 = vadd.xlane.f32.xlu0 %v1736
    %v1739 = vpop.xlane.xlu0 %1738
    %1740 = vadd.xlane.f32.xlu0 %v1737
    %v1741 = vpop.xlane.xlu0 %1740
    %v1742 = vmul.f32 %v1739, %v67
    %v1743 = vmul.f32 %v1741, %v67
    %v1744 = vadd.f32 %v1742, 1e-05
    %v1745 = vadd.f32 %v1743, 1e-05
    %v1746 = vrsqrt.pop %v1744
    %v1747 = vmul.f32 %v1746, %v1744
    %v1748 = vmul.f32 %v1747, %v1746
    %v1749 = vmul.f32 0.5, %v1748
    %v1750 = vsub.f32 1.5, %v1749
    %v1751 = vmul.f32 %v1746, %v1750
    %vm1752 = vweird.f32 %v1744
    %vm1753 = vweird.f32 %v1746
    %vm1754 = vmor %vm1752, %vm1753
    %v1755 = vsel %vm1754, %v1746, %v1751
    %v1756 = vrsqrt.pop %v1745
    %v1757 = vmul.f32 %v1756, %v1745
    %v1758 = vmul.f32 %v1757, %v1756
    %v1759 = vmul.f32 0.5, %v1758
    %v1760 = vsub.f32 1.5, %v1759
    %v1761 = vmul.f32 %v1756, %v1760
    %vm1762 = vweird.f32 %v1745
    %vm1763 = vweird.f32 %v1756
    %vm1764 = vmor %vm1762, %vm1763
    %v1765 = vsel %vm1764, %v1756, %v1761
    %v1766 = vmul.f32 %v1732, %v1755
    %v1767 = vmul.f32 %v1733, %v1765
    %v1769 = vperm.slane %v1735, 0
    %v1771 = vmul.f32 %v1766, %v1769
    %v1772 = vmul.f32 %v1767, %v1769
    %v1773 = vpack.c.bf16 %v1772, %v1771
    %s1774 = scalar_lea.vmem %s5, 640
    %v1775 = vld [vmem:[%s1774] sm:$0xff]
    %v1776 = vld [vmem:[%s1774 + $0x8] sm:$0xff]
    %v1777 = vld [vmem:[%s1774 + $0x10] sm:$0xff]
    %v1778 = vld [vmem:[%s1774 + $0x18] sm:$0xff]
    %v1779 = vld [vmem:[%s1774 + $0x20] sm:$0xff]
    %v1780 = vld [vmem:[%s1774 + $0x28] sm:$0xff]
    %v1781 = vld [vmem:[%s1774 + $0x30] sm:$0xff]
    %v1782 = vld [vmem:[%s1774 + $0x38] sm:$0xff]
    %v1783 = vld [vmem:[%s1774 + $0x40] sm:$0xff]
    %v1784 = vld [vmem:[%s1774 + $0x48] sm:$0xff]
    %v1785 = vld [vmem:[%s1774 + $0x50] sm:$0xff]
    %v1786 = vld [vmem:[%s1774 + $0x58] sm:$0xff]
    %v1787 = vld [vmem:[%s1774 + $0x60] sm:$0xff]
    %v1788 = vld [vmem:[%s1774 + $0x68] sm:$0xff]
    %v1789 = vld [vmem:[%s1774 + $0x70] sm:$0xff]
    %v1790 = vld [vmem:[%s1774 + $0x78] sm:$0xff]
    %v1791 = vld [vmem:[%s1774 + $0x80] sm:$0xff]
    %v1792 = vld [vmem:[%s1774 + $0x88] sm:$0xff]
    %v1793 = vld [vmem:[%s1774 + $0x90] sm:$0xff]
    %v1794 = vld [vmem:[%s1774 + $0x98] sm:$0xff]
    %v1795 = vld [vmem:[%s1774 + $0xa0] sm:$0xff]
    %v1796 = vld [vmem:[%s1774 + $0xa8] sm:$0xff]
    %v1797 = vld [vmem:[%s1774 + $0xb0] sm:$0xff]
    %v1798 = vld [vmem:[%s1774 + $0xb8] sm:$0xff]
    %v1799 = vld [vmem:[%s1774 + $0xc0] sm:$0xff]
    %v1800 = vld [vmem:[%s1774 + $0xc8] sm:$0xff]
    %v1801 = vld [vmem:[%s1774 + $0xd0] sm:$0xff]
    %v1802 = vld [vmem:[%s1774 + $0xd8] sm:$0xff]
    %v1803 = vld [vmem:[%s1774 + $0xe0] sm:$0xff]
    %v1804 = vld [vmem:[%s1774 + $0xe8] sm:$0xff]
    %v1805 = vld [vmem:[%s1774 + $0xf0] sm:$0xff]
    %v1806 = vld [vmem:[%s1774 + $0xf8] sm:$0xff]
    %v1807 = vld [vmem:[%s1774 + $0x100] sm:$0xff]
    %v1808 = vld [vmem:[%s1774 + $0x108] sm:$0xff]
    %v1809 = vld [vmem:[%s1774 + $0x110] sm:$0xff]
    %v1810 = vld [vmem:[%s1774 + $0x118] sm:$0xff]
    %v1811 = vld [vmem:[%s1774 + $0x120] sm:$0xff]
    %v1812 = vld [vmem:[%s1774 + $0x128] sm:$0xff]
    %v1813 = vld [vmem:[%s1774 + $0x130] sm:$0xff]
    %v1814 = vld [vmem:[%s1774 + $0x138] sm:$0xff]
    %v1815 = vld [vmem:[%s1774 + $0x140] sm:$0xff]
    %v1816 = vld [vmem:[%s1774 + $0x148] sm:$0xff]
    %v1817 = vld [vmem:[%s1774 + $0x150] sm:$0xff]
    %v1818 = vld [vmem:[%s1774 + $0x158] sm:$0xff]
    %v1819 = vld [vmem:[%s1774 + $0x160] sm:$0xff]
    %v1820 = vld [vmem:[%s1774 + $0x168] sm:$0xff]
    %v1821 = vld [vmem:[%s1774 + $0x170] sm:$0xff]
    %v1822 = vld [vmem:[%s1774 + $0x178] sm:$0xff]
    %v1823 = vld [vmem:[%s1774 + $0x180] sm:$0xff]
    %v1824 = vld [vmem:[%s1774 + $0x188] sm:$0xff]
    %v1825 = vld [vmem:[%s1774 + $0x190] sm:$0xff]
    %v1826 = vld [vmem:[%s1774 + $0x198] sm:$0xff]
    %v1827 = vld [vmem:[%s1774 + $0x1a0] sm:$0xff]
    %v1828 = vld [vmem:[%s1774 + $0x1a8] sm:$0xff]
    %v1829 = vld [vmem:[%s1774 + $0x1b0] sm:$0xff]
    %v1830 = vld [vmem:[%s1774 + $0x1b8] sm:$0xff]
    %v1831 = vld [vmem:[%s1774 + $0x1c0] sm:$0xff]
    %v1832 = vld [vmem:[%s1774 + $0x1c8] sm:$0xff]
    %v1833 = vld [vmem:[%s1774 + $0x1d0] sm:$0xff]
    %v1834 = vld [vmem:[%s1774 + $0x1d8] sm:$0xff]
    %v1835 = vld [vmem:[%s1774 + $0x1e0] sm:$0xff]
    %v1836 = vld [vmem:[%s1774 + $0x1e8] sm:$0xff]
    %v1837 = vld [vmem:[%s1774 + $0x1f0] sm:$0xff]
    %v1838 = vld [vmem:[%s1774 + $0x1f8] sm:$0xff]
    %v1839 = vld [vmem:[%s1774 + $0x200] sm:$0xff]
    %v1840 = vld [vmem:[%s1774 + $0x208] sm:$0xff]
    %v1841 = vld [vmem:[%s1774 + $0x210] sm:$0xff]
    %v1842 = vld [vmem:[%s1774 + $0x218] sm:$0xff]
    %v1843 = vld [vmem:[%s1774 + $0x220] sm:$0xff]
    %v1844 = vld [vmem:[%s1774 + $0x228] sm:$0xff]
    %v1845 = vld [vmem:[%s1774 + $0x230] sm:$0xff]
    %v1846 = vld [vmem:[%s1774 + $0x238] sm:$0xff]
    %v1847 = vld [vmem:[%s1774 + $0x240] sm:$0xff]
    %v1848 = vld [vmem:[%s1774 + $0x248] sm:$0xff]
    %v1849 = vld [vmem:[%s1774 + $0x250] sm:$0xff]
    %v1850 = vld [vmem:[%s1774 + $0x258] sm:$0xff]
    %v1851 = vld [vmem:[%s1774 + $0x260] sm:$0xff]
    %v1852 = vld [vmem:[%s1774 + $0x268] sm:$0xff]
    %v1853 = vld [vmem:[%s1774 + $0x270] sm:$0xff]
    %v1854 = vld [vmem:[%s1774 + $0x278] sm:$0xff]
    %v1935 = vunpack.c.l.b16 %v1775
    %v1936 = vunpack.c.h.b16 %v1775
    %v1937 = vunpack.c.l.b16 %v1776
    %v1938 = vunpack.c.h.b16 %v1776
    %v1939 = vunpack.c.l.b16 %v1777
    %v1940 = vunpack.c.h.b16 %v1777
    %v1941 = vunpack.c.l.b16 %v1778
    %v1942 = vunpack.c.h.b16 %v1778
    %v1943 = vunpack.c.l.b16 %v1779
    %v1944 = vunpack.c.h.b16 %v1779
    %v1945 = vunpack.c.l.b16 %v1780
    %v1946 = vunpack.c.h.b16 %v1780
    %v1947 = vunpack.c.l.b16 %v1781
    %v1948 = vunpack.c.h.b16 %v1781
    %v1949 = vunpack.c.l.b16 %v1782
    %v1950 = vunpack.c.h.b16 %v1782
    %v1951 = vunpack.c.l.b16 %v1783
    %v1952 = vunpack.c.h.b16 %v1783
    %v1953 = vunpack.c.l.b16 %v1784
    %v1954 = vunpack.c.h.b16 %v1784
    %v1955 = vunpack.c.l.b16 %v1785
    %v1956 = vunpack.c.h.b16 %v1785
    %v1957 = vunpack.c.l.b16 %v1786
    %v1958 = vunpack.c.h.b16 %v1786
    %v1959 = vunpack.c.l.b16 %v1787
    %v1960 = vunpack.c.h.b16 %v1787
    %v1961 = vunpack.c.l.b16 %v1788
    %v1962 = vunpack.c.h.b16 %v1788
    %v1963 = vunpack.c.l.b16 %v1789
    %v1964 = vunpack.c.h.b16 %v1789
    %v1965 = vunpack.c.l.b16 %v1790
    %v1966 = vunpack.c.h.b16 %v1790
    %v1967 = vunpack.c.l.b16 %v1791
    %v1968 = vunpack.c.h.b16 %v1791
    %v1969 = vunpack.c.l.b16 %v1792
    %v1970 = vunpack.c.h.b16 %v1792
    %v1971 = vunpack.c.l.b16 %v1793
    %v1972 = vunpack.c.h.b16 %v1793
    %v1973 = vunpack.c.l.b16 %v1794
    %v1974 = vunpack.c.h.b16 %v1794
    %v1975 = vunpack.c.l.b16 %v1795
    %v1976 = vunpack.c.h.b16 %v1795
    %v1977 = vunpack.c.l.b16 %v1796
    %v1978 = vunpack.c.h.b16 %v1796
    %v1979 = vunpack.c.l.b16 %v1797
    %v1980 = vunpack.c.h.b16 %v1797
    %v1981 = vunpack.c.l.b16 %v1798
    %v1982 = vunpack.c.h.b16 %v1798
    %v1983 = vunpack.c.l.b16 %v1799
    %v1984 = vunpack.c.h.b16 %v1799
    %v1985 = vunpack.c.l.b16 %v1800
    %v1986 = vunpack.c.h.b16 %v1800
    %v1987 = vunpack.c.l.b16 %v1801
    %v1988 = vunpack.c.h.b16 %v1801
    %v1989 = vunpack.c.l.b16 %v1802
    %v1990 = vunpack.c.h.b16 %v1802
    %v1991 = vunpack.c.l.b16 %v1803
    %v1992 = vunpack.c.h.b16 %v1803
    %v1993 = vunpack.c.l.b16 %v1804
    %v1994 = vunpack.c.h.b16 %v1804
    %v1995 = vunpack.c.l.b16 %v1805
    %v1996 = vunpack.c.h.b16 %v1805
    %v1997 = vunpack.c.l.b16 %v1806
    %v1998 = vunpack.c.h.b16 %v1806
    %v1999 = vunpack.c.l.b16 %v1807
    %v2000 = vunpack.c.h.b16 %v1807
    %v2001 = vunpack.c.l.b16 %v1808
    %v2002 = vunpack.c.h.b16 %v1808
    %v2003 = vunpack.c.l.b16 %v1809
    %v2004 = vunpack.c.h.b16 %v1809
    %v2005 = vunpack.c.l.b16 %v1810
    %v2006 = vunpack.c.h.b16 %v1810
    %v2007 = vunpack.c.l.b16 %v1811
    %v2008 = vunpack.c.h.b16 %v1811
    %v2009 = vunpack.c.l.b16 %v1812
    %v2010 = vunpack.c.h.b16 %v1812
    %v2011 = vunpack.c.l.b16 %v1813
    %v2012 = vunpack.c.h.b16 %v1813
    %v2013 = vunpack.c.l.b16 %v1814
    %v2014 = vunpack.c.h.b16 %v1814
    %v2015 = vunpack.c.l.b16 %v1815
    %v2016 = vunpack.c.h.b16 %v1815
    %v2017 = vunpack.c.l.b16 %v1816
    %v2018 = vunpack.c.h.b16 %v1816
    %v2019 = vunpack.c.l.b16 %v1817
    %v2020 = vunpack.c.h.b16 %v1817
    %v2021 = vunpack.c.l.b16 %v1818
    %v2022 = vunpack.c.h.b16 %v1818
    %v2023 = vunpack.c.l.b16 %v1819
    %v2024 = vunpack.c.h.b16 %v1819
    %v2025 = vunpack.c.l.b16 %v1820
    %v2026 = vunpack.c.h.b16 %v1820
    %v2027 = vunpack.c.l.b16 %v1821
    %v2028 = vunpack.c.h.b16 %v1821
    %v2029 = vunpack.c.l.b16 %v1822
    %v2030 = vunpack.c.h.b16 %v1822
    %v2031 = vunpack.c.l.b16 %v1823
    %v2032 = vunpack.c.h.b16 %v1823
    %v2033 = vunpack.c.l.b16 %v1824
    %v2034 = vunpack.c.h.b16 %v1824
    %v2035 = vunpack.c.l.b16 %v1825
    %v2036 = vunpack.c.h.b16 %v1825
    %v2037 = vunpack.c.l.b16 %v1826
    %v2038 = vunpack.c.h.b16 %v1826
    %v2039 = vunpack.c.l.b16 %v1827
    %v2040 = vunpack.c.h.b16 %v1827
    %v2041 = vunpack.c.l.b16 %v1828
    %v2042 = vunpack.c.h.b16 %v1828
    %v2043 = vunpack.c.l.b16 %v1829
    %v2044 = vunpack.c.h.b16 %v1829
    %v2045 = vunpack.c.l.b16 %v1830
    %v2046 = vunpack.c.h.b16 %v1830
    %v2047 = vunpack.c.l.b16 %v1831
    %v2048 = vunpack.c.h.b16 %v1831
    %v2049 = vunpack.c.l.b16 %v1832
    %v2050 = vunpack.c.h.b16 %v1832
    %v2051 = vunpack.c.l.b16 %v1833
    %v2052 = vunpack.c.h.b16 %v1833
    %v2053 = vunpack.c.l.b16 %v1834
    %v2054 = vunpack.c.h.b16 %v1834
    %v2055 = vunpack.c.l.b16 %v1835
    %v2056 = vunpack.c.h.b16 %v1835
    %v2057 = vunpack.c.l.b16 %v1836
    %v2058 = vunpack.c.h.b16 %v1836
    %v2059 = vunpack.c.l.b16 %v1837
    %v2060 = vunpack.c.h.b16 %v1837
    %v2061 = vunpack.c.l.b16 %v1838
    %v2062 = vunpack.c.h.b16 %v1838
    %v2063 = vunpack.c.l.b16 %v1839
    %v2064 = vunpack.c.h.b16 %v1839
    %v2065 = vunpack.c.l.b16 %v1840
    %v2066 = vunpack.c.h.b16 %v1840
    %v2067 = vunpack.c.l.b16 %v1841
    %v2068 = vunpack.c.h.b16 %v1841
    %v2069 = vunpack.c.l.b16 %v1842
    %v2070 = vunpack.c.h.b16 %v1842
    %v2071 = vunpack.c.l.b16 %v1843
    %v2072 = vunpack.c.h.b16 %v1843
    %v2073 = vunpack.c.l.b16 %v1844
    %v2074 = vunpack.c.h.b16 %v1844
    %v2075 = vunpack.c.l.b16 %v1845
    %v2076 = vunpack.c.h.b16 %v1845
    %v2077 = vunpack.c.l.b16 %v1846
    %v2078 = vunpack.c.h.b16 %v1846
    %v2079 = vunpack.c.l.b16 %v1847
    %v2080 = vunpack.c.h.b16 %v1847
    %v2081 = vunpack.c.l.b16 %v1848
    %v2082 = vunpack.c.h.b16 %v1848
    %v2083 = vunpack.c.l.b16 %v1849
    %v2084 = vunpack.c.h.b16 %v1849
    %v2085 = vunpack.c.l.b16 %v1850
    %v2086 = vunpack.c.h.b16 %v1850
    %v2087 = vunpack.c.l.b16 %v1851
    %v2088 = vunpack.c.h.b16 %v1851
    %v2089 = vunpack.c.l.b16 %v1852
    %v2090 = vunpack.c.h.b16 %v1852
    %v2091 = vunpack.c.l.b16 %v1853
    %v2092 = vunpack.c.h.b16 %v1853
    %v2093 = vunpack.c.l.b16 %v1854
    %v2094 = vunpack.c.h.b16 %v1854
    %v2095 = vpack.c.b16 %v1945, %v1935
    %v2096 = vpack.c.b16 %v1946, %v1936
    %v2097 = vpack.c.b16 %v1947, %v1937
    %v2098 = vpack.c.b16 %v1948, %v1938
    %v2099 = vpack.c.b16 %v1949, %v1939
    %v2100 = vpack.c.b16 %v1950, %v1940
    %v2101 = vpack.c.b16 %v1951, %v1941
    %v2102 = vpack.c.b16 %v1952, %v1942
    %v2103 = vpack.c.b16 %v1953, %v1943
    %v2104 = vpack.c.b16 %v1954, %v1944
    %v2105 = vpack.c.b16 %v1965, %v1955
    %v2106 = vpack.c.b16 %v1966, %v1956
    %v2107 = vpack.c.b16 %v1967, %v1957
    %v2108 = vpack.c.b16 %v1968, %v1958
    %v2109 = vpack.c.b16 %v1969, %v1959
    %v2110 = vpack.c.b16 %v1970, %v1960
    %v2111 = vpack.c.b16 %v1971, %v1961
    %v2112 = vpack.c.b16 %v1972, %v1962
    %v2113 = vpack.c.b16 %v1973, %v1963
    %v2114 = vpack.c.b16 %v1974, %v1964
    %v2115 = vpack.c.b16 %v1985, %v1975
    %v2116 = vpack.c.b16 %v1986, %v1976
    %v2117 = vpack.c.b16 %v1987, %v1977
    %v2118 = vpack.c.b16 %v1988, %v1978
    %v2119 = vpack.c.b16 %v1989, %v1979
    %v2120 = vpack.c.b16 %v1990, %v1980
    %v2121 = vpack.c.b16 %v1991, %v1981
    %v2122 = vpack.c.b16 %v1992, %v1982
    %v2123 = vpack.c.b16 %v1993, %v1983
    %v2124 = vpack.c.b16 %v1994, %v1984
    %v2125 = vpack.c.b16 %v2005, %v1995
    %v2126 = vpack.c.b16 %v2006, %v1996
    %v2127 = vpack.c.b16 %v2007, %v1997
    %v2128 = vpack.c.b16 %v2008, %v1998
    %v2129 = vpack.c.b16 %v2009, %v1999
    %v2130 = vpack.c.b16 %v2010, %v2000
    %v2131 = vpack.c.b16 %v2011, %v2001
    %v2132 = vpack.c.b16 %v2012, %v2002
    %v2133 = vpack.c.b16 %v2013, %v2003
    %v2134 = vpack.c.b16 %v2014, %v2004
    %v2135 = vpack.c.b16 %v2025, %v2015
    %v2136 = vpack.c.b16 %v2026, %v2016
    %v2137 = vpack.c.b16 %v2027, %v2017
    %v2138 = vpack.c.b16 %v2028, %v2018
    %v2139 = vpack.c.b16 %v2029, %v2019
    %v2140 = vpack.c.b16 %v2030, %v2020
    %v2141 = vpack.c.b16 %v2031, %v2021
    %v2142 = vpack.c.b16 %v2032, %v2022
    %v2143 = vpack.c.b16 %v2033, %v2023
    %v2144 = vpack.c.b16 %v2034, %v2024
    %v2145 = vpack.c.b16 %v2045, %v2035
    %v2146 = vpack.c.b16 %v2046, %v2036
    %v2147 = vpack.c.b16 %v2047, %v2037
    %v2148 = vpack.c.b16 %v2048, %v2038
    %v2149 = vpack.c.b16 %v2049, %v2039
    %v2150 = vpack.c.b16 %v2050, %v2040
    %v2151 = vpack.c.b16 %v2051, %v2041
    %v2152 = vpack.c.b16 %v2052, %v2042
    %v2153 = vpack.c.b16 %v2053, %v2043
    %v2154 = vpack.c.b16 %v2054, %v2044
    %v2155 = vpack.c.b16 %v2065, %v2055
    %v2156 = vpack.c.b16 %v2066, %v2056
    %v2157 = vpack.c.b16 %v2067, %v2057
    %v2158 = vpack.c.b16 %v2068, %v2058
    %v2159 = vpack.c.b16 %v2069, %v2059
    %v2160 = vpack.c.b16 %v2070, %v2060
    %v2161 = vpack.c.b16 %v2071, %v2061
    %v2162 = vpack.c.b16 %v2072, %v2062
    %v2163 = vpack.c.b16 %v2073, %v2063
    %v2164 = vpack.c.b16 %v2074, %v2064
    %v2165 = vpack.c.b16 %v2085, %v2075
    %v2166 = vpack.c.b16 %v2086, %v2076
    %v2167 = vpack.c.b16 %v2087, %v2077
    %v2168 = vpack.c.b16 %v2088, %v2078
    %v2169 = vpack.c.b16 %v2089, %v2079
    %v2170 = vpack.c.b16 %v2090, %v2080
    %v2171 = vpack.c.b16 %v2091, %v2081
    %v2172 = vpack.c.b16 %v2092, %v2082
    %v2173 = vpack.c.b16 %v2093, %v2083
    %v2174 = vpack.c.b16 %v2094, %v2084
    %2255 = vmatpush.bf16.msra.mxu0 %v2165
    %2256 = vmatpush.bf16.msra.mxu0 %v2155
    %2257 = vmatpush.bf16.msra.mxu0 %v2145
    %2258 = vmatpush.bf16.msra.mxu0 %v2135
    %2259 = vmatpush.bf16.msra.mxu0 %v2125
    %2260 = vmatpush.bf16.msra.mxu0 %v2115
    %2261 = vmatpush.bf16.msra.mxu0 %v2105
    %2262 = vmatpush.bf16.msra.mxu0 %v2095
    %2263 = vmatmul.bf16.gmra.mxu0 %v1773
    %v2264 = vpop.f32.mrf.mxu0
    %v2265 = vadd.f32 0.0, %v2264
    %v2266 = vpop.f32.mrf.mxu0
    %v2267 = vadd.f32 0.0, %v2266
    %2268 = vdwg.mxu0
    %2269 = vmatpush.bf16.msra.mxu0 %v2166
    %2270 = vmatpush.bf16.msra.mxu0 %v2156
    %2271 = vmatpush.bf16.msra.mxu0 %v2146
    %2272 = vmatpush.bf16.msra.mxu0 %v2136
    %2273 = vmatpush.bf16.msra.mxu0 %v2126
    %2274 = vmatpush.bf16.msra.mxu0 %v2116
    %2275 = vmatpush.bf16.msra.mxu0 %v2106
    %2276 = vmatpush.bf16.msra.mxu0 %v2096
    %2277 = vmatmul.bf16.gmra.mxu0 %v1773
    %v2278 = vpop.f32.mrf.mxu0
    %v2279 = vadd.f32 0.0, %v2278
    %v2280 = vpop.f32.mrf.mxu0
    %v2281 = vadd.f32 0.0, %v2280
    %2282 = vdwg.mxu0
    %2283 = vmatpush.bf16.msra.mxu0 %v2167
    %2284 = vmatpush.bf16.msra.mxu0 %v2157
    %2285 = vmatpush.bf16.msra.mxu0 %v2147
    %2286 = vmatpush.bf16.msra.mxu0 %v2137
    %2287 = vmatpush.bf16.msra.mxu0 %v2127
    %2288 = vmatpush.bf16.msra.mxu0 %v2117
    %2289 = vmatpush.bf16.msra.mxu0 %v2107
    %2290 = vmatpush.bf16.msra.mxu0 %v2097
    %2291 = vmatmul.bf16.gmra.mxu0 %v1773
    %v2292 = vpop.f32.mrf.mxu0
    %v2293 = vadd.f32 0.0, %v2292
    %v2294 = vpop.f32.mrf.mxu0
    %v2295 = vadd.f32 0.0, %v2294
    %2296 = vdwg.mxu0
    %2297 = vmatpush.bf16.msra.mxu0 %v2168
    %2298 = vmatpush.bf16.msra.mxu0 %v2158
    %2299 = vmatpush.bf16.msra.mxu0 %v2148
    %2300 = vmatpush.bf16.msra.mxu0 %v2138
    %2301 = vmatpush.bf16.msra.mxu0 %v2128
    %2302 = vmatpush.bf16.msra.mxu0 %v2118
    %2303 = vmatpush.bf16.msra.mxu0 %v2108
    %2304 = vmatpush.bf16.msra.mxu0 %v2098
    %2305 = vmatmul.bf16.gmra.mxu0 %v1773
    %v2306 = vpop.f32.mrf.mxu0
    %v2307 = vadd.f32 0.0, %v2306
    %v2308 = vpop.f32.mrf.mxu0
    %v2309 = vadd.f32 0.0, %v2308
    %2310 = vdwg.mxu0
    %2311 = vmatpush.bf16.msra.mxu0 %v2169
    %2312 = vmatpush.bf16.msra.mxu0 %v2159
    %2313 = vmatpush.bf16.msra.mxu0 %v2149
    %2314 = vmatpush.bf16.msra.mxu0 %v2139
    %2315 = vmatpush.bf16.msra.mxu0 %v2129
    %2316 = vmatpush.bf16.msra.mxu0 %v2119
    %2317 = vmatpush.bf16.msra.mxu0 %v2109
    %2318 = vmatpush.bf16.msra.mxu0 %v2099
    %2319 = vmatmul.bf16.gmra.mxu0 %v1773
    %v2320 = vpop.f32.mrf.mxu0
    %v2321 = vadd.f32 0.0, %v2320
    %v2322 = vpop.f32.mrf.mxu0
    %v2323 = vadd.f32 0.0, %v2322
    %2324 = vdwg.mxu0
    %2325 = vmatpush.bf16.msra.mxu0 %v2170
    %2326 = vmatpush.bf16.msra.mxu0 %v2160
    %2327 = vmatpush.bf16.msra.mxu0 %v2150
    %2328 = vmatpush.bf16.msra.mxu0 %v2140
    %2329 = vmatpush.bf16.msra.mxu0 %v2130
    %2330 = vmatpush.bf16.msra.mxu0 %v2120
    %2331 = vmatpush.bf16.msra.mxu0 %v2110
    %2332 = vmatpush.bf16.msra.mxu0 %v2100
    %2333 = vmatmul.bf16.gmra.mxu0 %v1773
    %v2334 = vpop.f32.mrf.mxu0
    %v2335 = vadd.f32 0.0, %v2334
    %v2336 = vpop.f32.mrf.mxu0
    %v2337 = vadd.f32 0.0, %v2336
    %2338 = vdwg.mxu0
    %2339 = vmatpush.bf16.msra.mxu0 %v2171
    %2340 = vmatpush.bf16.msra.mxu0 %v2161
    %2341 = vmatpush.bf16.msra.mxu0 %v2151
    %2342 = vmatpush.bf16.msra.mxu0 %v2141
    %2343 = vmatpush.bf16.msra.mxu0 %v2131
    %2344 = vmatpush.bf16.msra.mxu0 %v2121
    %2345 = vmatpush.bf16.msra.mxu0 %v2111
    %2346 = vmatpush.bf16.msra.mxu0 %v2101
    %2347 = vmatmul.bf16.gmra.mxu0 %v1773
    %v2348 = vpop.f32.mrf.mxu0
    %v2349 = vadd.f32 0.0, %v2348
    %v2350 = vpop.f32.mrf.mxu0
    %v2351 = vadd.f32 0.0, %v2350
    %2352 = vdwg.mxu0
    %2353 = vmatpush.bf16.msra.mxu0 %v2172
    %2354 = vmatpush.bf16.msra.mxu0 %v2162
    %2355 = vmatpush.bf16.msra.mxu0 %v2152
    %2356 = vmatpush.bf16.msra.mxu0 %v2142
    %2357 = vmatpush.bf16.msra.mxu0 %v2132
    %2358 = vmatpush.bf16.msra.mxu0 %v2122
    %2359 = vmatpush.bf16.msra.mxu0 %v2112
    %2360 = vmatpush.bf16.msra.mxu0 %v2102
    %2361 = vmatmul.bf16.gmra.mxu0 %v1773
    %v2362 = vpop.f32.mrf.mxu0
    %v2363 = vadd.f32 0.0, %v2362
    %v2364 = vpop.f32.mrf.mxu0
    %v2365 = vadd.f32 0.0, %v2364
    %2366 = vdwg.mxu0
    %2367 = vmatpush.bf16.msra.mxu0 %v2173
    %2368 = vmatpush.bf16.msra.mxu0 %v2163
    %2369 = vmatpush.bf16.msra.mxu0 %v2153
    %2370 = vmatpush.bf16.msra.mxu0 %v2143
    %2371 = vmatpush.bf16.msra.mxu0 %v2133
    %2372 = vmatpush.bf16.msra.mxu0 %v2123
    %2373 = vmatpush.bf16.msra.mxu0 %v2113
    %2374 = vmatpush.bf16.msra.mxu0 %v2103
    %2375 = vmatmul.bf16.gmra.mxu0 %v1773
    %v2376 = vpop.f32.mrf.mxu0
    %v2377 = vadd.f32 0.0, %v2376
    %v2378 = vpop.f32.mrf.mxu0
    %v2379 = vadd.f32 0.0, %v2378
    %2380 = vdwg.mxu0
    %2381 = vmatpush.bf16.msra.mxu0 %v2174
    %2382 = vmatpush.bf16.msra.mxu0 %v2164
    %2383 = vmatpush.bf16.msra.mxu0 %v2154
    %2384 = vmatpush.bf16.msra.mxu0 %v2144
    %2385 = vmatpush.bf16.msra.mxu0 %v2134
    %2386 = vmatpush.bf16.msra.mxu0 %v2124
    %2387 = vmatpush.bf16.msra.mxu0 %v2114
    %2388 = vmatpush.bf16.msra.mxu0 %v2104
    %2389 = vmatmul.bf16.gmra.mxu0 %v1773
    %v2390 = vpop.f32.mrf.mxu0
    %v2391 = vadd.f32 0.0, %v2390
    %v2392 = vpop.f32.mrf.mxu0
    %v2393 = vadd.f32 0.0, %v2392
    %2394 = vdwg.mxu0
    %v2395 = vmul.f32 %v2265, %v44
    %v2396 = vmul.f32 %v2279, %v45
    %v2397 = vmul.f32 %v2267, %v46
    %v2398 = vmul.f32 %v2281, %v47
    %v2399 = vmul.f32 %v2293, %v48
    %v2400 = vmul.f32 %v2307, %v49
    %v2401 = vmul.f32 %v2295, %v50
    %v2402 = vmul.f32 %v2309, %v51
    %v2403 = vadd.f32 %v2395, %v2399
    %v2404 = vadd.f32 %v2396, %v2400
    %v2405 = vadd.f32 %v2397, %v2401
    %v2406 = vadd.f32 %v2398, %v2402
    %v2407 = vmul.f32 %v2321, %v44
    %v2408 = vmul.f32 %v2335, %v45
    %v2409 = vmul.f32 %v2323, %v46
    %v2410 = vmul.f32 %v2337, %v47
    %v2411 = vmul.f32 %v2349, %v48
    %v2412 = vmul.f32 %v2363, %v49
    %v2413 = vmul.f32 %v2351, %v50
    %v2414 = vmul.f32 %v2365, %v51
    %v2415 = vadd.f32 %v2407, %v2411
    %v2416 = vadd.f32 %v2408, %v2412
    %v2417 = vadd.f32 %v2409, %v2413
    %v2418 = vadd.f32 %v2410, %v2414
    %2419 = vmatpush.xpose.msra.mxu0 0.0
    %2420 = vmatpush.xpose.msra.mxu0 0.0
    %2421 = vmatpush.xpose.msra.mxu0 0.0
    %2422 = vmatpush.xpose.msra.mxu0 0.0
    %2423 = vmatpush.xpose.msra.mxu0 0.0
    %2424 = vmatpush.xpose.msra.mxu0 0.0
    %2425 = vmatpush.xpose.msra.mxu0 0.0
    %2426 = vmatpush.xpose.msra.mxu0 0.0
    %2427 = vmatpush.xpose.msra.mxu0 0.0
    %2428 = vmatpush.xpose.msra.mxu0 0.0
    %2429 = vmatpush.xpose.msra.mxu0 0.0
    %2430 = vmatpush.xpose.msra.mxu0 0.0
    %2431 = vmatpush.xpose.msra.mxu0 0.0
    %2432 = vmatpush.xpose.msra.mxu0 0.0
    %2433 = vmatpush.xpose.msra.mxu0 %v2417
    %2434 = vmatpush.xpose.msra.mxu0 %v2415
    %2435 = vmatmul.f32.gmra.mxu0 %v2403
    %v2436 = vpop.f32.mrf.mxu0
    %v2437 = vadd.f32 %v52, %v2436
    %2438 = vmatmul.f32.gmra.mxu0 %v2405
    %v2439 = vpop.f32.mrf.mxu0
    %v2440 = vadd.f32 %v53, %v2439
    %2441 = vdwg.mxu0
    %v2442 = vsel %vm767, %v2437, -inf
    %2443 = vmax.xlane.f32.xlu0 %v2442
    %v2444 = vpop.xlane.xlu0 %2443
    %v2445 = vsel %vm767, %v2440, -inf
    %2446 = vmax.xlane.f32.xlu0 %v2445
    %v2447 = vpop.xlane.xlu0 %2446
    %v2448 = vsub.f32 %v2437, %v2444
    %v2449 = vsub.f32 %v2440, %v2447
    %v2450 = vmul.f32 %v2448, 1.442695
    %v2451 = vpow.pop %v2450
    %v2452 = vmul.f32 %v2449, 1.442695
    %v2453 = vpow.pop %v2452
    %v2454 = vsel %vm767, %v2451, 0.0
    %2455 = vadd.xlane.f32.xlu0 %v2454
    %v2456 = vpop.xlane.xlu0 %2455
    %v2457 = vsel %vm767, %v2453, 0.0
    %2458 = vadd.xlane.f32.xlu0 %v2457
    %v2459 = vpop.xlane.xlu0 %2458
    %v2460 = vrcp.pop %v2456
    %v2461 = vrcp.pop %v2459
    %v2462 = vmul.f32 %v2451, %v2460
    %v2463 = vmul.f32 %v2453, %v2461
    %v2465 = vsel %vm767, %v2462, 0
    %v2468 = vsel %vm767, %v2463, 0
    %2470 = vmatpush.msra.mxu0 0.0
    %2471 = vmatpush.msra.mxu0 0.0
    %2472 = vmatpush.msra.mxu0 0.0
    %2473 = vmatpush.msra.mxu0 0.0
    %2474 = vmatpush.msra.mxu0 0.0
    %2475 = vmatpush.msra.mxu0 0.0
    %2476 = vmatpush.msra.mxu0 0.0
    %2477 = vmatpush.msra.mxu0 0.0
    %2478 = vmatpush.msra.mxu0 0.0
    %2479 = vmatpush.msra.mxu0 0.0
    %2480 = vmatpush.msra.mxu0 0.0
    %2481 = vmatpush.msra.mxu0 0.0
    %2482 = vmatpush.msra.mxu0 0.0
    %2483 = vmatpush.msra.mxu0 0.0
    %2484 = vmatpush.msra.mxu0 %v2379
    %2485 = vmatpush.msra.mxu0 %v2377
    %2486 = vmatmul.f32.gmra.mxu0 %v2465
    %v2487 = vpop.f32.mrf.mxu0
    %v2488 = vadd.f32 0.0, %v2487
    %2489 = vmatmul.f32.gmra.mxu0 %v2468
    %v2490 = vpop.f32.mrf.mxu0
    %v2491 = vadd.f32 0.0, %v2490
    %2492 = vdwg.mxu0
    %v2493 = vpack.c.bf16 %v2491, %v2488
    %s2494 = scalar_lea.vmem %s6, 128
    %v2495 = vld [vmem:[%s2494] sm:$0xf]
    %v2496 = vld [vmem:[%s2494 + $0x4] sm:$0xf]
    %v2497 = vld [vmem:[%s2494 + $0x8] sm:$0xf]
    %v2498 = vld [vmem:[%s2494 + $0xc] sm:$0xf]
    %v2499 = vld [vmem:[%s2494 + $0x10] sm:$0xf]
    %v2500 = vld [vmem:[%s2494 + $0x14] sm:$0xf]
    %v2501 = vld [vmem:[%s2494 + $0x18] sm:$0xf]
    %v2502 = vld [vmem:[%s2494 + $0x1c] sm:$0xf]
    %v2503 = vld [vmem:[%s2494 + $0x20] sm:$0xf]
    %v2504 = vld [vmem:[%s2494 + $0x24] sm:$0xf]
    %v2505 = vld [vmem:[%s2494 + $0x28] sm:$0xf]
    %v2506 = vld [vmem:[%s2494 + $0x2c] sm:$0xf]
    %v2507 = vld [vmem:[%s2494 + $0x30] sm:$0xf]
    %v2508 = vld [vmem:[%s2494 + $0x34] sm:$0xf]
    %v2509 = vld [vmem:[%s2494 + $0x38] sm:$0xf]
    %v2510 = vld [vmem:[%s2494 + $0x3c] sm:$0xf]
    %2511 = vmatpush.xpose.msra.mxu0 0.0
    %2512 = vmatpush.xpose.msra.mxu0 0.0
    %2513 = vmatpush.xpose.msra.mxu0 0.0
    %2514 = vmatpush.xpose.msra.mxu0 0.0
    %2515 = vmatpush.xpose.msra.mxu0 0.0
    %2516 = vmatpush.xpose.msra.mxu0 0.0
    %2517 = vmatpush.xpose.msra.mxu0 0.0
    %2518 = vmatpush.xpose.msra.mxu0 0.0
    %2519 = vmatpush.xpose.msra.mxu0 0.0
    %2520 = vmatpush.xpose.msra.mxu0 0.0
    %2521 = vmatpush.xpose.msra.mxu0 0.0
    %2522 = vmatpush.xpose.msra.mxu0 0.0
    %2523 = vmatpush.xpose.msra.mxu0 0.0
    %2524 = vmatpush.xpose.msra.mxu0 0.0
    %2525 = vmatpush.xpose.msra.mxu0 %v2418
    %2526 = vmatpush.xpose.msra.mxu0 %v2416
    %2527 = vmatmul.f32.gmra.mxu0 %v2404
    %v2528 = vpop.f32.mrf.mxu0
    %v2529 = vadd.f32 %v52, %v2528
    %2530 = vmatmul.f32.gmra.mxu0 %v2406
    %v2531 = vpop.f32.mrf.mxu0
    %v2532 = vadd.f32 %v53, %v2531
    %2533 = vdwg.mxu0
    %v2534 = vsel %vm767, %v2529, -inf
    %2535 = vmax.xlane.f32.xlu0 %v2534
    %v2536 = vpop.xlane.xlu0 %2535
    %v2537 = vsel %vm767, %v2532, -inf
    %2538 = vmax.xlane.f32.xlu0 %v2537
    %v2539 = vpop.xlane.xlu0 %2538
    %v2540 = vsub.f32 %v2529, %v2536
    %v2541 = vsub.f32 %v2532, %v2539
    %v2542 = vmul.f32 %v2540, 1.442695
    %v2543 = vpow.pop %v2542
    %v2544 = vmul.f32 %v2541, 1.442695
    %v2545 = vpow.pop %v2544
    %v2546 = vsel %vm767, %v2543, 0.0
    %2547 = vadd.xlane.f32.xlu0 %v2546
    %v2548 = vpop.xlane.xlu0 %2547
    %v2549 = vsel %vm767, %v2545, 0.0
    %2550 = vadd.xlane.f32.xlu0 %v2549
    %v2551 = vpop.xlane.xlu0 %2550
    %v2552 = vrcp.pop %v2548
    %v2553 = vrcp.pop %v2551
    %v2554 = vmul.f32 %v2543, %v2552
    %v2555 = vmul.f32 %v2545, %v2553
    %v2557 = vsel %vm767, %v2554, 0
    %v2560 = vsel %vm767, %v2555, 0
    %2562 = vmatpush.msra.mxu0 0.0
    %2563 = vmatpush.msra.mxu0 0.0
    %2564 = vmatpush.msra.mxu0 0.0
    %2565 = vmatpush.msra.mxu0 0.0
    %2566 = vmatpush.msra.mxu0 0.0
    %2567 = vmatpush.msra.mxu0 0.0
    %2568 = vmatpush.msra.mxu0 0.0
    %2569 = vmatpush.msra.mxu0 0.0
    %2570 = vmatpush.msra.mxu0 0.0
    %2571 = vmatpush.msra.mxu0 0.0
    %2572 = vmatpush.msra.mxu0 0.0
    %2573 = vmatpush.msra.mxu0 0.0
    %2574 = vmatpush.msra.mxu0 0.0
    %2575 = vmatpush.msra.mxu0 0.0
    %2576 = vmatpush.msra.mxu0 %v2393
    %2577 = vmatpush.msra.mxu0 %v2391
    %2578 = vmatmul.f32.gmra.mxu0 %v2557
    %v2579 = vpop.f32.mrf.mxu0
    %v2580 = vadd.f32 0.0, %v2579
    %2581 = vmatmul.f32.gmra.mxu0 %v2560
    %v2582 = vpop.f32.mrf.mxu0
    %v2583 = vadd.f32 0.0, %v2582
    %2584 = vdwg.mxu0
    %v2585 = vpack.c.bf16 %v2583, %v2580
    %s2586 = scalar_lea.vmem %s6, 192
    %v2587 = vld [vmem:[%s2586] sm:$0xf]
    %v2588 = vld [vmem:[%s2586 + $0x4] sm:$0xf]
    %v2589 = vld [vmem:[%s2586 + $0x8] sm:$0xf]
    %v2590 = vld [vmem:[%s2586 + $0xc] sm:$0xf]
    %v2591 = vld [vmem:[%s2586 + $0x10] sm:$0xf]
    %v2592 = vld [vmem:[%s2586 + $0x14] sm:$0xf]
    %v2593 = vld [vmem:[%s2586 + $0x18] sm:$0xf]
    %v2594 = vld [vmem:[%s2586 + $0x1c] sm:$0xf]
    %v2595 = vld [vmem:[%s2586 + $0x20] sm:$0xf]
    %v2596 = vld [vmem:[%s2586 + $0x24] sm:$0xf]
    %v2597 = vld [vmem:[%s2586 + $0x28] sm:$0xf]
    %v2598 = vld [vmem:[%s2586 + $0x2c] sm:$0xf]
    %v2599 = vld [vmem:[%s2586 + $0x30] sm:$0xf]
    %v2600 = vld [vmem:[%s2586 + $0x34] sm:$0xf]
    %v2601 = vld [vmem:[%s2586 + $0x38] sm:$0xf]
    %v2602 = vld [vmem:[%s2586 + $0x3c] sm:$0xf]
    %v2619 = vunpack.c.l.b16 %v2587
    %v2620 = vunpack.c.l.b16 %v2588
    %v2621 = vunpack.c.l.b16 %v2589
    %v2622 = vunpack.c.l.b16 %v2590
    %v2623 = vunpack.c.l.b16 %v2591
    %v2624 = vunpack.c.l.b16 %v2592
    %v2625 = vunpack.c.l.b16 %v2593
    %v2626 = vunpack.c.l.b16 %v2594
    %v2627 = vunpack.c.l.b16 %v2595
    %v2628 = vunpack.c.l.b16 %v2596
    %v2629 = vunpack.c.l.b16 %v2597
    %v2630 = vunpack.c.l.b16 %v2598
    %v2631 = vunpack.c.l.b16 %v2599
    %v2632 = vunpack.c.l.b16 %v2600
    %v2633 = vunpack.c.l.b16 %v2601
    %v2634 = vunpack.c.l.b16 %v2602
    %v2635 = vpack.c.b16 %v2620, %v2619
    %v2636 = vpack.c.b16 %v2622, %v2621
    %v2637 = vpack.c.b16 %v2624, %v2623
    %v2638 = vpack.c.b16 %v2626, %v2625
    %v2639 = vpack.c.b16 %v2628, %v2627
    %v2640 = vpack.c.b16 %v2630, %v2629
    %v2641 = vpack.c.b16 %v2632, %v2631
    %v2642 = vpack.c.b16 %v2634, %v2633
    %2651 = vmatpush.bf16.msra.mxu0 %v2642
    %2652 = vmatpush.bf16.msra.mxu0 %v2641
    %2653 = vmatpush.bf16.msra.mxu0 %v2640
    %2654 = vmatpush.bf16.msra.mxu0 %v2639
    %2655 = vmatpush.bf16.msra.mxu0 %v2638
    %2656 = vmatpush.bf16.msra.mxu0 %v2637
    %2657 = vmatpush.bf16.msra.mxu0 %v2636
    %2658 = vmatpush.bf16.msra.mxu0 %v2635
    %2659 = vmatmul.bf16.gmra.mxu0 %v2585
    %v2660 = vpop.f32.mrf.mxu0
    %v2661 = vadd.f32 0.0, %v2660
    %v2662 = vpop.f32.mrf.mxu0
    %v2663 = vadd.f32 0.0, %v2662
    %2664 = vdwg.mxu0
    %v2681 = vunpack.c.l.b16 %v2495
    %v2682 = vunpack.c.l.b16 %v2496
    %v2683 = vunpack.c.l.b16 %v2497
    %v2684 = vunpack.c.l.b16 %v2498
    %v2685 = vunpack.c.l.b16 %v2499
    %v2686 = vunpack.c.l.b16 %v2500
    %v2687 = vunpack.c.l.b16 %v2501
    %v2688 = vunpack.c.l.b16 %v2502
    %v2689 = vunpack.c.l.b16 %v2503
    %v2690 = vunpack.c.l.b16 %v2504
    %v2691 = vunpack.c.l.b16 %v2505
    %v2692 = vunpack.c.l.b16 %v2506
    %v2693 = vunpack.c.l.b16 %v2507
    %v2694 = vunpack.c.l.b16 %v2508
    %v2695 = vunpack.c.l.b16 %v2509
    %v2696 = vunpack.c.l.b16 %v2510
    %v2697 = vpack.c.b16 %v2682, %v2681
    %v2698 = vpack.c.b16 %v2684, %v2683
    %v2699 = vpack.c.b16 %v2686, %v2685
    %v2700 = vpack.c.b16 %v2688, %v2687
    %v2701 = vpack.c.b16 %v2690, %v2689
    %v2702 = vpack.c.b16 %v2692, %v2691
    %v2703 = vpack.c.b16 %v2694, %v2693
    %v2704 = vpack.c.b16 %v2696, %v2695
    %2713 = vmatpush.bf16.msra.mxu0 %v2704
    %2714 = vmatpush.bf16.msra.mxu0 %v2703
    %2715 = vmatpush.bf16.msra.mxu0 %v2702
    %2716 = vmatpush.bf16.msra.mxu0 %v2701
    %2717 = vmatpush.bf16.msra.mxu0 %v2700
    %2718 = vmatpush.bf16.msra.mxu0 %v2699
    %2719 = vmatpush.bf16.msra.mxu0 %v2698
    %2720 = vmatpush.bf16.msra.mxu0 %v2697
    %2721 = vmatmul.bf16.gmra.mxu0 %v2493
    %v2722 = vpop.f32.mrf.mxu0
    %v2723 = vadd.f32 %v2661, %v2722
    %v2724 = vpop.f32.mrf.mxu0
    %v2725 = vadd.f32 %v2663, %v2724
    %2726 = vdwg.mxu0
    %v2727 = vadd.f32 %v1732, %v2723
    %v2728 = vadd.f32 %v1733, %v2725
    %s2729 = scalar_lea.vmem %s7, 1
    %v2730 = vld [vmem:[%s2729] sm:$0x1]
    %v2731 = vmul.f32 %v2727, %v2727
    %v2732 = vmul.f32 %v2728, %v2728
    %2733 = vadd.xlane.f32.xlu0 %v2731
    %v2734 = vpop.xlane.xlu0 %2733
    %2735 = vadd.xlane.f32.xlu0 %v2732
    %v2736 = vpop.xlane.xlu0 %2735
    %v2737 = vmul.f32 %v2734, %v67
    %v2738 = vmul.f32 %v2736, %v67
    %v2739 = vadd.f32 %v2737, 1e-05
    %v2740 = vadd.f32 %v2738, 1e-05
    %v2741 = vrsqrt.pop %v2739
    %v2742 = vmul.f32 %v2741, %v2739
    %v2743 = vmul.f32 %v2742, %v2741
    %v2744 = vmul.f32 0.5, %v2743
    %v2745 = vsub.f32 1.5, %v2744
    %v2746 = vmul.f32 %v2741, %v2745
    %vm2747 = vweird.f32 %v2739
    %vm2748 = vweird.f32 %v2741
    %vm2749 = vmor %vm2747, %vm2748
    %v2750 = vsel %vm2749, %v2741, %v2746
    %v2751 = vrsqrt.pop %v2740
    %v2752 = vmul.f32 %v2751, %v2740
    %v2753 = vmul.f32 %v2752, %v2751
    %v2754 = vmul.f32 0.5, %v2753
    %v2755 = vsub.f32 1.5, %v2754
    %v2756 = vmul.f32 %v2751, %v2755
    %vm2757 = vweird.f32 %v2740
    %vm2758 = vweird.f32 %v2751
    %vm2759 = vmor %vm2757, %vm2758
    %v2760 = vsel %vm2759, %v2751, %v2756
    %v2761 = vmul.f32 %v2727, %v2750
    %v2762 = vmul.f32 %v2728, %v2760
    %v2764 = vperm.slane %v2730, 0
    %v2766 = vmul.f32 %v2761, %v2764
    %v2767 = vmul.f32 %v2762, %v2764
    %v2768 = vpack.c.bf16 %v2767, %v2766
    %s2769 = scalar_lea.vmem %s8, 384
    %v2770 = vld [vmem:[%s2769] sm:$0xff]
    %v2771 = vld [vmem:[%s2769 + $0x8] sm:$0xff]
    %v2772 = vld [vmem:[%s2769 + $0x10] sm:$0xff]
    %v2773 = vld [vmem:[%s2769 + $0x18] sm:$0xff]
    %v2774 = vld [vmem:[%s2769 + $0x20] sm:$0xff]
    %v2775 = vld [vmem:[%s2769 + $0x28] sm:$0xff]
    %v2776 = vld [vmem:[%s2769 + $0x30] sm:$0xff]
    %v2777 = vld [vmem:[%s2769 + $0x38] sm:$0xff]
    %v2778 = vld [vmem:[%s2769 + $0x40] sm:$0xff]
    %v2779 = vld [vmem:[%s2769 + $0x48] sm:$0xff]
    %v2780 = vld [vmem:[%s2769 + $0x50] sm:$0xff]
    %v2781 = vld [vmem:[%s2769 + $0x58] sm:$0xff]
    %v2782 = vld [vmem:[%s2769 + $0x60] sm:$0xff]
    %v2783 = vld [vmem:[%s2769 + $0x68] sm:$0xff]
    %v2784 = vld [vmem:[%s2769 + $0x70] sm:$0xff]
    %v2785 = vld [vmem:[%s2769 + $0x78] sm:$0xff]
    %v2786 = vld [vmem:[%s2769 + $0x80] sm:$0xff]
    %v2787 = vld [vmem:[%s2769 + $0x88] sm:$0xff]
    %v2788 = vld [vmem:[%s2769 + $0x90] sm:$0xff]
    %v2789 = vld [vmem:[%s2769 + $0x98] sm:$0xff]
    %v2790 = vld [vmem:[%s2769 + $0xa0] sm:$0xff]
    %v2791 = vld [vmem:[%s2769 + $0xa8] sm:$0xff]
    %v2792 = vld [vmem:[%s2769 + $0xb0] sm:$0xff]
    %v2793 = vld [vmem:[%s2769 + $0xb8] sm:$0xff]
    %v2794 = vld [vmem:[%s2769 + $0xc0] sm:$0xff]
    %v2795 = vld [vmem:[%s2769 + $0xc8] sm:$0xff]
    %v2796 = vld [vmem:[%s2769 + $0xd0] sm:$0xff]
    %v2797 = vld [vmem:[%s2769 + $0xd8] sm:$0xff]
    %v2798 = vld [vmem:[%s2769 + $0xe0] sm:$0xff]
    %v2799 = vld [vmem:[%s2769 + $0xe8] sm:$0xff]
    %v2800 = vld [vmem:[%s2769 + $0xf0] sm:$0xff]
    %v2801 = vld [vmem:[%s2769 + $0xf8] sm:$0xff]
    %v2802 = vld [vmem:[%s2769 + $0x100] sm:$0xff]
    %v2803 = vld [vmem:[%s2769 + $0x108] sm:$0xff]
    %v2804 = vld [vmem:[%s2769 + $0x110] sm:$0xff]
    %v2805 = vld [vmem:[%s2769 + $0x118] sm:$0xff]
    %v2806 = vld [vmem:[%s2769 + $0x120] sm:$0xff]
    %v2807 = vld [vmem:[%s2769 + $0x128] sm:$0xff]
    %v2808 = vld [vmem:[%s2769 + $0x130] sm:$0xff]
    %v2809 = vld [vmem:[%s2769 + $0x138] sm:$0xff]
    %v2810 = vld [vmem:[%s2769 + $0x140] sm:$0xff]
    %v2811 = vld [vmem:[%s2769 + $0x148] sm:$0xff]
    %v2812 = vld [vmem:[%s2769 + $0x150] sm:$0xff]
    %v2813 = vld [vmem:[%s2769 + $0x158] sm:$0xff]
    %v2814 = vld [vmem:[%s2769 + $0x160] sm:$0xff]
    %v2815 = vld [vmem:[%s2769 + $0x168] sm:$0xff]
    %v2816 = vld [vmem:[%s2769 + $0x170] sm:$0xff]
    %v2817 = vld [vmem:[%s2769 + $0x178] sm:$0xff]
    %v2866 = vunpack.c.l.b16 %v2770
    %v2867 = vunpack.c.h.b16 %v2770
    %v2868 = vunpack.c.l.b16 %v2771
    %v2869 = vunpack.c.h.b16 %v2771
    %v2870 = vunpack.c.l.b16 %v2772
    %v2871 = vunpack.c.h.b16 %v2772
    %v2872 = vunpack.c.l.b16 %v2773
    %v2873 = vunpack.c.h.b16 %v2773
    %v2874 = vunpack.c.l.b16 %v2774
    %v2875 = vunpack.c.h.b16 %v2774
    %v2876 = vunpack.c.l.b16 %v2775
    %v2877 = vunpack.c.h.b16 %v2775
    %v2878 = vunpack.c.l.b16 %v2776
    %v2879 = vunpack.c.h.b16 %v2776
    %v2880 = vunpack.c.l.b16 %v2777
    %v2881 = vunpack.c.h.b16 %v2777
    %v2882 = vunpack.c.l.b16 %v2778
    %v2883 = vunpack.c.h.b16 %v2778
    %v2884 = vunpack.c.l.b16 %v2779
    %v2885 = vunpack.c.h.b16 %v2779
    %v2886 = vunpack.c.l.b16 %v2780
    %v2887 = vunpack.c.h.b16 %v2780
    %v2888 = vunpack.c.l.b16 %v2781
    %v2889 = vunpack.c.h.b16 %v2781
    %v2890 = vunpack.c.l.b16 %v2782
    %v2891 = vunpack.c.h.b16 %v2782
    %v2892 = vunpack.c.l.b16 %v2783
    %v2893 = vunpack.c.h.b16 %v2783
    %v2894 = vunpack.c.l.b16 %v2784
    %v2895 = vunpack.c.h.b16 %v2784
    %v2896 = vunpack.c.l.b16 %v2785
    %v2897 = vunpack.c.h.b16 %v2785
    %v2898 = vunpack.c.l.b16 %v2786
    %v2899 = vunpack.c.h.b16 %v2786
    %v2900 = vunpack.c.l.b16 %v2787
    %v2901 = vunpack.c.h.b16 %v2787
    %v2902 = vunpack.c.l.b16 %v2788
    %v2903 = vunpack.c.h.b16 %v2788
    %v2904 = vunpack.c.l.b16 %v2789
    %v2905 = vunpack.c.h.b16 %v2789
    %v2906 = vunpack.c.l.b16 %v2790
    %v2907 = vunpack.c.h.b16 %v2790
    %v2908 = vunpack.c.l.b16 %v2791
    %v2909 = vunpack.c.h.b16 %v2791
    %v2910 = vunpack.c.l.b16 %v2792
    %v2911 = vunpack.c.h.b16 %v2792
    %v2912 = vunpack.c.l.b16 %v2793
    %v2913 = vunpack.c.h.b16 %v2793
    %v2914 = vunpack.c.l.b16 %v2794
    %v2915 = vunpack.c.h.b16 %v2794
    %v2916 = vunpack.c.l.b16 %v2795
    %v2917 = vunpack.c.h.b16 %v2795
    %v2918 = vunpack.c.l.b16 %v2796
    %v2919 = vunpack.c.h.b16 %v2796
    %v2920 = vunpack.c.l.b16 %v2797
    %v2921 = vunpack.c.h.b16 %v2797
    %v2922 = vunpack.c.l.b16 %v2798
    %v2923 = vunpack.c.h.b16 %v2798
    %v2924 = vunpack.c.l.b16 %v2799
    %v2925 = vunpack.c.h.b16 %v2799
    %v2926 = vunpack.c.l.b16 %v2800
    %v2927 = vunpack.c.h.b16 %v2800
    %v2928 = vunpack.c.l.b16 %v2801
    %v2929 = vunpack.c.h.b16 %v2801
    %v2930 = vunpack.c.l.b16 %v2802
    %v2931 = vunpack.c.h.b16 %v2802
    %v2932 = vunpack.c.l.b16 %v2803
    %v2933 = vunpack.c.h.b16 %v2803
    %v2934 = vunpack.c.l.b16 %v2804
    %v2935 = vunpack.c.h.b16 %v2804
    %v2936 = vunpack.c.l.b16 %v2805
    %v2937 = vunpack.c.h.b16 %v2805
    %v2938 = vunpack.c.l.b16 %v2806
    %v2939 = vunpack.c.h.b16 %v2806
    %v2940 = vunpack.c.l.b16 %v2807
    %v2941 = vunpack.c.h.b16 %v2807
    %v2942 = vunpack.c.l.b16 %v2808
    %v2943 = vunpack.c.h.b16 %v2808
    %v2944 = vunpack.c.l.b16 %v2809
    %v2945 = vunpack.c.h.b16 %v2809
    %v2946 = vunpack.c.l.b16 %v2810
    %v2947 = vunpack.c.h.b16 %v2810
    %v2948 = vunpack.c.l.b16 %v2811
    %v2949 = vunpack.c.h.b16 %v2811
    %v2950 = vunpack.c.l.b16 %v2812
    %v2951 = vunpack.c.h.b16 %v2812
    %v2952 = vunpack.c.l.b16 %v2813
    %v2953 = vunpack.c.h.b16 %v2813
    %v2954 = vunpack.c.l.b16 %v2814
    %v2955 = vunpack.c.h.b16 %v2814
    %v2956 = vunpack.c.l.b16 %v2815
    %v2957 = vunpack.c.h.b16 %v2815
    %v2958 = vunpack.c.l.b16 %v2816
    %v2959 = vunpack.c.h.b16 %v2816
    %v2960 = vunpack.c.l.b16 %v2817
    %v2961 = vunpack.c.h.b16 %v2817
    %v2962 = vpack.c.b16 %v2872, %v2866
    %v2963 = vpack.c.b16 %v2873, %v2867
    %v2964 = vpack.c.b16 %v2874, %v2868
    %v2965 = vpack.c.b16 %v2875, %v2869
    %v2966 = vpack.c.b16 %v2876, %v2870
    %v2967 = vpack.c.b16 %v2877, %v2871
    %v2968 = vpack.c.b16 %v2884, %v2878
    %v2969 = vpack.c.b16 %v2885, %v2879
    %v2970 = vpack.c.b16 %v2886, %v2880
    %v2971 = vpack.c.b16 %v2887, %v2881
    %v2972 = vpack.c.b16 %v2888, %v2882
    %v2973 = vpack.c.b16 %v2889, %v2883
    %v2974 = vpack.c.b16 %v2896, %v2890
    %v2975 = vpack.c.b16 %v2897, %v2891
    %v2976 = vpack.c.b16 %v2898, %v2892
    %v2977 = vpack.c.b16 %v2899, %v2893
    %v2978 = vpack.c.b16 %v2900, %v2894
    %v2979 = vpack.c.b16 %v2901, %v2895
    %v2980 = vpack.c.b16 %v2908, %v2902
    %v2981 = vpack.c.b16 %v2909, %v2903
    %v2982 = vpack.c.b16 %v2910, %v2904
    %v2983 = vpack.c.b16 %v2911, %v2905
    %v2984 = vpack.c.b16 %v2912, %v2906
    %v2985 = vpack.c.b16 %v2913, %v2907
    %v2986 = vpack.c.b16 %v2920, %v2914
    %v2987 = vpack.c.b16 %v2921, %v2915
    %v2988 = vpack.c.b16 %v2922, %v2916
    %v2989 = vpack.c.b16 %v2923, %v2917
    %v2990 = vpack.c.b16 %v2924, %v2918
    %v2991 = vpack.c.b16 %v2925, %v2919
    %v2992 = vpack.c.b16 %v2932, %v2926
    %v2993 = vpack.c.b16 %v2933, %v2927
    %v2994 = vpack.c.b16 %v2934, %v2928
    %v2995 = vpack.c.b16 %v2935, %v2929
    %v2996 = vpack.c.b16 %v2936, %v2930
    %v2997 = vpack.c.b16 %v2937, %v2931
    %v2998 = vpack.c.b16 %v2944, %v2938
    %v2999 = vpack.c.b16 %v2945, %v2939
    %v3000 = vpack.c.b16 %v2946, %v2940
    %v3001 = vpack.c.b16 %v2947, %v2941
    %v3002 = vpack.c.b16 %v2948, %v2942
    %v3003 = vpack.c.b16 %v2949, %v2943
    %v3004 = vpack.c.b16 %v2956, %v2950
    %v3005 = vpack.c.b16 %v2957, %v2951
    %v3006 = vpack.c.b16 %v2958, %v2952
    %v3007 = vpack.c.b16 %v2959, %v2953
    %v3008 = vpack.c.b16 %v2960, %v2954
    %v3009 = vpack.c.b16 %v2961, %v2955
    %3058 = vmatpush.bf16.msra.mxu0 %v3004
    %3059 = vmatpush.bf16.msra.mxu0 %v2998
    %3060 = vmatpush.bf16.msra.mxu0 %v2992
    %3061 = vmatpush.bf16.msra.mxu0 %v2986
    %3062 = vmatpush.bf16.msra.mxu0 %v2980
    %3063 = vmatpush.bf16.msra.mxu0 %v2974
    %3064 = vmatpush.bf16.msra.mxu0 %v2968
    %3065 = vmatpush.bf16.msra.mxu0 %v2962
    %3066 = vmatmul.bf16.gmra.mxu0 %v2768
    %v3067 = vpop.f32.mrf.mxu0
    %v3068 = vadd.f32 0.0, %v3067
    %v3069 = vpop.f32.mrf.mxu0
    %v3070 = vadd.f32 0.0, %v3069
    %3071 = vdwg.mxu0
    %3072 = vmatpush.bf16.msra.mxu0 %v3005
    %3073 = vmatpush.bf16.msra.mxu0 %v2999
    %3074 = vmatpush.bf16.msra.mxu0 %v2993
    %3075 = vmatpush.bf16.msra.mxu0 %v2987
    %3076 = vmatpush.bf16.msra.mxu0 %v2981
    %3077 = vmatpush.bf16.msra.mxu0 %v2975
    %3078 = vmatpush.bf16.msra.mxu0 %v2969
    %3079 = vmatpush.bf16.msra.mxu0 %v2963
    %3080 = vmatmul.bf16.gmra.mxu0 %v2768
    %v3081 = vpop.f32.mrf.mxu0
    %v3082 = vadd.f32 0.0, %v3081
    %v3083 = vpop.f32.mrf.mxu0
    %v3084 = vadd.f32 0.0, %v3083
    %3085 = vdwg.mxu0
    %3086 = vmatpush.bf16.msra.mxu0 %v3006
    %3087 = vmatpush.bf16.msra.mxu0 %v3000
    %3088 = vmatpush.bf16.msra.mxu0 %v2994
    %3089 = vmatpush.bf16.msra.mxu0 %v2988
    %3090 = vmatpush.bf16.msra.mxu0 %v2982
    %3091 = vmatpush.bf16.msra.mxu0 %v2976
    %3092 = vmatpush.bf16.msra.mxu0 %v2970
    %3093 = vmatpush.bf16.msra.mxu0 %v2964
    %3094 = vmatmul.bf16.gmra.mxu0 %v2768
    %v3095 = vpop.f32.mrf.mxu0
    %v3096 = vadd.f32 0.0, %v3095
    %v3097 = vpop.f32.mrf.mxu0
    %v3098 = vadd.f32 0.0, %v3097
    %3099 = vdwg.mxu0
    %3100 = vmatpush.bf16.msra.mxu0 %v3007
    %3101 = vmatpush.bf16.msra.mxu0 %v3001
    %3102 = vmatpush.bf16.msra.mxu0 %v2995
    %3103 = vmatpush.bf16.msra.mxu0 %v2989
    %3104 = vmatpush.bf16.msra.mxu0 %v2983
    %3105 = vmatpush.bf16.msra.mxu0 %v2977
    %3106 = vmatpush.bf16.msra.mxu0 %v2971
    %3107 = vmatpush.bf16.msra.mxu0 %v2965
    %3108 = vmatmul.bf16.gmra.mxu0 %v2768
    %v3109 = vpop.f32.mrf.mxu0
    %v3110 = vadd.f32 0.0, %v3109
    %v3111 = vpop.f32.mrf.mxu0
    %v3112 = vadd.f32 0.0, %v3111
    %3113 = vdwg.mxu0
    %3114 = vmatpush.bf16.msra.mxu0 %v3008
    %3115 = vmatpush.bf16.msra.mxu0 %v3002
    %3116 = vmatpush.bf16.msra.mxu0 %v2996
    %3117 = vmatpush.bf16.msra.mxu0 %v2990
    %3118 = vmatpush.bf16.msra.mxu0 %v2984
    %3119 = vmatpush.bf16.msra.mxu0 %v2978
    %3120 = vmatpush.bf16.msra.mxu0 %v2972
    %3121 = vmatpush.bf16.msra.mxu0 %v2966
    %3122 = vmatmul.bf16.gmra.mxu0 %v2768
    %v3123 = vpop.f32.mrf.mxu0
    %v3124 = vadd.f32 0.0, %v3123
    %v3125 = vpop.f32.mrf.mxu0
    %v3126 = vadd.f32 0.0, %v3125
    %3127 = vdwg.mxu0
    %3128 = vmatpush.bf16.msra.mxu0 %v3009
    %3129 = vmatpush.bf16.msra.mxu0 %v3003
    %3130 = vmatpush.bf16.msra.mxu0 %v2997
    %3131 = vmatpush.bf16.msra.mxu0 %v2991
    %3132 = vmatpush.bf16.msra.mxu0 %v2985
    %3133 = vmatpush.bf16.msra.mxu0 %v2979
    %3134 = vmatpush.bf16.msra.mxu0 %v2973
    %3135 = vmatpush.bf16.msra.mxu0 %v2967
    %3136 = vmatmul.bf16.gmra.mxu0 %v2768
    %v3137 = vpop.f32.mrf.mxu0
    %v3138 = vadd.f32 0.0, %v3137
    %v3139 = vpop.f32.mrf.mxu0
    %v3140 = vadd.f32 0.0, %v3139
    %3141 = vdwg.mxu0
    %v3142 = vmul.f32 %v3068, 0.5
    %v3143 = vmul.f32 %v3082, 0.5
    %v3144 = vmul.f32 %v3096, 0.5
    %v3145 = vmul.f32 %v3070, 0.5
    %v3146 = vmul.f32 %v3084, 0.5
    %v3147 = vmul.f32 %v3098, 0.5
    %v3148 = vtanh.pop %v3142
    %v3149 = vtanh.pop %v3143
    %v3150 = vtanh.pop %v3144
    %v3151 = vtanh.pop %v3145
    %v3152 = vtanh.pop %v3146
    %v3153 = vtanh.pop %v3147
    %v3154 = vadd.f32 %v3148, 1.0
    %v3155 = vadd.f32 %v3149, 1.0
    %v3156 = vadd.f32 %v3150, 1.0
    %v3157 = vadd.f32 %v3151, 1.0
    %v3158 = vadd.f32 %v3152, 1.0
    %v3159 = vadd.f32 %v3153, 1.0
    %v3160 = vmul.f32 %v3142, %v3154
    %v3161 = vmul.f32 %v3143, %v3155
    %v3162 = vmul.f32 %v3144, %v3156
    %v3163 = vmul.f32 %v3145, %v3157
    %v3164 = vmul.f32 %v3146, %v3158
    %v3165 = vmul.f32 %v3147, %v3159
    %v3166 = vmul.f32 %v3160, %v3110
    %v3167 = vmul.f32 %v3161, %v3124
    %v3168 = vmul.f32 %v3162, %v3138
    %v3169 = vmul.f32 %v3163, %v3112
    %v3170 = vmul.f32 %v3164, %v3126
    %v3171 = vmul.f32 %v3165, %v3140
    %v3172 = vpack.c.bf16 %v3169, %v3166
    %v3173 = vpack.c.bf16 %v3170, %v3167
    %v3174 = vpack.c.bf16 %v3171, %v3168
    %s3175 = scalar_lea.vmem %s9, 192
    %v3176 = vld [vmem:[%s3175] sm:$0xf]
    %v3177 = vld [vmem:[%s3175 + $0x4] sm:$0xf]
    %v3178 = vld [vmem:[%s3175 + $0x8] sm:$0xf]
    %v3179 = vld [vmem:[%s3175 + $0xc] sm:$0xf]
    %v3180 = vld [vmem:[%s3175 + $0x10] sm:$0xf]
    %v3181 = vld [vmem:[%s3175 + $0x14] sm:$0xf]
    %v3182 = vld [vmem:[%s3175 + $0x18] sm:$0xf]
    %v3183 = vld [vmem:[%s3175 + $0x1c] sm:$0xf]
    %v3184 = vld [vmem:[%s3175 + $0x20] sm:$0xf]
    %v3185 = vld [vmem:[%s3175 + $0x24] sm:$0xf]
    %v3186 = vld [vmem:[%s3175 + $0x28] sm:$0xf]
    %v3187 = vld [vmem:[%s3175 + $0x2c] sm:$0xf]
    %v3188 = vld [vmem:[%s3175 + $0x30] sm:$0xf]
    %v3189 = vld [vmem:[%s3175 + $0x34] sm:$0xf]
    %v3190 = vld [vmem:[%s3175 + $0x38] sm:$0xf]
    %v3191 = vld [vmem:[%s3175 + $0x3c] sm:$0xf]
    %v3192 = vld [vmem:[%s3175 + $0x40] sm:$0xf]
    %v3193 = vld [vmem:[%s3175 + $0x44] sm:$0xf]
    %v3194 = vld [vmem:[%s3175 + $0x48] sm:$0xf]
    %v3195 = vld [vmem:[%s3175 + $0x4c] sm:$0xf]
    %v3196 = vld [vmem:[%s3175 + $0x50] sm:$0xf]
    %v3197 = vld [vmem:[%s3175 + $0x54] sm:$0xf]
    %v3198 = vld [vmem:[%s3175 + $0x58] sm:$0xf]
    %v3199 = vld [vmem:[%s3175 + $0x5c] sm:$0xf]
    %v3200 = vld [vmem:[%s3175 + $0x60] sm:$0xf]
    %v3201 = vld [vmem:[%s3175 + $0x64] sm:$0xf]
    %v3202 = vld [vmem:[%s3175 + $0x68] sm:$0xf]
    %v3203 = vld [vmem:[%s3175 + $0x6c] sm:$0xf]
    %v3204 = vld [vmem:[%s3175 + $0x70] sm:$0xf]
    %v3205 = vld [vmem:[%s3175 + $0x74] sm:$0xf]
    %v3206 = vld [vmem:[%s3175 + $0x78] sm:$0xf]
    %v3207 = vld [vmem:[%s3175 + $0x7c] sm:$0xf]
    %v3208 = vld [vmem:[%s3175 + $0x80] sm:$0xf]
    %v3209 = vld [vmem:[%s3175 + $0x84] sm:$0xf]
    %v3210 = vld [vmem:[%s3175 + $0x88] sm:$0xf]
    %v3211 = vld [vmem:[%s3175 + $0x8c] sm:$0xf]
    %v3212 = vld [vmem:[%s3175 + $0x90] sm:$0xf]
    %v3213 = vld [vmem:[%s3175 + $0x94] sm:$0xf]
    %v3214 = vld [vmem:[%s3175 + $0x98] sm:$0xf]
    %v3215 = vld [vmem:[%s3175 + $0x9c] sm:$0xf]
    %v3216 = vld [vmem:[%s3175 + $0xa0] sm:$0xf]
    %v3217 = vld [vmem:[%s3175 + $0xa4] sm:$0xf]
    %v3218 = vld [vmem:[%s3175 + $0xa8] sm:$0xf]
    %v3219 = vld [vmem:[%s3175 + $0xac] sm:$0xf]
    %v3220 = vld [vmem:[%s3175 + $0xb0] sm:$0xf]
    %v3221 = vld [vmem:[%s3175 + $0xb4] sm:$0xf]
    %v3222 = vld [vmem:[%s3175 + $0xb8] sm:$0xf]
    %v3223 = vld [vmem:[%s3175 + $0xbc] sm:$0xf]
    %v3272 = vunpack.c.l.b16 %v3176
    %v3273 = vunpack.c.l.b16 %v3177
    %v3274 = vunpack.c.l.b16 %v3178
    %v3275 = vunpack.c.l.b16 %v3179
    %v3276 = vunpack.c.l.b16 %v3180
    %v3277 = vunpack.c.l.b16 %v3181
    %v3278 = vunpack.c.l.b16 %v3182
    %v3279 = vunpack.c.l.b16 %v3183
    %v3280 = vunpack.c.l.b16 %v3184
    %v3281 = vunpack.c.l.b16 %v3185
    %v3282 = vunpack.c.l.b16 %v3186
    %v3283 = vunpack.c.l.b16 %v3187
    %v3284 = vunpack.c.l.b16 %v3188
    %v3285 = vunpack.c.l.b16 %v3189
    %v3286 = vunpack.c.l.b16 %v3190
    %v3287 = vunpack.c.l.b16 %v3191
    %v3288 = vunpack.c.l.b16 %v3192
    %v3289 = vunpack.c.l.b16 %v3193
    %v3290 = vunpack.c.l.b16 %v3194
    %v3291 = vunpack.c.l.b16 %v3195
    %v3292 = vunpack.c.l.b16 %v3196
    %v3293 = vunpack.c.l.b16 %v3197
    %v3294 = vunpack.c.l.b16 %v3198
    %v3295 = vunpack.c.l.b16 %v3199
    %v3296 = vunpack.c.l.b16 %v3200
    %v3297 = vunpack.c.l.b16 %v3201
    %v3298 = vunpack.c.l.b16 %v3202
    %v3299 = vunpack.c.l.b16 %v3203
    %v3300 = vunpack.c.l.b16 %v3204
    %v3301 = vunpack.c.l.b16 %v3205
    %v3302 = vunpack.c.l.b16 %v3206
    %v3303 = vunpack.c.l.b16 %v3207
    %v3304 = vunpack.c.l.b16 %v3208
    %v3305 = vunpack.c.l.b16 %v3209
    %v3306 = vunpack.c.l.b16 %v3210
    %v3307 = vunpack.c.l.b16 %v3211
    %v3308 = vunpack.c.l.b16 %v3212
    %v3309 = vunpack.c.l.b16 %v3213
    %v3310 = vunpack.c.l.b16 %v3214
    %v3311 = vunpack.c.l.b16 %v3215
    %v3312 = vunpack.c.l.b16 %v3216
    %v3313 = vunpack.c.l.b16 %v3217
    %v3314 = vunpack.c.l.b16 %v3218
    %v3315 = vunpack.c.l.b16 %v3219
    %v3316 = vunpack.c.l.b16 %v3220
    %v3317 = vunpack.c.l.b16 %v3221
    %v3318 = vunpack.c.l.b16 %v3222
    %v3319 = vunpack.c.l.b16 %v3223
    %v3320 = vpack.c.b16 %v3273, %v3272
    %v3321 = vpack.c.b16 %v3275, %v3274
    %v3322 = vpack.c.b16 %v3277, %v3276
    %v3323 = vpack.c.b16 %v3279, %v3278
    %v3324 = vpack.c.b16 %v3281, %v3280
    %v3325 = vpack.c.b16 %v3283, %v3282
    %v3326 = vpack.c.b16 %v3285, %v3284
    %v3327 = vpack.c.b16 %v3287, %v3286
    %v3328 = vpack.c.b16 %v3289, %v3288
    %v3329 = vpack.c.b16 %v3291, %v3290
    %v3330 = vpack.c.b16 %v3293, %v3292
    %v3331 = vpack.c.b16 %v3295, %v3294
    %v3332 = vpack.c.b16 %v3297, %v3296
    %v3333 = vpack.c.b16 %v3299, %v3298
    %v3334 = vpack.c.b16 %v3301, %v3300
    %v3335 = vpack.c.b16 %v3303, %v3302
    %v3336 = vpack.c.b16 %v3305, %v3304
    %v3337 = vpack.c.b16 %v3307, %v3306
    %v3338 = vpack.c.b16 %v3309, %v3308
    %v3339 = vpack.c.b16 %v3311, %v3310
    %v3340 = vpack.c.b16 %v3313, %v3312
    %v3341 = vpack.c.b16 %v3315, %v3314
    %v3342 = vpack.c.b16 %v3317, %v3316
    %v3343 = vpack.c.b16 %v3319, %v3318
    %3368 = vmatpush.bf16.msra.mxu0 %v3327
    %3369 = vmatpush.bf16.msra.mxu0 %v3326
    %3370 = vmatpush.bf16.msra.mxu0 %v3325
    %3371 = vmatpush.bf16.msra.mxu0 %v3324
    %3372 = vmatpush.bf16.msra.mxu0 %v3323
    %3373 = vmatpush.bf16.msra.mxu0 %v3322
    %3374 = vmatpush.bf16.msra.mxu0 %v3321
    %3375 = vmatpush.bf16.msra.mxu0 %v3320
    %3376 = vmatmul.bf16.gmra.mxu0 %v3172
    %v3377 = vpop.f32.mrf.mxu0
    %v3378 = vadd.f32 0.0, %v3377
    %v3379 = vpop.f32.mrf.mxu0
    %v3380 = vadd.f32 0.0, %v3379
    %3381 = vdwg.mxu0
    %3382 = vmatpush.bf16.msra.mxu0 %v3335
    %3383 = vmatpush.bf16.msra.mxu0 %v3334
    %3384 = vmatpush.bf16.msra.mxu0 %v3333
    %3385 = vmatpush.bf16.msra.mxu0 %v3332
    %3386 = vmatpush.bf16.msra.mxu0 %v3331
    %3387 = vmatpush.bf16.msra.mxu0 %v3330
    %3388 = vmatpush.bf16.msra.mxu0 %v3329
    %3389 = vmatpush.bf16.msra.mxu0 %v3328
    %3390 = vmatmul.bf16.gmra.mxu0 %v3173
    %v3391 = vpop.f32.mrf.mxu0
    %v3392 = vadd.f32 %v3378, %v3391
    %v3393 = vpop.f32.mrf.mxu0
    %v3394 = vadd.f32 %v3380, %v3393
    %3395 = vdwg.mxu0
    %3396 = vmatpush.bf16.msra.mxu0 %v3343
    %3397 = vmatpush.bf16.msra.mxu0 %v3342
    %3398 = vmatpush.bf16.msra.mxu0 %v3341
    %3399 = vmatpush.bf16.msra.mxu0 %v3340
    %3400 = vmatpush.bf16.msra.mxu0 %v3339
    %3401 = vmatpush.bf16.msra.mxu0 %v3338
    %3402 = vmatpush.bf16.msra.mxu0 %v3337
    %3403 = vmatpush.bf16.msra.mxu0 %v3336
    %3404 = vmatmul.bf16.gmra.mxu0 %v3174
    %v3405 = vpop.f32.mrf.mxu0
    %v3406 = vadd.f32 %v3392, %v3405
    %v3407 = vpop.f32.mrf.mxu0
    %v3408 = vadd.f32 %v3394, %v3407
    %3409 = vdwg.mxu0
    %v3410 = vadd.f32 %v2727, %v3406
    %v3411 = vadd.f32 %v2728, %v3408
    %v3412 = vld [vmem:[%s10] sm:$0x1]
    %v3413 = vmul.f32 %v3410, %v3410
    %v3414 = vmul.f32 %v3411, %v3411
    %3415 = vadd.xlane.f32.xlu0 %v3413
    %v3416 = vpop.xlane.xlu0 %3415
    %3417 = vadd.xlane.f32.xlu0 %v3414
    %v3418 = vpop.xlane.xlu0 %3417
    %v3419 = vmul.f32 %v3416, %v67
    %v3420 = vmul.f32 %v3418, %v67
    %v3421 = vadd.f32 %v3419, 1e-05
    %v3422 = vadd.f32 %v3420, 1e-05
    %v3423 = vrsqrt.pop %v3421
    %v3424 = vmul.f32 %v3423, %v3421
    %v3425 = vmul.f32 %v3424, %v3423
    %v3426 = vmul.f32 0.5, %v3425
    %v3427 = vsub.f32 1.5, %v3426
    %v3428 = vmul.f32 %v3423, %v3427
    %vm3429 = vweird.f32 %v3421
    %vm3430 = vweird.f32 %v3423
    %vm3431 = vmor %vm3429, %vm3430
    %v3432 = vsel %vm3431, %v3423, %v3428
    %v3433 = vrsqrt.pop %v3422
    %v3434 = vmul.f32 %v3433, %v3422
    %v3435 = vmul.f32 %v3434, %v3433
    %v3436 = vmul.f32 0.5, %v3435
    %v3437 = vsub.f32 1.5, %v3436
    %v3438 = vmul.f32 %v3433, %v3437
    %vm3439 = vweird.f32 %v3422
    %vm3440 = vweird.f32 %v3433
    %vm3441 = vmor %vm3439, %vm3440
    %v3442 = vsel %vm3441, %v3433, %v3438
    %v3443 = vmul.f32 %v3410, %v3432
    %v3444 = vmul.f32 %v3411, %v3442
    %v3446 = vperm.slane %v3412, 0
    %v3448 = vmul.f32 %v3443, %v3446
    %v3449 = vmul.f32 %v3444, %v3446
    %v3450 = vpack.c.bf16 %v3449, %v3448
    %v3451 = vld [vmem:[%s11] sm:$0xff]
    %v3452 = vld [vmem:[%s11 + $0x8] sm:$0xff]
    %v3453 = vld [vmem:[%s11 + $0x10] sm:$0xff]
    %v3454 = vld [vmem:[%s11 + $0x18] sm:$0xff]
    %v3455 = vld [vmem:[%s11 + $0x20] sm:$0xff]
    %v3456 = vld [vmem:[%s11 + $0x28] sm:$0xff]
    %v3457 = vld [vmem:[%s11 + $0x30] sm:$0xff]
    %v3458 = vld [vmem:[%s11 + $0x38] sm:$0xff]
    %v3459 = vld [vmem:[%s11 + $0x40] sm:$0xff]
    %v3460 = vld [vmem:[%s11 + $0x48] sm:$0xff]
    %v3461 = vld [vmem:[%s11 + $0x50] sm:$0xff]
    %v3462 = vld [vmem:[%s11 + $0x58] sm:$0xff]
    %v3463 = vld [vmem:[%s11 + $0x60] sm:$0xff]
    %v3464 = vld [vmem:[%s11 + $0x68] sm:$0xff]
    %v3465 = vld [vmem:[%s11 + $0x70] sm:$0xff]
    %v3466 = vld [vmem:[%s11 + $0x78] sm:$0xff]
    %v3483 = vunpack.c.l.b16 %v3451
    %v3484 = vunpack.c.h.b16 %v3451
    %v3485 = vunpack.c.l.b16 %v3452
    %v3486 = vunpack.c.h.b16 %v3452
    %v3487 = vunpack.c.l.b16 %v3453
    %v3488 = vunpack.c.h.b16 %v3453
    %v3489 = vunpack.c.l.b16 %v3454
    %v3490 = vunpack.c.h.b16 %v3454
    %v3491 = vunpack.c.l.b16 %v3455
    %v3492 = vunpack.c.h.b16 %v3455
    %v3493 = vunpack.c.l.b16 %v3456
    %v3494 = vunpack.c.h.b16 %v3456
    %v3495 = vunpack.c.l.b16 %v3457
    %v3496 = vunpack.c.h.b16 %v3457
    %v3497 = vunpack.c.l.b16 %v3458
    %v3498 = vunpack.c.h.b16 %v3458
    %v3499 = vunpack.c.l.b16 %v3459
    %v3500 = vunpack.c.h.b16 %v3459
    %v3501 = vunpack.c.l.b16 %v3460
    %v3502 = vunpack.c.h.b16 %v3460
    %v3503 = vunpack.c.l.b16 %v3461
    %v3504 = vunpack.c.h.b16 %v3461
    %v3505 = vunpack.c.l.b16 %v3462
    %v3506 = vunpack.c.h.b16 %v3462
    %v3507 = vunpack.c.l.b16 %v3463
    %v3508 = vunpack.c.h.b16 %v3463
    %v3509 = vunpack.c.l.b16 %v3464
    %v3510 = vunpack.c.h.b16 %v3464
    %v3511 = vunpack.c.l.b16 %v3465
    %v3512 = vunpack.c.h.b16 %v3465
    %v3513 = vunpack.c.l.b16 %v3466
    %v3514 = vunpack.c.h.b16 %v3466
    %v3515 = vpack.c.b16 %v3485, %v3483
    %v3516 = vpack.c.b16 %v3486, %v3484
    %v3517 = vpack.c.b16 %v3489, %v3487
    %v3518 = vpack.c.b16 %v3490, %v3488
    %v3519 = vpack.c.b16 %v3493, %v3491
    %v3520 = vpack.c.b16 %v3494, %v3492
    %v3521 = vpack.c.b16 %v3497, %v3495
    %v3522 = vpack.c.b16 %v3498, %v3496
    %v3523 = vpack.c.b16 %v3501, %v3499
    %v3524 = vpack.c.b16 %v3502, %v3500
    %v3525 = vpack.c.b16 %v3505, %v3503
    %v3526 = vpack.c.b16 %v3506, %v3504
    %v3527 = vpack.c.b16 %v3509, %v3507
    %v3528 = vpack.c.b16 %v3510, %v3508
    %v3529 = vpack.c.b16 %v3513, %v3511
    %v3530 = vpack.c.b16 %v3514, %v3512
    %3547 = vmatpush.bf16.msra.mxu0 %v3529
    %3548 = vmatpush.bf16.msra.mxu0 %v3527
    %3549 = vmatpush.bf16.msra.mxu0 %v3525
    %3550 = vmatpush.bf16.msra.mxu0 %v3523
    %3551 = vmatpush.bf16.msra.mxu0 %v3521
    %3552 = vmatpush.bf16.msra.mxu0 %v3519
    %3553 = vmatpush.bf16.msra.mxu0 %v3517
    %3554 = vmatpush.bf16.msra.mxu0 %v3515
    %3555 = vmatmul.bf16.gmra.mxu0 %v3450
    %v3556 = vpop.f32.mrf.mxu0
    %v3557 = vadd.f32 0.0, %v3556
    %v3558 = vpop.f32.mrf.mxu0
    %v3559 = vadd.f32 0.0, %v3558
    %3560 = vdwg.mxu0
    %3561 = vmatpush.bf16.msra.mxu0 %v3530
    %3562 = vmatpush.bf16.msra.mxu0 %v3528
    %3563 = vmatpush.bf16.msra.mxu0 %v3526
    %3564 = vmatpush.bf16.msra.mxu0 %v3524
    %3565 = vmatpush.bf16.msra.mxu0 %v3522
    %3566 = vmatpush.bf16.msra.mxu0 %v3520
    %3567 = vmatpush.bf16.msra.mxu0 %v3518
    %3568 = vmatpush.bf16.msra.mxu0 %v3516
    %3569 = vmatmul.bf16.gmra.mxu0 %v3450
    %v3570 = vpop.f32.mrf.mxu0
    %v3571 = vadd.f32 0.0, %v3570
    %v3572 = vpop.f32.mrf.mxu0
    %v3573 = vadd.f32 0.0, %v3572
    %3574 = vdwg.mxu0
    %3575 = vst [vmem:[#allocation2] sm:$0xff] %v3557
    %3576 = vst [vmem:[#allocation2 + $0x8] sm:$0xff] %v3571
    %3577 = vst [vmem:[#allocation2 + $0x10] sm:$0xff] %v3559
    %3578 = vst [vmem:[#allocation2 + $0x18] sm:$0xff] %v3573
    // Predicated region
    $region50: #{transformer_forward.1} parent=1 // pred_check
      _
    $region51: #{transformer_forward.1} parent=1 // pred_check_branch
      %3580 = sbr.rel (0) target = $region53
    $region52: #{transformer_forward.1} parent=1 // pred_region
      %3582 = vsyncadd [#allocation3], 0
      %s3583 = sshll.u32 [#allocation2], 4
      %s3584 = int_to_ptr.vmem [resolvable:$true] %s3583
      %s3585 = sshll.u32 %s12, 4
      %s3586 = int_to_ptr.hbm [resolvable:$true] %s3585
      %3591 = dma.vmem_to_hbm [thread:$0]  %s3584, 512, %s3586, [#allocation3], 256, 256, 16
    $region53: #{transformer_forward.1} parent=1 // pred_fallthru
      _
    // Predicated region
    $region54: #{transformer_forward.1} parent=1 // pred_check
      _
    $region55: #{transformer_forward.1} parent=1 // pred_check_branch
      %3593 = sbr.rel (0) target = $region57
    $region56: #{transformer_forward.1} parent=1 // pred_region
      %3595 = dma.done [#allocation3], 512
    $region57: #{transformer_forward.1} parent=1 // pred_fallthru
      _
    %3596 = vsyncpa [#allocation3], 1

</llo_original>
